<compile_context>
chip_gen: v7x
topology: tpu7x:2x2x1
jax: 0.10.0
libtpu: 0.0.40
codegen_flags: <defaults>
</compile_context>

<pallas_src>
import functools
import math

import jax
import jax.numpy as jnp
from jax.experimental import pallas as pl
from jax.experimental.pallas import tpu as pltpu


# ---------------------------------------------------------------------------
# Pallas kernel: full recurrence x depth stack for one batch element.
# ---------------------------------------------------------------------------
def _fused_stack_kernel(*refs, layer_specs, recurrence, depth):
    x_ref, adjt_ref = refs[0], refs[1]
    o_ref = refs[-1]
    w_refs = refs[2:-1]                  # (w_cat0, we0, w_cat1, we1, ...)

    x = x_ref[0]                         # [n, d_in0]
    adj_t = adjt_ref[0]                  # [n, n]; adj_t[t, s] = (edge*A)[s, t]
    mask = adj_t != 0.0                  # [t, s]

    def split_heads(t2d, heads, c):
        # [rows, heads*c] -> [heads, rows, c] via leading-axis stack (no transposes)
        if heads == 1:
            return t2d[None, :, :]
        return jnp.stack([t2d[:, h * c:(h + 1) * c] for h in range(heads)],
                         axis=0)

    def apply_layer(emb, l):
        d_in, heads, out_c, concat, norm_relu = layer_specs[l]
        w_cat = w_refs[2 * l][...]       # [d_in, 3*H*C + d_skip]
        we = w_refs[2 * l + 1][...]      # [1, H*C]
        hc = heads * out_c

        # Fused Q|K|V|skip projection: one matmul.
        if d_in == 1:
            proj = emb * w_cat           # [n,1] * [1, .] broadcast (no degenerate matmul)
        else:
            proj = jnp.dot(emb, w_cat, preferred_element_type=jnp.float32)

        qh = split_heads(proj[:, 0:hc], heads, out_c)             # [H, t, C]
        kh = split_heads(proj[:, hc:2 * hc], heads, out_c)        # [H, s, C]
        vh = split_heads(proj[:, 2 * hc:3 * hc], heads, out_c)    # [H, s, C]
        skip = proj[:, 3 * hc:]                                   # [n, d_skip]
        weh = split_heads(we, heads, out_c)                       # [H, 1, C]

        scale = 1.0 / math.sqrt(out_c)
        # scores[h, t, s] = (q_t . k_s + adj_t[t,s] * (q_t . We_h)) / sqrt(C)
        qk = jnp.einsum('htc,hsc->hts', qh, kh,
                        preferred_element_type=jnp.float32)
        qe = jnp.sum(qh * weh, axis=2, keepdims=True)             # [H, t, 1]
        scores = (qk + adj_t[None] * qe) * scale

        # Masked softmax over sources s (lane axis); targets w/o edges -> 0.
        neg = jnp.where(mask[None], scores, -1e30)
        m = jnp.max(neg, axis=-1, keepdims=True)
        ex = jnp.where(mask[None], jnp.exp(neg - m), 0.0)
        denom = jnp.sum(ex, axis=-1, keepdims=True)
        inv = pl.reciprocal(jnp.where(denom == 0.0, 1.0, denom), approx=True)
        alpha = ex * inv                                          # [H, t, s]

        # out[h, t] = sum_s alpha[h,t,s] * (v_s + adj_t[t,s] * We_h)
        out_h = jnp.einsum('hts,hsc->htc', alpha, vh,
                           preferred_element_type=jnp.float32)
        aw = jnp.sum(alpha * adj_t[None], axis=-1)                # [H, t]
        out_h = out_h + aw[:, :, None] * weh

        if concat:
            if heads == 1:
                out = out_h[0]
            else:  # not reached in this config; kept for generality
                out = jnp.concatenate([out_h[h] for h in range(heads)], axis=-1)
        else:
            out = jnp.mean(out_h, axis=0)

        out = out + skip                                          # root / skip weight

        if norm_relu:  # LayerNorm(elementwise_affine=False) then ReLU
            mu = jnp.mean(out, axis=-1, keepdims=True)
            var = jnp.mean((out - mu) ** 2, axis=-1, keepdims=True)
            out = (out - mu) * jax.lax.rsqrt(var + 1e-5)
            out = jnp.maximum(out, 0.0)
        return out

    emb = x
    for r in range(recurrence):
        for l in range(depth):
            if r != 0 and l == 0:
                continue
            emb = apply_layer(emb, l)
    o_ref[0] = emb


# ---------------------------------------------------------------------------
# Wrapper: one pallas_call over the whole stack, grid = batch ("parallel").
# ---------------------------------------------------------------------------
def transformer_conv_layer_forward(node, edge, A, params,
                                   *, out_dim, head, depth=3, recurrence=3):
    b, n, d0 = node.shape
    # adj_t[b, t, s] = (edge*A)[b, s, t]  (computed once, outside the kernel)
    adj_t = jnp.swapaxes(edge * A, 1, 2)

    fused = []            # per layer: [wq|wk|wv|ws] concat, then we
    layer_specs = []
    for l in range(depth):
        wq, wk, wv, we, ws = params[l]
        fused.append(jnp.concatenate([wq, wk, wv, ws], axis=1))
        fused.append(we)
        last = (l == depth - 1)
        heads = 2 if last else head[l]
        layer_specs.append((wq.shape[0], heads, out_dim[l], not last, not last))
    layer_specs = tuple(layer_specs)
    d_out = out_dim[-1]

    kernel = functools.partial(_fused_stack_kernel, layer_specs=layer_specs,
                               recurrence=recurrence, depth=depth)
    weight_specs = [pl.BlockSpec(w.shape, lambda i: (0, 0)) for w in fused]

    return pl.pallas_call(
        kernel,
        out_shape=jax.ShapeDtypeStruct((b, n, d_out), jnp.float32),
        grid=(b,),
        in_specs=[pl.BlockSpec((1, n, d0), lambda i: (i, 0, 0)),
                  pl.BlockSpec((1, n, n), lambda i: (i, 0, 0))] + weight_specs,
        out_specs=pl.BlockSpec((1, n, d_out), lambda i: (i, 0, 0)),
        compiler_params=pltpu.CompilerParams(
            dimension_semantics=("parallel",)),
    )(node, adj_t, *fused)


# ---------------------------------------------------------------------------
# Pure-JAX reference (same math) for a sanity check.
# ---------------------------------------------------------------------------
def _tconv_ref_single(x, adj, params, *, heads, out_c, concat, norm_relu):
    wq, wk, wv, we, ws = params
    q, k, v, skip = x @ wq, x @ wk, x @ wv, x @ ws
    mask = adj != 0.0
    scale = 1.0 / math.sqrt(out_c)
    outs = []
    for h in range(heads):
        sl = slice(h * out_c, (h + 1) * out_c)
        qh, kh, vh, weh = q[:, sl], k[:, sl], v[:, sl], we[:, sl]
        qk = kh @ qh.T
        qe = jnp.sum(qh * weh, axis=1)
        scores = (qk + adj * qe[None, :]) * scale
        neg = jnp.where(mask, scores, -1e30)
        m = jnp.max(neg, axis=0, keepdims=True)
        ex = jnp.where(mask, jnp.exp(neg - m), 0.0)
        denom = jnp.sum(ex, axis=0, keepdims=True)
        alpha = ex / jnp.where(denom == 0.0, 1.0, denom)
        out_h = alpha.T @ vh + jnp.sum(alpha * adj, axis=0)[:, None] * weh
        outs.append(out_h)
    out = (outs[0] if heads == 1 else jnp.concatenate(outs, -1)) if concat \
        else sum(outs) / float(heads)
    out = out + skip
    if norm_relu:
        mu = jnp.mean(out, -1, keepdims=True)
        var = jnp.mean((out - mu) ** 2, -1, keepdims=True)
        out = jnp.maximum((out - mu) * jax.lax.rsqrt(var + 1e-5), 0.0)
    return out


def reference_forward(node, edge, A, params, *, out_dim, head, depth=3, recurrence=3):
    adj = edge * A
    emb = node
    for r in range(recurrence):
        for l in range(depth):
            if r != 0 and l == 0:
                continue
            last = (l == depth - 1)
            f = functools.partial(_tconv_ref_single, params=params[l],
                                  heads=2 if last else head[l], out_c=out_dim[l],
                                  concat=not last, norm_relu=not last)
            emb = jax.vmap(f)(emb, adj)
    return emb


# ---------------------------------------------------------------------------
# Parameter construction (deterministic, in-script; bias=False everywhere).
# ---------------------------------------------------------------------------
def make_params(key, in_dim, out_dim, head, depth=3):
    params = []
    for l in range(depth):
        last = (l == depth - 1)
        heads = 2 if last else head[l]
        d_in = in_dim[l]
        hc = heads * out_dim[l]
        d_skip = hc if not last else out_dim[l]       # concat -> H*C, else C
        key, kq, kk, kv, ke, ks = jax.random.split(key, 6)

        def init(k, fan_in, fan_out):
            return (jax.random.normal(k, (fan_in, fan_out), jnp.float32)
                    / math.sqrt(max(fan_in, 1)))

        params.append((
            init(kq, d_in, hc),        # lin_query
            init(kk, d_in, hc),        # lin_key
            init(kv, d_in, hc),        # lin_value
            init(ke, 1, hc),           # lin_edge (edge_dim = in_dim[0] = 1)
            init(ks, d_in, d_skip),    # lin_skip (root weight)
        ))
    return params


if __name__ == "__main__":
    # module config: in_dim=[1,16,16], out_dim=[16,16,16], head=[1,1,2],
    # sk_channel=0, recurrence=3, depth=3, bias=False
    # TODO(synk): sk_channel>0 (Sinkhorn + classifier branch) not implemented;
    # default sk_channel=0 path only.
    in_dim, out_dim, head = [1, 16, 16], [16, 16, 16], [1, 1, 2]
    b, n = 2, 16

    key = jax.random.PRNGKey(0)
    k1, k2, k3, kp = jax.random.split(key, 4)
    node = jax.random.normal(k1, (b, n, 1), jnp.float32)               # b n 1
    edge = jax.random.normal(k2, (b, n, n), jnp.float32)               # b n n
    A = (jax.random.uniform(k3, (b, n, n)) > 0.3).astype(jnp.float32)  # b n n

    params = make_params(kp, in_dim, out_dim, head)

    out = transformer_conv_layer_forward(node, edge, A, params,
                                         out_dim=out_dim, head=head)
    out = jax.block_until_ready(out)

    ref = jax.block_until_ready(
        reference_forward(node, edge, A, params, out_dim=out_dim, head=head))

    assert out.shape == (b, n, out_dim[-1]), out.shape
    assert bool(jnp.all(jnp.isfinite(out)))
    err = float(jnp.max(jnp.abs(out - ref)))
    assert err < 3e-2, err

    print("KERNEL_OK")
</pallas_src>

<mosaic_0001>
module attributes {stable_mosaic.version = 11 : i64} {
  func.func @_fused_stack_kernel(%arg0: i32, %arg1: memref<1x16x1xf32, #tpu.memory_space<vmem>>, %arg2: memref<1x16x16xf32, #tpu.memory_space<vmem>>, %arg3: memref<1x64xf32, #tpu.memory_space<vmem>>, %arg4: memref<1x16xf32, #tpu.memory_space<vmem>>, %arg5: memref<16x64xf32, #tpu.memory_space<vmem>>, %arg6: memref<1x16xf32, #tpu.memory_space<vmem>>, %arg7: memref<16x112xf32, #tpu.memory_space<vmem>>, %arg8: memref<1x32xf32, #tpu.memory_space<vmem>>, %arg9: memref<1x16x16xf32, #tpu.memory_space<vmem>>) attributes {dimension_semantics = [#tpu.dimension_semantics<parallel>], iteration_bounds = array<i64: 2>, scalar_prefetch = 0 : i64, scratch_operands = 0 : i64, tpu.core_type = #tpu.core_type<tc>, window_params = [{transform_indices = @transform_0, window_bounds = array<i64: 1, 16, 1>}, {transform_indices = @transform_1, window_bounds = array<i64: 1, 16, 16>}, {pipeline_mode = #tpu.pipeline_mode<synchronous>, transform_indices = @transform_2, window_bounds = array<i64: 1, 64>}, {pipeline_mode = #tpu.pipeline_mode<synchronous>, transform_indices = @transform_3, window_bounds = array<i64: 1, 16>}, {pipeline_mode = #tpu.pipeline_mode<synchronous>, transform_indices = @transform_4, window_bounds = array<i64: 16, 64>}, {pipeline_mode = #tpu.pipeline_mode<synchronous>, transform_indices = @transform_5, window_bounds = array<i64: 1, 16>}, {pipeline_mode = #tpu.pipeline_mode<synchronous>, transform_indices = @transform_6, window_bounds = array<i64: 16, 112>}, {pipeline_mode = #tpu.pipeline_mode<synchronous>, transform_indices = @transform_7, window_bounds = array<i64: 1, 32>}, {transform_indices = @transform_8, window_bounds = array<i64: 1, 16, 16>}]} {
    %c0 = arith.constant 0 : index
    %c0_0 = arith.constant 0 : index
    %c0_1 = arith.constant 0 : index
    %0 = vector.load %arg1[%c0, %c0_0, %c0_1] : memref<1x16x1xf32, #tpu.memory_space<vmem>>, vector<1x16x1xf32>
    %1 = vector.shape_cast %0 : vector<1x16x1xf32> to vector<16x1xf32>
    %c0_2 = arith.constant 0 : index
    %c0_3 = arith.constant 0 : index
    %c0_4 = arith.constant 0 : index
    %2 = vector.load %arg2[%c0_2, %c0_3, %c0_4] : memref<1x16x16xf32, #tpu.memory_space<vmem>>, vector<1x16x16xf32>
    %3 = vector.shape_cast %2 : vector<1x16x16xf32> to vector<16x16xf32>
    %cst = arith.constant 0.000000e+00 : f32
    %4 = vector.broadcast %cst : f32 to vector<16x16xf32>
    %5 = arith.cmpf one, %3, %4 : vector<16x16xf32>
    %c0_5 = arith.constant 0 : index
    %c0_6 = arith.constant 0 : index
    %6 = vector.load %arg3[%c0_5, %c0_6] : memref<1x64xf32, #tpu.memory_space<vmem>>, vector<1x64xf32>
    %c0_7 = arith.constant 0 : index
    %c0_8 = arith.constant 0 : index
    %7 = vector.load %arg4[%c0_7, %c0_8] : memref<1x16xf32, #tpu.memory_space<vmem>>, vector<1x16xf32>
    %8 = vector.broadcast %1 : vector<16x1xf32> to vector<16x64xf32>
    %9 = vector.broadcast %6 : vector<1x64xf32> to vector<16x64xf32>
    %10 = arith.mulf %8, %9 : vector<16x64xf32>
    %11 = vector.extract_strided_slice %10 {offsets = [0, 0], sizes = [16, 16], strides = [1, 1]} : vector<16x64xf32> to vector<16x16xf32>
    %12 = vector.shape_cast %11 : vector<16x16xf32> to vector<1x16x16xf32>
    %13 = vector.extract_strided_slice %10 {offsets = [0, 16], sizes = [16, 16], strides = [1, 1]} : vector<16x64xf32> to vector<16x16xf32>
    %14 = vector.shape_cast %13 : vector<16x16xf32> to vector<1x16x16xf32>
    %15 = vector.extract_strided_slice %10 {offsets = [0, 32], sizes = [16, 16], strides = [1, 1]} : vector<16x64xf32> to vector<16x16xf32>
    %16 = vector.shape_cast %15 : vector<16x16xf32> to vector<1x16x16xf32>
    %17 = vector.extract_strided_slice %10 {offsets = [0, 48], sizes = [16, 16], strides = [1, 1]} : vector<16x64xf32> to vector<16x16xf32>
    %18 = vector.shape_cast %7 : vector<1x16xf32> to vector<1x1x16xf32>
    "tpu.trace_start"() <{level = 10 : i32, message = "htc,hsc->hts"}> : () -> ()
    %cst_9 = arith.constant dense<0.000000e+00> : vector<1x16x16xf32>
    %19 = tpu.matmul %12, %14, %cst_9 {dimension_numbers = #tpu.dot_dimension_numbers<[2], [2], [1], [1], [0, 0, 0, 1, 1, 1], [0], [0]>} : vector<1x16x16xf32>, vector<1x16x16xf32>, vector<1x16x16xf32> -> vector<1x16x16xf32>
    "tpu.trace_stop"() : () -> ()
    %20 = vector.broadcast %18 : vector<1x1x16xf32> to vector<1x16x16xf32>
    %21 = arith.mulf %12, %20 : vector<1x16x16xf32>
    %cst_10 = arith.constant dense<0.000000e+00> : vector<1x16xf32>
    %22 = vector.multi_reduction <add>, %21, %cst_10 [2] : vector<1x16x16xf32> to vector<1x16xf32>
    %23 = vector.shape_cast %22 : vector<1x16xf32> to vector<1x16x1xf32>
    %24 = vector.shape_cast %3 : vector<16x16xf32> to vector<1x16x16xf32>
    %25 = vector.broadcast %23 : vector<1x16x1xf32> to vector<1x16x16xf32>
    %26 = arith.mulf %24, %25 : vector<1x16x16xf32>
    %27 = arith.addf %19, %26 : vector<1x16x16xf32>
    %cst_11 = arith.constant 2.500000e-01 : f32
    %28 = vector.broadcast %cst_11 : f32 to vector<1x16x16xf32>
    %29 = arith.mulf %27, %28 : vector<1x16x16xf32>
    %30 = vector.shape_cast %5 : vector<16x16xi1> to vector<1x16x16xi1>
    %cst_12 = arith.constant -1.000000e+30 : f32
    %31 = vector.broadcast %cst_12 : f32 to vector<1x16x16xf32>
    %32 = arith.select %30, %29, %31 : vector<1x16x16xi1>, vector<1x16x16xf32>
    %cst_13 = arith.constant dense<0xFF800000> : vector<1x16xf32>
    %33 = vector.multi_reduction <maximumf>, %32, %cst_13 [2] : vector<1x16x16xf32> to vector<1x16xf32>
    %34 = vector.shape_cast %33 : vector<1x16xf32> to vector<1x16x1xf32>
    %35 = vector.shape_cast %5 : vector<16x16xi1> to vector<1x16x16xi1>
    %36 = vector.broadcast %34 : vector<1x16x1xf32> to vector<1x16x16xf32>
    %37 = arith.subf %32, %36 : vector<1x16x16xf32>
    %38 = math.exp %37 : vector<1x16x16xf32>
    %cst_14 = arith.constant 0.000000e+00 : f32
    %39 = vector.broadcast %cst_14 : f32 to vector<1x16x16xf32>
    %40 = arith.select %35, %38, %39 : vector<1x16x16xi1>, vector<1x16x16xf32>
    %cst_15 = arith.constant dense<0.000000e+00> : vector<1x16xf32>
    %41 = vector.multi_reduction <add>, %40, %cst_15 [2] : vector<1x16x16xf32> to vector<1x16xf32>
    %42 = vector.shape_cast %41 : vector<1x16xf32> to vector<1x16x1xf32>
    %cst_16 = arith.constant 0.000000e+00 : f32
    %43 = vector.broadcast %cst_16 : f32 to vector<1x16x1xf32>
    %44 = arith.cmpf oeq, %42, %43 : vector<1x16x1xf32>
    %cst_17 = arith.constant 1.000000e+00 : f32
    %45 = vector.broadcast %cst_17 : f32 to vector<1x16x1xf32>
    %46 = arith.select %44, %45, %42 : vector<1x16x1xi1>, vector<1x16x1xf32>
    %47 = tpu.reciprocal %46 {approx = true} : vector<1x16x1xf32> -> vector<1x16x1xf32>
    %48 = vector.broadcast %47 : vector<1x16x1xf32> to vector<1x16x16xf32>
    %49 = arith.mulf %40, %48 : vector<1x16x16xf32>
    "tpu.trace_start"() <{level = 10 : i32, message = "hts,hsc->htc"}> : () -> ()
    %cst_18 = arith.constant dense<0.000000e+00> : vector<1x16x16xf32>
    %50 = tpu.matmul %49, %16, %cst_18 {dimension_numbers = #tpu.dot_dimension_numbers<[2], [1], [1], [2], [0, 0, 0, 1, 1, 2], [0], [0]>} : vector<1x16x16xf32>, vector<1x16x16xf32>, vector<1x16x16xf32> -> vector<1x16x16xf32>
    "tpu.trace_stop"() : () -> ()
    %51 = vector.shape_cast %3 : vector<16x16xf32> to vector<1x16x16xf32>
    %52 = arith.mulf %49, %51 : vector<1x16x16xf32>
    %cst_19 = arith.constant dense<0.000000e+00> : vector<1x16xf32>
    %53 = vector.multi_reduction <add>, %52, %cst_19 [2] : vector<1x16x16xf32> to vector<1x16xf32>
    %54 = vector.shape_cast %53 : vector<1x16xf32> to vector<1x16x1xf32>
    %55 = vector.broadcast %54 : vector<1x16x1xf32> to vector<1x16x16xf32>
    %56 = vector.broadcast %18 : vector<1x1x16xf32> to vector<1x16x16xf32>
    %57 = arith.mulf %55, %56 : vector<1x16x16xf32>
    %58 = arith.addf %50, %57 : vector<1x16x16xf32>
    %59 = vector.shape_cast %58 : vector<1x16x16xf32> to vector<16x16xf32>
    %60 = arith.addf %59, %17 : vector<16x16xf32>
    %cst_20 = arith.constant dense<0.000000e+00> : vector<16xf32>
    %61 = vector.multi_reduction <add>, %60, %cst_20 [1] : vector<16x16xf32> to vector<16xf32>
    %62 = vector.shape_cast %61 : vector<16xf32> to vector<16x1xf32>
    %cst_21 = arith.constant 1.600000e+01 : f32
    %63 = vector.broadcast %cst_21 : f32 to vector<16x1xf32>
    %64 = arith.divf %62, %63 : vector<16x1xf32>
    %65 = vector.broadcast %64 : vector<16x1xf32> to vector<16x16xf32>
    %66 = arith.subf %60, %65 : vector<16x16xf32>
    %67 = arith.mulf %66, %66 : vector<16x16xf32>
    %cst_22 = arith.constant dense<0.000000e+00> : vector<16xf32>
    %68 = vector.multi_reduction <add>, %67, %cst_22 [1] : vector<16x16xf32> to vector<16xf32>
    %69 = vector.shape_cast %68 : vector<16xf32> to vector<16x1xf32>
    %cst_23 = arith.constant 1.600000e+01 : f32
    %70 = vector.broadcast %cst_23 : f32 to vector<16x1xf32>
    %71 = arith.divf %69, %70 : vector<16x1xf32>
    %72 = vector.broadcast %64 : vector<16x1xf32> to vector<16x16xf32>
    %73 = arith.subf %60, %72 : vector<16x16xf32>
    %cst_24 = arith.constant 9.99999974E-6 : f32
    %74 = vector.broadcast %cst_24 : f32 to vector<16x1xf32>
    %75 = arith.addf %71, %74 : vector<16x1xf32>
    %76 = math.rsqrt %75 : vector<16x1xf32>
    %77 = vector.broadcast %76 : vector<16x1xf32> to vector<16x16xf32>
    %78 = arith.mulf %73, %77 : vector<16x16xf32>
    %cst_25 = arith.constant 0.000000e+00 : f32
    %79 = vector.broadcast %cst_25 : f32 to vector<16x16xf32>
    %80 = arith.maximumf %78, %79 : vector<16x16xf32>
    %c0_26 = arith.constant 0 : index
    %c0_27 = arith.constant 0 : index
    %81 = vector.load %arg5[%c0_26, %c0_27] : memref<16x64xf32, #tpu.memory_space<vmem>>, vector<16x64xf32>
    %c0_28 = arith.constant 0 : index
    %c0_29 = arith.constant 0 : index
    %82 = vector.load %arg6[%c0_28, %c0_29] : memref<1x16xf32, #tpu.memory_space<vmem>>, vector<1x16xf32>
    %cst_30 = arith.constant dense<0.000000e+00> : vector<16x64xf32>
    %83 = tpu.matmul %80, %81, %cst_30 {dimension_numbers = #tpu.dot_dimension_numbers<[1], [0], [0], [1], [0, 0, 1, 1], [], []>} : vector<16x16xf32>, vector<16x64xf32>, vector<16x64xf32> -> vector<16x64xf32>
    %84 = vector.extract_strided_slice %83 {offsets = [0, 0], sizes = [16, 16], strides = [1, 1]} : vector<16x64xf32> to vector<16x16xf32>
    %85 = vector.shape_cast %84 : vector<16x16xf32> to vector<1x16x16xf32>
    %86 = vector.extract_strided_slice %83 {offsets = [0, 16], sizes = [16, 16], strides = [1, 1]} : vector<16x64xf32> to vector<16x16xf32>
    %87 = vector.shape_cast %86 : vector<16x16xf32> to vector<1x16x16xf32>
    %88 = vector.extract_strided_slice %83 {offsets = [0, 32], sizes = [16, 16], strides = [1, 1]} : vector<16x64xf32> to vector<16x16xf32>
    %89 = vector.shape_cast %88 : vector<16x16xf32> to vector<1x16x16xf32>
    %90 = vector.extract_strided_slice %83 {offsets = [0, 48], sizes = [16, 16], strides = [1, 1]} : vector<16x64xf32> to vector<16x16xf32>
    %91 = vector.shape_cast %82 : vector<1x16xf32> to vector<1x1x16xf32>
    "tpu.trace_start"() <{level = 10 : i32, message = "htc,hsc->hts"}> : () -> ()
    %cst_31 = arith.constant dense<0.000000e+00> : vector<1x16x16xf32>
    %92 = tpu.matmul %85, %87, %cst_31 {dimension_numbers = #tpu.dot_dimension_numbers<[2], [2], [1], [1], [0, 0, 0, 1, 1, 1], [0], [0]>} : vector<1x16x16xf32>, vector<1x16x16xf32>, vector<1x16x16xf32> -> vector<1x16x16xf32>
    "tpu.trace_stop"() : () -> ()
    %93 = vector.broadcast %91 : vector<1x1x16xf32> to vector<1x16x16xf32>
    %94 = arith.mulf %85, %93 : vector<1x16x16xf32>
    %cst_32 = arith.constant dense<0.000000e+00> : vector<1x16xf32>
    %95 = vector.multi_reduction <add>, %94, %cst_32 [2] : vector<1x16x16xf32> to vector<1x16xf32>
    %96 = vector.shape_cast %95 : vector<1x16xf32> to vector<1x16x1xf32>
    %97 = vector.shape_cast %3 : vector<16x16xf32> to vector<1x16x16xf32>
    %98 = vector.broadcast %96 : vector<1x16x1xf32> to vector<1x16x16xf32>
    %99 = arith.mulf %97, %98 : vector<1x16x16xf32>
    %100 = arith.addf %92, %99 : vector<1x16x16xf32>
    %cst_33 = arith.constant 2.500000e-01 : f32
    %101 = vector.broadcast %cst_33 : f32 to vector<1x16x16xf32>
    %102 = arith.mulf %100, %101 : vector<1x16x16xf32>
    %103 = vector.shape_cast %5 : vector<16x16xi1> to vector<1x16x16xi1>
    %cst_34 = arith.constant -1.000000e+30 : f32
    %104 = vector.broadcast %cst_34 : f32 to vector<1x16x16xf32>
    %105 = arith.select %103, %102, %104 : vector<1x16x16xi1>, vector<1x16x16xf32>
    %cst_35 = arith.constant dense<0xFF800000> : vector<1x16xf32>
    %106 = vector.multi_reduction <maximumf>, %105, %cst_35 [2] : vector<1x16x16xf32> to vector<1x16xf32>
    %107 = vector.shape_cast %106 : vector<1x16xf32> to vector<1x16x1xf32>
    %108 = vector.shape_cast %5 : vector<16x16xi1> to vector<1x16x16xi1>
    %109 = vector.broadcast %107 : vector<1x16x1xf32> to vector<1x16x16xf32>
    %110 = arith.subf %105, %109 : vector<1x16x16xf32>
    %111 = math.exp %110 : vector<1x16x16xf32>
    %cst_36 = arith.constant 0.000000e+00 : f32
    %112 = vector.broadcast %cst_36 : f32 to vector<1x16x16xf32>
    %113 = arith.select %108, %111, %112 : vector<1x16x16xi1>, vector<1x16x16xf32>
    %cst_37 = arith.constant dense<0.000000e+00> : vector<1x16xf32>
    %114 = vector.multi_reduction <add>, %113, %cst_37 [2] : vector<1x16x16xf32> to vector<1x16xf32>
    %115 = vector.shape_cast %114 : vector<1x16xf32> to vector<1x16x1xf32>
    %cst_38 = arith.constant 0.000000e+00 : f32
    %116 = vector.broadcast %cst_38 : f32 to vector<1x16x1xf32>
    %117 = arith.cmpf oeq, %115, %116 : vector<1x16x1xf32>
    %cst_39 = arith.constant 1.000000e+00 : f32
    %118 = vector.broadcast %cst_39 : f32 to vector<1x16x1xf32>
    %119 = arith.select %117, %118, %115 : vector<1x16x1xi1>, vector<1x16x1xf32>
    %120 = tpu.reciprocal %119 {approx = true} : vector<1x16x1xf32> -> vector<1x16x1xf32>
    %121 = vector.broadcast %120 : vector<1x16x1xf32> to vector<1x16x16xf32>
    %122 = arith.mulf %113, %121 : vector<1x16x16xf32>
    "tpu.trace_start"() <{level = 10 : i32, message = "hts,hsc->htc"}> : () -> ()
    %cst_40 = arith.constant dense<0.000000e+00> : vector<1x16x16xf32>
    %123 = tpu.matmul %122, %89, %cst_40 {dimension_numbers = #tpu.dot_dimension_numbers<[2], [1], [1], [2], [0, 0, 0, 1, 1, 2], [0], [0]>} : vector<1x16x16xf32>, vector<1x16x16xf32>, vector<1x16x16xf32> -> vector<1x16x16xf32>
    "tpu.trace_stop"() : () -> ()
    %124 = vector.shape_cast %3 : vector<16x16xf32> to vector<1x16x16xf32>
    %125 = arith.mulf %122, %124 : vector<1x16x16xf32>
    %cst_41 = arith.constant dense<0.000000e+00> : vector<1x16xf32>
    %126 = vector.multi_reduction <add>, %125, %cst_41 [2] : vector<1x16x16xf32> to vector<1x16xf32>
    %127 = vector.shape_cast %126 : vector<1x16xf32> to vector<1x16x1xf32>
    %128 = vector.broadcast %127 : vector<1x16x1xf32> to vector<1x16x16xf32>
    %129 = vector.broadcast %91 : vector<1x1x16xf32> to vector<1x16x16xf32>
    %130 = arith.mulf %128, %129 : vector<1x16x16xf32>
    %131 = arith.addf %123, %130 : vector<1x16x16xf32>
    %132 = vector.shape_cast %131 : vector<1x16x16xf32> to vector<16x16xf32>
    %133 = arith.addf %132, %90 : vector<16x16xf32>
    %cst_42 = arith.constant dense<0.000000e+00> : vector<16xf32>
    %134 = vector.multi_reduction <add>, %133, %cst_42 [1] : vector<16x16xf32> to vector<16xf32>
    %135 = vector.shape_cast %134 : vector<16xf32> to vector<16x1xf32>
    %cst_43 = arith.constant 1.600000e+01 : f32
    %136 = vector.broadcast %cst_43 : f32 to vector<16x1xf32>
    %137 = arith.divf %135, %136 : vector<16x1xf32>
    %138 = vector.broadcast %137 : vector<16x1xf32> to vector<16x16xf32>
    %139 = arith.subf %133, %138 : vector<16x16xf32>
    %140 = arith.mulf %139, %139 : vector<16x16xf32>
    %cst_44 = arith.constant dense<0.000000e+00> : vector<16xf32>
    %141 = vector.multi_reduction <add>, %140, %cst_44 [1] : vector<16x16xf32> to vector<16xf32>
    %142 = vector.shape_cast %141 : vector<16xf32> to vector<16x1xf32>
    %cst_45 = arith.constant 1.600000e+01 : f32
    %143 = vector.broadcast %cst_45 : f32 to vector<16x1xf32>
    %144 = arith.divf %142, %143 : vector<16x1xf32>
    %145 = vector.broadcast %137 : vector<16x1xf32> to vector<16x16xf32>
    %146 = arith.subf %133, %145 : vector<16x16xf32>
    %cst_46 = arith.constant 9.99999974E-6 : f32
    %147 = vector.broadcast %cst_46 : f32 to vector<16x1xf32>
    %148 = arith.addf %144, %147 : vector<16x1xf32>
    %149 = math.rsqrt %148 : vector<16x1xf32>
    %150 = vector.broadcast %149 : vector<16x1xf32> to vector<16x16xf32>
    %151 = arith.mulf %146, %150 : vector<16x16xf32>
    %cst_47 = arith.constant 0.000000e+00 : f32
    %152 = vector.broadcast %cst_47 : f32 to vector<16x16xf32>
    %153 = arith.maximumf %151, %152 : vector<16x16xf32>
    %c0_48 = arith.constant 0 : index
    %c0_49 = arith.constant 0 : index
    %154 = vector.load %arg7[%c0_48, %c0_49] : memref<16x112xf32, #tpu.memory_space<vmem>>, vector<16x112xf32>
    %c0_50 = arith.constant 0 : index
    %c0_51 = arith.constant 0 : index
    %155 = vector.load %arg8[%c0_50, %c0_51] : memref<1x32xf32, #tpu.memory_space<vmem>>, vector<1x32xf32>
    %cst_52 = arith.constant dense<0.000000e+00> : vector<16x112xf32>
    %156 = tpu.matmul %153, %154, %cst_52 {dimension_numbers = #tpu.dot_dimension_numbers<[1], [0], [0], [1], [0, 0, 1, 1], [], []>} : vector<16x16xf32>, vector<16x112xf32>, vector<16x112xf32> -> vector<16x112xf32>
    %157 = vector.extract_strided_slice %156 {offsets = [0, 0], sizes = [16, 32], strides = [1, 1]} : vector<16x112xf32> to vector<16x32xf32>
    %158 = vector.extract_strided_slice %157 {offsets = [0, 0], sizes = [16, 16], strides = [1, 1]} : vector<16x32xf32> to vector<16x16xf32>
    %159 = vector.extract_strided_slice %157 {offsets = [0, 16], sizes = [16, 16], strides = [1, 1]} : vector<16x32xf32> to vector<16x16xf32>
    %160 = vector.shape_cast %158 : vector<16x16xf32> to vector<1x16x16xf32>
    %161 = vector.shape_cast %159 : vector<16x16xf32> to vector<1x16x16xf32>
    %162 = tpu.concatenate %160, %161 in 0 : vector<1x16x16xf32>, vector<1x16x16xf32> -> vector<2x16x16xf32>
    %163 = vector.extract_strided_slice %156 {offsets = [0, 32], sizes = [16, 32], strides = [1, 1]} : vector<16x112xf32> to vector<16x32xf32>
    %164 = vector.extract_strided_slice %163 {offsets = [0, 0], sizes = [16, 16], strides = [1, 1]} : vector<16x32xf32> to vector<16x16xf32>
    %165 = vector.extract_strided_slice %163 {offsets = [0, 16], sizes = [16, 16], strides = [1, 1]} : vector<16x32xf32> to vector<16x16xf32>
    %166 = vector.shape_cast %164 : vector<16x16xf32> to vector<1x16x16xf32>
    %167 = vector.shape_cast %165 : vector<16x16xf32> to vector<1x16x16xf32>
    %168 = tpu.concatenate %166, %167 in 0 : vector<1x16x16xf32>, vector<1x16x16xf32> -> vector<2x16x16xf32>
    %169 = vector.extract_strided_slice %156 {offsets = [0, 64], sizes = [16, 32], strides = [1, 1]} : vector<16x112xf32> to vector<16x32xf32>
    %170 = vector.extract_strided_slice %169 {offsets = [0, 0], sizes = [16, 16], strides = [1, 1]} : vector<16x32xf32> to vector<16x16xf32>
    %171 = vector.extract_strided_slice %169 {offsets = [0, 16], sizes = [16, 16], strides = [1, 1]} : vector<16x32xf32> to vector<16x16xf32>
    %172 = vector.shape_cast %170 : vector<16x16xf32> to vector<1x16x16xf32>
    %173 = vector.shape_cast %171 : vector<16x16xf32> to vector<1x16x16xf32>
    %174 = tpu.concatenate %172, %173 in 0 : vector<1x16x16xf32>, vector<1x16x16xf32> -> vector<2x16x16xf32>
    %175 = vector.extract_strided_slice %156 {offsets = [0, 96], sizes = [16, 16], strides = [1, 1]} : vector<16x112xf32> to vector<16x16xf32>
    %176 = vector.extract_strided_slice %155 {offsets = [0, 0], sizes = [1, 16], strides = [1, 1]} : vector<1x32xf32> to vector<1x16xf32>
    %177 = vector.extract_strided_slice %155 {offsets = [0, 16], sizes = [1, 16], strides = [1, 1]} : vector<1x32xf32> to vector<1x16xf32>
    %178 = vector.shape_cast %176 : vector<1x16xf32> to vector<1x1x16xf32>
    %179 = vector.shape_cast %177 : vector<1x16xf32> to vector<1x1x16xf32>
    %180 = tpu.concatenate %178, %179 in 0 : vector<1x1x16xf32>, vector<1x1x16xf32> -> vector<2x1x16xf32>
    "tpu.trace_start"() <{level = 10 : i32, message = "htc,hsc->hts"}> : () -> ()
    %cst_53 = arith.constant dense<0.000000e+00> : vector<2x16x16xf32>
    %181 = tpu.matmul %162, %168, %cst_53 {dimension_numbers = #tpu.dot_dimension_numbers<[2], [2], [1], [1], [0, 0, 0, 1, 1, 1], [0], [0]>} : vector<2x16x16xf32>, vector<2x16x16xf32>, vector<2x16x16xf32> -> vector<2x16x16xf32>
    "tpu.trace_stop"() : () -> ()
    %182 = vector.broadcast %180 : vector<2x1x16xf32> to vector<2x16x16xf32>
    %183 = arith.mulf %162, %182 : vector<2x16x16xf32>
    %cst_54 = arith.constant dense<0.000000e+00> : vector<2x16xf32>
    %184 = vector.multi_reduction <add>, %183, %cst_54 [2] : vector<2x16x16xf32> to vector<2x16xf32>
    %185 = vector.shape_cast %184 : vector<2x16xf32> to vector<2x16x1xf32>
    %186 = vector.shape_cast %3 : vector<16x16xf32> to vector<1x16x16xf32>
    %187 = vector.broadcast %186 : vector<1x16x16xf32> to vector<2x16x16xf32>
    %188 = vector.broadcast %185 : vector<2x16x1xf32> to vector<2x16x16xf32>
    %189 = arith.mulf %187, %188 : vector<2x16x16xf32>
    %190 = arith.addf %181, %189 : vector<2x16x16xf32>
    %cst_55 = arith.constant 2.500000e-01 : f32
    %191 = vector.broadcast %cst_55 : f32 to vector<2x16x16xf32>
    %192 = arith.mulf %190, %191 : vector<2x16x16xf32>
    %193 = vector.shape_cast %5 : vector<16x16xi1> to vector<1x16x16xi1>
    %cst_56 = arith.constant -1.000000e+30 : f32
    %194 = vector.shape_cast %193 : vector<1x16x16xi1> to vector<1x16x16xi1>
    %195 = vector.broadcast %194 : vector<1x16x16xi1> to vector<2x16x16xi1>
    %196 = vector.broadcast %cst_56 : f32 to vector<2x16x16xf32>
    %197 = arith.select %195, %192, %196 : vector<2x16x16xi1>, vector<2x16x16xf32>
    %cst_57 = arith.constant dense<0xFF800000> : vector<2x16xf32>
    %198 = vector.multi_reduction <maximumf>, %197, %cst_57 [2] : vector<2x16x16xf32> to vector<2x16xf32>
    %199 = vector.shape_cast %198 : vector<2x16xf32> to vector<2x16x1xf32>
    %200 = vector.shape_cast %5 : vector<16x16xi1> to vector<1x16x16xi1>
    %201 = vector.broadcast %199 : vector<2x16x1xf32> to vector<2x16x16xf32>
    %202 = arith.subf %197, %201 : vector<2x16x16xf32>
    %203 = math.exp %202 : vector<2x16x16xf32>
    %cst_58 = arith.constant 0.000000e+00 : f32
    %204 = vector.shape_cast %200 : vector<1x16x16xi1> to vector<1x16x16xi1>
    %205 = vector.broadcast %204 : vector<1x16x16xi1> to vector<2x16x16xi1>
    %206 = vector.broadcast %cst_58 : f32 to vector<2x16x16xf32>
    %207 = arith.select %205, %203, %206 : vector<2x16x16xi1>, vector<2x16x16xf32>
    %cst_59 = arith.constant dense<0.000000e+00> : vector<2x16xf32>
    %208 = vector.multi_reduction <add>, %207, %cst_59 [2] : vector<2x16x16xf32> to vector<2x16xf32>
    %209 = vector.shape_cast %208 : vector<2x16xf32> to vector<2x16x1xf32>
    %cst_60 = arith.constant 0.000000e+00 : f32
    %210 = vector.broadcast %cst_60 : f32 to vector<2x16x1xf32>
    %211 = arith.cmpf oeq, %209, %210 : vector<2x16x1xf32>
    %cst_61 = arith.constant 1.000000e+00 : f32
    %212 = vector.broadcast %cst_61 : f32 to vector<2x16x1xf32>
    %213 = arith.select %211, %212, %209 : vector<2x16x1xi1>, vector<2x16x1xf32>
    %214 = tpu.reciprocal %213 {approx = true} : vector<2x16x1xf32> -> vector<2x16x1xf32>
    %215 = vector.broadcast %214 : vector<2x16x1xf32> to vector<2x16x16xf32>
    %216 = arith.mulf %207, %215 : vector<2x16x16xf32>
    "tpu.trace_start"() <{level = 10 : i32, message = "hts,hsc->htc"}> : () -> ()
    %cst_62 = arith.constant dense<0.000000e+00> : vector<2x16x16xf32>
    %217 = tpu.matmul %216, %174, %cst_62 {dimension_numbers = #tpu.dot_dimension_numbers<[2], [1], [1], [2], [0, 0, 0, 1, 1, 2], [0], [0]>} : vector<2x16x16xf32>, vector<2x16x16xf32>, vector<2x16x16xf32> -> vector<2x16x16xf32>
    "tpu.trace_stop"() : () -> ()
    %218 = vector.shape_cast %3 : vector<16x16xf32> to vector<1x16x16xf32>
    %219 = vector.broadcast %218 : vector<1x16x16xf32> to vector<2x16x16xf32>
    %220 = arith.mulf %216, %219 : vector<2x16x16xf32>
    %cst_63 = arith.constant dense<0.000000e+00> : vector<2x16xf32>
    %221 = vector.multi_reduction <add>, %220, %cst_63 [2] : vector<2x16x16xf32> to vector<2x16xf32>
    %222 = vector.shape_cast %221 : vector<2x16xf32> to vector<2x16x1xf32>
    %223 = vector.broadcast %222 : vector<2x16x1xf32> to vector<2x16x16xf32>
    %224 = vector.broadcast %180 : vector<2x1x16xf32> to vector<2x16x16xf32>
    %225 = arith.mulf %223, %224 : vector<2x16x16xf32>
    %226 = arith.addf %217, %225 : vector<2x16x16xf32>
    %cst_64 = arith.constant dense<0.000000e+00> : vector<16x16xf32>
    %227 = vector.multi_reduction <add>, %226, %cst_64 [0] : vector<2x16x16xf32> to vector<16x16xf32>
    %cst_65 = arith.constant 2.000000e+00 : f32
    %228 = vector.broadcast %cst_65 : f32 to vector<16x16xf32>
    %229 = arith.divf %227, %228 : vector<16x16xf32>
    %230 = arith.addf %229, %175 : vector<16x16xf32>
    %c0_66 = arith.constant 0 : index
    %c0_67 = arith.constant 0 : index
    %231 = vector.load %arg5[%c0_66, %c0_67] : memref<16x64xf32, #tpu.memory_space<vmem>>, vector<16x64xf32>
    %c0_68 = arith.constant 0 : index
    %c0_69 = arith.constant 0 : index
    %232 = vector.load %arg6[%c0_68, %c0_69] : memref<1x16xf32, #tpu.memory_space<vmem>>, vector<1x16xf32>
    %cst_70 = arith.constant dense<0.000000e+00> : vector<16x64xf32>
    %233 = tpu.matmul %230, %231, %cst_70 {dimension_numbers = #tpu.dot_dimension_numbers<[1], [0], [0], [1], [0, 0, 1, 1], [], []>} : vector<16x16xf32>, vector<16x64xf32>, vector<16x64xf32> -> vector<16x64xf32>
    %234 = vector.extract_strided_slice %233 {offsets = [0, 0], sizes = [16, 16], strides = [1, 1]} : vector<16x64xf32> to vector<16x16xf32>
    %235 = vector.shape_cast %234 : vector<16x16xf32> to vector<1x16x16xf32>
    %236 = vector.extract_strided_slice %233 {offsets = [0, 16], sizes = [16, 16], strides = [1, 1]} : vector<16x64xf32> to vector<16x16xf32>
    %237 = vector.shape_cast %236 : vector<16x16xf32> to vector<1x16x16xf32>
    %238 = vector.extract_strided_slice %233 {offsets = [0, 32], sizes = [16, 16], strides = [1, 1]} : vector<16x64xf32> to vector<16x16xf32>
    %239 = vector.shape_cast %238 : vector<16x16xf32> to vector<1x16x16xf32>
    %240 = vector.extract_strided_slice %233 {offsets = [0, 48], sizes = [16, 16], strides = [1, 1]} : vector<16x64xf32> to vector<16x16xf32>
    %241 = vector.shape_cast %232 : vector<1x16xf32> to vector<1x1x16xf32>
    "tpu.trace_start"() <{level = 10 : i32, message = "htc,hsc->hts"}> : () -> ()
    %cst_71 = arith.constant dense<0.000000e+00> : vector<1x16x16xf32>
    %242 = tpu.matmul %235, %237, %cst_71 {dimension_numbers = #tpu.dot_dimension_numbers<[2], [2], [1], [1], [0, 0, 0, 1, 1, 1], [0], [0]>} : vector<1x16x16xf32>, vector<1x16x16xf32>, vector<1x16x16xf32> -> vector<1x16x16xf32>
    "tpu.trace_stop"() : () -> ()
    %243 = vector.broadcast %241 : vector<1x1x16xf32> to vector<1x16x16xf32>
    %244 = arith.mulf %235, %243 : vector<1x16x16xf32>
    %cst_72 = arith.constant dense<0.000000e+00> : vector<1x16xf32>
    %245 = vector.multi_reduction <add>, %244, %cst_72 [2] : vector<1x16x16xf32> to vector<1x16xf32>
    %246 = vector.shape_cast %245 : vector<1x16xf32> to vector<1x16x1xf32>
    %247 = vector.shape_cast %3 : vector<16x16xf32> to vector<1x16x16xf32>
    %248 = vector.broadcast %246 : vector<1x16x1xf32> to vector<1x16x16xf32>
    %249 = arith.mulf %247, %248 : vector<1x16x16xf32>
    %250 = arith.addf %242, %249 : vector<1x16x16xf32>
    %cst_73 = arith.constant 2.500000e-01 : f32
    %251 = vector.broadcast %cst_73 : f32 to vector<1x16x16xf32>
    %252 = arith.mulf %250, %251 : vector<1x16x16xf32>
    %253 = vector.shape_cast %5 : vector<16x16xi1> to vector<1x16x16xi1>
    %cst_74 = arith.constant -1.000000e+30 : f32
    %254 = vector.broadcast %cst_74 : f32 to vector<1x16x16xf32>
    %255 = arith.select %253, %252, %254 : vector<1x16x16xi1>, vector<1x16x16xf32>
    %cst_75 = arith.constant dense<0xFF800000> : vector<1x16xf32>
    %256 = vector.multi_reduction <maximumf>, %255, %cst_75 [2] : vector<1x16x16xf32> to vector<1x16xf32>
    %257 = vector.shape_cast %256 : vector<1x16xf32> to vector<1x16x1xf32>
    %258 = vector.shape_cast %5 : vector<16x16xi1> to vector<1x16x16xi1>
    %259 = vector.broadcast %257 : vector<1x16x1xf32> to vector<1x16x16xf32>
    %260 = arith.subf %255, %259 : vector<1x16x16xf32>
    %261 = math.exp %260 : vector<1x16x16xf32>
    %cst_76 = arith.constant 0.000000e+00 : f32
    %262 = vector.broadcast %cst_76 : f32 to vector<1x16x16xf32>
    %263 = arith.select %258, %261, %262 : vector<1x16x16xi1>, vector<1x16x16xf32>
    %cst_77 = arith.constant dense<0.000000e+00> : vector<1x16xf32>
    %264 = vector.multi_reduction <add>, %263, %cst_77 [2] : vector<1x16x16xf32> to vector<1x16xf32>
    %265 = vector.shape_cast %264 : vector<1x16xf32> to vector<1x16x1xf32>
    %cst_78 = arith.constant 0.000000e+00 : f32
    %266 = vector.broadcast %cst_78 : f32 to vector<1x16x1xf32>
    %267 = arith.cmpf oeq, %265, %266 : vector<1x16x1xf32>
    %cst_79 = arith.constant 1.000000e+00 : f32
    %268 = vector.broadcast %cst_79 : f32 to vector<1x16x1xf32>
    %269 = arith.select %267, %268, %265 : vector<1x16x1xi1>, vector<1x16x1xf32>
    %270 = tpu.reciprocal %269 {approx = true} : vector<1x16x1xf32> -> vector<1x16x1xf32>
    %271 = vector.broadcast %270 : vector<1x16x1xf32> to vector<1x16x16xf32>
    %272 = arith.mulf %263, %271 : vector<1x16x16xf32>
    "tpu.trace_start"() <{level = 10 : i32, message = "hts,hsc->htc"}> : () -> ()
    %cst_80 = arith.constant dense<0.000000e+00> : vector<1x16x16xf32>
    %273 = tpu.matmul %272, %239, %cst_80 {dimension_numbers = #tpu.dot_dimension_numbers<[2], [1], [1], [2], [0, 0, 0, 1, 1, 2], [0], [0]>} : vector<1x16x16xf32>, vector<1x16x16xf32>, vector<1x16x16xf32> -> vector<1x16x16xf32>
    "tpu.trace_stop"() : () -> ()
    %274 = vector.shape_cast %3 : vector<16x16xf32> to vector<1x16x16xf32>
    %275 = arith.mulf %272, %274 : vector<1x16x16xf32>
    %cst_81 = arith.constant dense<0.000000e+00> : vector<1x16xf32>
    %276 = vector.multi_reduction <add>, %275, %cst_81 [2] : vector<1x16x16xf32> to vector<1x16xf32>
    %277 = vector.shape_cast %276 : vector<1x16xf32> to vector<1x16x1xf32>
    %278 = vector.broadcast %277 : vector<1x16x1xf32> to vector<1x16x16xf32>
    %279 = vector.broadcast %241 : vector<1x1x16xf32> to vector<1x16x16xf32>
    %280 = arith.mulf %278, %279 : vector<1x16x16xf32>
    %281 = arith.addf %273, %280 : vector<1x16x16xf32>
    %282 = vector.shape_cast %281 : vector<1x16x16xf32> to vector<16x16xf32>
    %283 = arith.addf %282, %240 : vector<16x16xf32>
    %cst_82 = arith.constant dense<0.000000e+00> : vector<16xf32>
    %284 = vector.multi_reduction <add>, %283, %cst_82 [1] : vector<16x16xf32> to vector<16xf32>
    %285 = vector.shape_cast %284 : vector<16xf32> to vector<16x1xf32>
    %cst_83 = arith.constant 1.600000e+01 : f32
    %286 = vector.broadcast %cst_83 : f32 to vector<16x1xf32>
    %287 = arith.divf %285, %286 : vector<16x1xf32>
    %288 = vector.broadcast %287 : vector<16x1xf32> to vector<16x16xf32>
    %289 = arith.subf %283, %288 : vector<16x16xf32>
    %290 = arith.mulf %289, %289 : vector<16x16xf32>
    %cst_84 = arith.constant dense<0.000000e+00> : vector<16xf32>
    %291 = vector.multi_reduction <add>, %290, %cst_84 [1] : vector<16x16xf32> to vector<16xf32>
    %292 = vector.shape_cast %291 : vector<16xf32> to vector<16x1xf32>
    %cst_85 = arith.constant 1.600000e+01 : f32
    %293 = vector.broadcast %cst_85 : f32 to vector<16x1xf32>
    %294 = arith.divf %292, %293 : vector<16x1xf32>
    %295 = vector.broadcast %287 : vector<16x1xf32> to vector<16x16xf32>
    %296 = arith.subf %283, %295 : vector<16x16xf32>
    %cst_86 = arith.constant 9.99999974E-6 : f32
    %297 = vector.broadcast %cst_86 : f32 to vector<16x1xf32>
    %298 = arith.addf %294, %297 : vector<16x1xf32>
    %299 = math.rsqrt %298 : vector<16x1xf32>
    %300 = vector.broadcast %299 : vector<16x1xf32> to vector<16x16xf32>
    %301 = arith.mulf %296, %300 : vector<16x16xf32>
    %cst_87 = arith.constant 0.000000e+00 : f32
    %302 = vector.broadcast %cst_87 : f32 to vector<16x16xf32>
    %303 = arith.maximumf %301, %302 : vector<16x16xf32>
    %c0_88 = arith.constant 0 : index
    %c0_89 = arith.constant 0 : index
    %304 = vector.load %arg7[%c0_88, %c0_89] : memref<16x112xf32, #tpu.memory_space<vmem>>, vector<16x112xf32>
    %c0_90 = arith.constant 0 : index
    %c0_91 = arith.constant 0 : index
    %305 = vector.load %arg8[%c0_90, %c0_91] : memref<1x32xf32, #tpu.memory_space<vmem>>, vector<1x32xf32>
    %cst_92 = arith.constant dense<0.000000e+00> : vector<16x112xf32>
    %306 = tpu.matmul %303, %304, %cst_92 {dimension_numbers = #tpu.dot_dimension_numbers<[1], [0], [0], [1], [0, 0, 1, 1], [], []>} : vector<16x16xf32>, vector<16x112xf32>, vector<16x112xf32> -> vector<16x112xf32>
    %307 = vector.extract_strided_slice %306 {offsets = [0, 0], sizes = [16, 32], strides = [1, 1]} : vector<16x112xf32> to vector<16x32xf32>
    %308 = vector.extract_strided_slice %307 {offsets = [0, 0], sizes = [16, 16], strides = [1, 1]} : vector<16x32xf32> to vector<16x16xf32>
    %309 = vector.extract_strided_slice %307 {offsets = [0, 16], sizes = [16, 16], strides = [1, 1]} : vector<16x32xf32> to vector<16x16xf32>
    %310 = vector.shape_cast %308 : vector<16x16xf32> to vector<1x16x16xf32>
    %311 = vector.shape_cast %309 : vector<16x16xf32> to vector<1x16x16xf32>
    %312 = tpu.concatenate %310, %311 in 0 : vector<1x16x16xf32>, vector<1x16x16xf32> -> vector<2x16x16xf32>
    %313 = vector.extract_strided_slice %306 {offsets = [0, 32], sizes = [16, 32], strides = [1, 1]} : vector<16x112xf32> to vector<16x32xf32>
    %314 = vector.extract_strided_slice %313 {offsets = [0, 0], sizes = [16, 16], strides = [1, 1]} : vector<16x32xf32> to vector<16x16xf32>
    %315 = vector.extract_strided_slice %313 {offsets = [0, 16], sizes = [16, 16], strides = [1, 1]} : vector<16x32xf32> to vector<16x16xf32>
    %316 = vector.shape_cast %314 : vector<16x16xf32> to vector<1x16x16xf32>
    %317 = vector.shape_cast %315 : vector<16x16xf32> to vector<1x16x16xf32>
    %318 = tpu.concatenate %316, %317 in 0 : vector<1x16x16xf32>, vector<1x16x16xf32> -> vector<2x16x16xf32>
    %319 = vector.extract_strided_slice %306 {offsets = [0, 64], sizes = [16, 32], strides = [1, 1]} : vector<16x112xf32> to vector<16x32xf32>
    %320 = vector.extract_strided_slice %319 {offsets = [0, 0], sizes = [16, 16], strides = [1, 1]} : vector<16x32xf32> to vector<16x16xf32>
    %321 = vector.extract_strided_slice %319 {offsets = [0, 16], sizes = [16, 16], strides = [1, 1]} : vector<16x32xf32> to vector<16x16xf32>
    %322 = vector.shape_cast %320 : vector<16x16xf32> to vector<1x16x16xf32>
    %323 = vector.shape_cast %321 : vector<16x16xf32> to vector<1x16x16xf32>
    %324 = tpu.concatenate %322, %323 in 0 : vector<1x16x16xf32>, vector<1x16x16xf32> -> vector<2x16x16xf32>
    %325 = vector.extract_strided_slice %306 {offsets = [0, 96], sizes = [16, 16], strides = [1, 1]} : vector<16x112xf32> to vector<16x16xf32>
    %326 = vector.extract_strided_slice %305 {offsets = [0, 0], sizes = [1, 16], strides = [1, 1]} : vector<1x32xf32> to vector<1x16xf32>
    %327 = vector.extract_strided_slice %305 {offsets = [0, 16], sizes = [1, 16], strides = [1, 1]} : vector<1x32xf32> to vector<1x16xf32>
    %328 = vector.shape_cast %326 : vector<1x16xf32> to vector<1x1x16xf32>
    %329 = vector.shape_cast %327 : vector<1x16xf32> to vector<1x1x16xf32>
    %330 = tpu.concatenate %328, %329 in 0 : vector<1x1x16xf32>, vector<1x1x16xf32> -> vector<2x1x16xf32>
    "tpu.trace_start"() <{level = 10 : i32, message = "htc,hsc->hts"}> : () -> ()
    %cst_93 = arith.constant dense<0.000000e+00> : vector<2x16x16xf32>
    %331 = tpu.matmul %312, %318, %cst_93 {dimension_numbers = #tpu.dot_dimension_numbers<[2], [2], [1], [1], [0, 0, 0, 1, 1, 1], [0], [0]>} : vector<2x16x16xf32>, vector<2x16x16xf32>, vector<2x16x16xf32> -> vector<2x16x16xf32>
    "tpu.trace_stop"() : () -> ()
    %332 = vector.broadcast %330 : vector<2x1x16xf32> to vector<2x16x16xf32>
    %333 = arith.mulf %312, %332 : vector<2x16x16xf32>
    %cst_94 = arith.constant dense<0.000000e+00> : vector<2x16xf32>
    %334 = vector.multi_reduction <add>, %333, %cst_94 [2] : vector<2x16x16xf32> to vector<2x16xf32>
    %335 = vector.shape_cast %334 : vector<2x16xf32> to vector<2x16x1xf32>
    %336 = vector.shape_cast %3 : vector<16x16xf32> to vector<1x16x16xf32>
    %337 = vector.broadcast %336 : vector<1x16x16xf32> to vector<2x16x16xf32>
    %338 = vector.broadcast %335 : vector<2x16x1xf32> to vector<2x16x16xf32>
    %339 = arith.mulf %337, %338 : vector<2x16x16xf32>
    %340 = arith.addf %331, %339 : vector<2x16x16xf32>
    %cst_95 = arith.constant 2.500000e-01 : f32
    %341 = vector.broadcast %cst_95 : f32 to vector<2x16x16xf32>
    %342 = arith.mulf %340, %341 : vector<2x16x16xf32>
    %343 = vector.shape_cast %5 : vector<16x16xi1> to vector<1x16x16xi1>
    %cst_96 = arith.constant -1.000000e+30 : f32
    %344 = vector.shape_cast %343 : vector<1x16x16xi1> to vector<1x16x16xi1>
    %345 = vector.broadcast %344 : vector<1x16x16xi1> to vector<2x16x16xi1>
    %346 = vector.broadcast %cst_96 : f32 to vector<2x16x16xf32>
    %347 = arith.select %345, %342, %346 : vector<2x16x16xi1>, vector<2x16x16xf32>
    %cst_97 = arith.constant dense<0xFF800000> : vector<2x16xf32>
    %348 = vector.multi_reduction <maximumf>, %347, %cst_97 [2] : vector<2x16x16xf32> to vector<2x16xf32>
    %349 = vector.shape_cast %348 : vector<2x16xf32> to vector<2x16x1xf32>
    %350 = vector.shape_cast %5 : vector<16x16xi1> to vector<1x16x16xi1>
    %351 = vector.broadcast %349 : vector<2x16x1xf32> to vector<2x16x16xf32>
    %352 = arith.subf %347, %351 : vector<2x16x16xf32>
    %353 = math.exp %352 : vector<2x16x16xf32>
    %cst_98 = arith.constant 0.000000e+00 : f32
    %354 = vector.shape_cast %350 : vector<1x16x16xi1> to vector<1x16x16xi1>
    %355 = vector.broadcast %354 : vector<1x16x16xi1> to vector<2x16x16xi1>
    %356 = vector.broadcast %cst_98 : f32 to vector<2x16x16xf32>
    %357 = arith.select %355, %353, %356 : vector<2x16x16xi1>, vector<2x16x16xf32>
    %cst_99 = arith.constant dense<0.000000e+00> : vector<2x16xf32>
    %358 = vector.multi_reduction <add>, %357, %cst_99 [2] : vector<2x16x16xf32> to vector<2x16xf32>
    %359 = vector.shape_cast %358 : vector<2x16xf32> to vector<2x16x1xf32>
    %cst_100 = arith.constant 0.000000e+00 : f32
    %360 = vector.broadcast %cst_100 : f32 to vector<2x16x1xf32>
    %361 = arith.cmpf oeq, %359, %360 : vector<2x16x1xf32>
    %cst_101 = arith.constant 1.000000e+00 : f32
    %362 = vector.broadcast %cst_101 : f32 to vector<2x16x1xf32>
    %363 = arith.select %361, %362, %359 : vector<2x16x1xi1>, vector<2x16x1xf32>
    %364 = tpu.reciprocal %363 {approx = true} : vector<2x16x1xf32> -> vector<2x16x1xf32>
    %365 = vector.broadcast %364 : vector<2x16x1xf32> to vector<2x16x16xf32>
    %366 = arith.mulf %357, %365 : vector<2x16x16xf32>
    "tpu.trace_start"() <{level = 10 : i32, message = "hts,hsc->htc"}> : () -> ()
    %cst_102 = arith.constant dense<0.000000e+00> : vector<2x16x16xf32>
    %367 = tpu.matmul %366, %324, %cst_102 {dimension_numbers = #tpu.dot_dimension_numbers<[2], [1], [1], [2], [0, 0, 0, 1, 1, 2], [0], [0]>} : vector<2x16x16xf32>, vector<2x16x16xf32>, vector<2x16x16xf32> -> vector<2x16x16xf32>
    "tpu.trace_stop"() : () -> ()
    %368 = vector.shape_cast %3 : vector<16x16xf32> to vector<1x16x16xf32>
    %369 = vector.broadcast %368 : vector<1x16x16xf32> to vector<2x16x16xf32>
    %370 = arith.mulf %366, %369 : vector<2x16x16xf32>
    %cst_103 = arith.constant dense<0.000000e+00> : vector<2x16xf32>
    %371 = vector.multi_reduction <add>, %370, %cst_103 [2] : vector<2x16x16xf32> to vector<2x16xf32>
    %372 = vector.shape_cast %371 : vector<2x16xf32> to vector<2x16x1xf32>
    %373 = vector.broadcast %372 : vector<2x16x1xf32> to vector<2x16x16xf32>
    %374 = vector.broadcast %330 : vector<2x1x16xf32> to vector<2x16x16xf32>
    %375 = arith.mulf %373, %374 : vector<2x16x16xf32>
    %376 = arith.addf %367, %375 : vector<2x16x16xf32>
    %cst_104 = arith.constant dense<0.000000e+00> : vector<16x16xf32>
    %377 = vector.multi_reduction <add>, %376, %cst_104 [0] : vector<2x16x16xf32> to vector<16x16xf32>
    %cst_105 = arith.constant 2.000000e+00 : f32
    %378 = vector.broadcast %cst_105 : f32 to vector<16x16xf32>
    %379 = arith.divf %377, %378 : vector<16x16xf32>
    %380 = arith.addf %379, %325 : vector<16x16xf32>
    %c0_106 = arith.constant 0 : index
    %c0_107 = arith.constant 0 : index
    %381 = vector.load %arg5[%c0_106, %c0_107] : memref<16x64xf32, #tpu.memory_space<vmem>>, vector<16x64xf32>
    %c0_108 = arith.constant 0 : index
    %c0_109 = arith.constant 0 : index
    %382 = vector.load %arg6[%c0_108, %c0_109] : memref<1x16xf32, #tpu.memory_space<vmem>>, vector<1x16xf32>
    %cst_110 = arith.constant dense<0.000000e+00> : vector<16x64xf32>
    %383 = tpu.matmul %380, %381, %cst_110 {dimension_numbers = #tpu.dot_dimension_numbers<[1], [0], [0], [1], [0, 0, 1, 1], [], []>} : vector<16x16xf32>, vector<16x64xf32>, vector<16x64xf32> -> vector<16x64xf32>
    %384 = vector.extract_strided_slice %383 {offsets = [0, 0], sizes = [16, 16], strides = [1, 1]} : vector<16x64xf32> to vector<16x16xf32>
    %385 = vector.shape_cast %384 : vector<16x16xf32> to vector<1x16x16xf32>
    %386 = vector.extract_strided_slice %383 {offsets = [0, 16], sizes = [16, 16], strides = [1, 1]} : vector<16x64xf32> to vector<16x16xf32>
    %387 = vector.shape_cast %386 : vector<16x16xf32> to vector<1x16x16xf32>
    %388 = vector.extract_strided_slice %383 {offsets = [0, 32], sizes = [16, 16], strides = [1, 1]} : vector<16x64xf32> to vector<16x16xf32>
    %389 = vector.shape_cast %388 : vector<16x16xf32> to vector<1x16x16xf32>
    %390 = vector.extract_strided_slice %383 {offsets = [0, 48], sizes = [16, 16], strides = [1, 1]} : vector<16x64xf32> to vector<16x16xf32>
    %391 = vector.shape_cast %382 : vector<1x16xf32> to vector<1x1x16xf32>
    "tpu.trace_start"() <{level = 10 : i32, message = "htc,hsc->hts"}> : () -> ()
    %cst_111 = arith.constant dense<0.000000e+00> : vector<1x16x16xf32>
    %392 = tpu.matmul %385, %387, %cst_111 {dimension_numbers = #tpu.dot_dimension_numbers<[2], [2], [1], [1], [0, 0, 0, 1, 1, 1], [0], [0]>} : vector<1x16x16xf32>, vector<1x16x16xf32>, vector<1x16x16xf32> -> vector<1x16x16xf32>
    "tpu.trace_stop"() : () -> ()
    %393 = vector.broadcast %391 : vector<1x1x16xf32> to vector<1x16x16xf32>
    %394 = arith.mulf %385, %393 : vector<1x16x16xf32>
    %cst_112 = arith.constant dense<0.000000e+00> : vector<1x16xf32>
    %395 = vector.multi_reduction <add>, %394, %cst_112 [2] : vector<1x16x16xf32> to vector<1x16xf32>
    %396 = vector.shape_cast %395 : vector<1x16xf32> to vector<1x16x1xf32>
    %397 = vector.shape_cast %3 : vector<16x16xf32> to vector<1x16x16xf32>
    %398 = vector.broadcast %396 : vector<1x16x1xf32> to vector<1x16x16xf32>
    %399 = arith.mulf %397, %398 : vector<1x16x16xf32>
    %400 = arith.addf %392, %399 : vector<1x16x16xf32>
    %cst_113 = arith.constant 2.500000e-01 : f32
    %401 = vector.broadcast %cst_113 : f32 to vector<1x16x16xf32>
    %402 = arith.mulf %400, %401 : vector<1x16x16xf32>
    %403 = vector.shape_cast %5 : vector<16x16xi1> to vector<1x16x16xi1>
    %cst_114 = arith.constant -1.000000e+30 : f32
    %404 = vector.broadcast %cst_114 : f32 to vector<1x16x16xf32>
    %405 = arith.select %403, %402, %404 : vector<1x16x16xi1>, vector<1x16x16xf32>
    %cst_115 = arith.constant dense<0xFF800000> : vector<1x16xf32>
    %406 = vector.multi_reduction <maximumf>, %405, %cst_115 [2] : vector<1x16x16xf32> to vector<1x16xf32>
    %407 = vector.shape_cast %406 : vector<1x16xf32> to vector<1x16x1xf32>
    %408 = vector.shape_cast %5 : vector<16x16xi1> to vector<1x16x16xi1>
    %409 = vector.broadcast %407 : vector<1x16x1xf32> to vector<1x16x16xf32>
    %410 = arith.subf %405, %409 : vector<1x16x16xf32>
    %411 = math.exp %410 : vector<1x16x16xf32>
    %cst_116 = arith.constant 0.000000e+00 : f32
    %412 = vector.broadcast %cst_116 : f32 to vector<1x16x16xf32>
    %413 = arith.select %408, %411, %412 : vector<1x16x16xi1>, vector<1x16x16xf32>
    %cst_117 = arith.constant dense<0.000000e+00> : vector<1x16xf32>
    %414 = vector.multi_reduction <add>, %413, %cst_117 [2] : vector<1x16x16xf32> to vector<1x16xf32>
    %415 = vector.shape_cast %414 : vector<1x16xf32> to vector<1x16x1xf32>
    %cst_118 = arith.constant 0.000000e+00 : f32
    %416 = vector.broadcast %cst_118 : f32 to vector<1x16x1xf32>
    %417 = arith.cmpf oeq, %415, %416 : vector<1x16x1xf32>
    %cst_119 = arith.constant 1.000000e+00 : f32
    %418 = vector.broadcast %cst_119 : f32 to vector<1x16x1xf32>
    %419 = arith.select %417, %418, %415 : vector<1x16x1xi1>, vector<1x16x1xf32>
    %420 = tpu.reciprocal %419 {approx = true} : vector<1x16x1xf32> -> vector<1x16x1xf32>
    %421 = vector.broadcast %420 : vector<1x16x1xf32> to vector<1x16x16xf32>
    %422 = arith.mulf %413, %421 : vector<1x16x16xf32>
    "tpu.trace_start"() <{level = 10 : i32, message = "hts,hsc->htc"}> : () -> ()
    %cst_120 = arith.constant dense<0.000000e+00> : vector<1x16x16xf32>
    %423 = tpu.matmul %422, %389, %cst_120 {dimension_numbers = #tpu.dot_dimension_numbers<[2], [1], [1], [2], [0, 0, 0, 1, 1, 2], [0], [0]>} : vector<1x16x16xf32>, vector<1x16x16xf32>, vector<1x16x16xf32> -> vector<1x16x16xf32>
    "tpu.trace_stop"() : () -> ()
    %424 = vector.shape_cast %3 : vector<16x16xf32> to vector<1x16x16xf32>
    %425 = arith.mulf %422, %424 : vector<1x16x16xf32>
    %cst_121 = arith.constant dense<0.000000e+00> : vector<1x16xf32>
    %426 = vector.multi_reduction <add>, %425, %cst_121 [2] : vector<1x16x16xf32> to vector<1x16xf32>
    %427 = vector.shape_cast %426 : vector<1x16xf32> to vector<1x16x1xf32>
    %428 = vector.broadcast %427 : vector<1x16x1xf32> to vector<1x16x16xf32>
    %429 = vector.broadcast %391 : vector<1x1x16xf32> to vector<1x16x16xf32>
    %430 = arith.mulf %428, %429 : vector<1x16x16xf32>
    %431 = arith.addf %423, %430 : vector<1x16x16xf32>
    %432 = vector.shape_cast %431 : vector<1x16x16xf32> to vector<16x16xf32>
    %433 = arith.addf %432, %390 : vector<16x16xf32>
    %cst_122 = arith.constant dense<0.000000e+00> : vector<16xf32>
    %434 = vector.multi_reduction <add>, %433, %cst_122 [1] : vector<16x16xf32> to vector<16xf32>
    %435 = vector.shape_cast %434 : vector<16xf32> to vector<16x1xf32>
    %cst_123 = arith.constant 1.600000e+01 : f32
    %436 = vector.broadcast %cst_123 : f32 to vector<16x1xf32>
    %437 = arith.divf %435, %436 : vector<16x1xf32>
    %438 = vector.broadcast %437 : vector<16x1xf32> to vector<16x16xf32>
    %439 = arith.subf %433, %438 : vector<16x16xf32>
    %440 = arith.mulf %439, %439 : vector<16x16xf32>
    %cst_124 = arith.constant dense<0.000000e+00> : vector<16xf32>
    %441 = vector.multi_reduction <add>, %440, %cst_124 [1] : vector<16x16xf32> to vector<16xf32>
    %442 = vector.shape_cast %441 : vector<16xf32> to vector<16x1xf32>
    %cst_125 = arith.constant 1.600000e+01 : f32
    %443 = vector.broadcast %cst_125 : f32 to vector<16x1xf32>
    %444 = arith.divf %442, %443 : vector<16x1xf32>
    %445 = vector.broadcast %437 : vector<16x1xf32> to vector<16x16xf32>
    %446 = arith.subf %433, %445 : vector<16x16xf32>
    %cst_126 = arith.constant 9.99999974E-6 : f32
    %447 = vector.broadcast %cst_126 : f32 to vector<16x1xf32>
    %448 = arith.addf %444, %447 : vector<16x1xf32>
    %449 = math.rsqrt %448 : vector<16x1xf32>
    %450 = vector.broadcast %449 : vector<16x1xf32> to vector<16x16xf32>
    %451 = arith.mulf %446, %450 : vector<16x16xf32>
    %cst_127 = arith.constant 0.000000e+00 : f32
    %452 = vector.broadcast %cst_127 : f32 to vector<16x16xf32>
    %453 = arith.maximumf %451, %452 : vector<16x16xf32>
    %c0_128 = arith.constant 0 : index
    %c0_129 = arith.constant 0 : index
    %454 = vector.load %arg7[%c0_128, %c0_129] : memref<16x112xf32, #tpu.memory_space<vmem>>, vector<16x112xf32>
    %c0_130 = arith.constant 0 : index
    %c0_131 = arith.constant 0 : index
    %455 = vector.load %arg8[%c0_130, %c0_131] : memref<1x32xf32, #tpu.memory_space<vmem>>, vector<1x32xf32>
    %cst_132 = arith.constant dense<0.000000e+00> : vector<16x112xf32>
    %456 = tpu.matmul %453, %454, %cst_132 {dimension_numbers = #tpu.dot_dimension_numbers<[1], [0], [0], [1], [0, 0, 1, 1], [], []>} : vector<16x16xf32>, vector<16x112xf32>, vector<16x112xf32> -> vector<16x112xf32>
    %457 = vector.extract_strided_slice %456 {offsets = [0, 0], sizes = [16, 32], strides = [1, 1]} : vector<16x112xf32> to vector<16x32xf32>
    %458 = vector.extract_strided_slice %457 {offsets = [0, 0], sizes = [16, 16], strides = [1, 1]} : vector<16x32xf32> to vector<16x16xf32>
    %459 = vector.extract_strided_slice %457 {offsets = [0, 16], sizes = [16, 16], strides = [1, 1]} : vector<16x32xf32> to vector<16x16xf32>
    %460 = vector.shape_cast %458 : vector<16x16xf32> to vector<1x16x16xf32>
    %461 = vector.shape_cast %459 : vector<16x16xf32> to vector<1x16x16xf32>
    %462 = tpu.concatenate %460, %461 in 0 : vector<1x16x16xf32>, vector<1x16x16xf32> -> vector<2x16x16xf32>
    %463 = vector.extract_strided_slice %456 {offsets = [0, 32], sizes = [16, 32], strides = [1, 1]} : vector<16x112xf32> to vector<16x32xf32>
    %464 = vector.extract_strided_slice %463 {offsets = [0, 0], sizes = [16, 16], strides = [1, 1]} : vector<16x32xf32> to vector<16x16xf32>
    %465 = vector.extract_strided_slice %463 {offsets = [0, 16], sizes = [16, 16], strides = [1, 1]} : vector<16x32xf32> to vector<16x16xf32>
    %466 = vector.shape_cast %464 : vector<16x16xf32> to vector<1x16x16xf32>
    %467 = vector.shape_cast %465 : vector<16x16xf32> to vector<1x16x16xf32>
    %468 = tpu.concatenate %466, %467 in 0 : vector<1x16x16xf32>, vector<1x16x16xf32> -> vector<2x16x16xf32>
    %469 = vector.extract_strided_slice %456 {offsets = [0, 64], sizes = [16, 32], strides = [1, 1]} : vector<16x112xf32> to vector<16x32xf32>
    %470 = vector.extract_strided_slice %469 {offsets = [0, 0], sizes = [16, 16], strides = [1, 1]} : vector<16x32xf32> to vector<16x16xf32>
    %471 = vector.extract_strided_slice %469 {offsets = [0, 16], sizes = [16, 16], strides = [1, 1]} : vector<16x32xf32> to vector<16x16xf32>
    %472 = vector.shape_cast %470 : vector<16x16xf32> to vector<1x16x16xf32>
    %473 = vector.shape_cast %471 : vector<16x16xf32> to vector<1x16x16xf32>
    %474 = tpu.concatenate %472, %473 in 0 : vector<1x16x16xf32>, vector<1x16x16xf32> -> vector<2x16x16xf32>
    %475 = vector.extract_strided_slice %456 {offsets = [0, 96], sizes = [16, 16], strides = [1, 1]} : vector<16x112xf32> to vector<16x16xf32>
    %476 = vector.extract_strided_slice %455 {offsets = [0, 0], sizes = [1, 16], strides = [1, 1]} : vector<1x32xf32> to vector<1x16xf32>
    %477 = vector.extract_strided_slice %455 {offsets = [0, 16], sizes = [1, 16], strides = [1, 1]} : vector<1x32xf32> to vector<1x16xf32>
    %478 = vector.shape_cast %476 : vector<1x16xf32> to vector<1x1x16xf32>
    %479 = vector.shape_cast %477 : vector<1x16xf32> to vector<1x1x16xf32>
    %480 = tpu.concatenate %478, %479 in 0 : vector<1x1x16xf32>, vector<1x1x16xf32> -> vector<2x1x16xf32>
    "tpu.trace_start"() <{level = 10 : i32, message = "htc,hsc->hts"}> : () -> ()
    %cst_133 = arith.constant dense<0.000000e+00> : vector<2x16x16xf32>
    %481 = tpu.matmul %462, %468, %cst_133 {dimension_numbers = #tpu.dot_dimension_numbers<[2], [2], [1], [1], [0, 0, 0, 1, 1, 1], [0], [0]>} : vector<2x16x16xf32>, vector<2x16x16xf32>, vector<2x16x16xf32> -> vector<2x16x16xf32>
    "tpu.trace_stop"() : () -> ()
    %482 = vector.broadcast %480 : vector<2x1x16xf32> to vector<2x16x16xf32>
    %483 = arith.mulf %462, %482 : vector<2x16x16xf32>
    %cst_134 = arith.constant dense<0.000000e+00> : vector<2x16xf32>
    %484 = vector.multi_reduction <add>, %483, %cst_134 [2] : vector<2x16x16xf32> to vector<2x16xf32>
    %485 = vector.shape_cast %484 : vector<2x16xf32> to vector<2x16x1xf32>
    %486 = vector.shape_cast %3 : vector<16x16xf32> to vector<1x16x16xf32>
    %487 = vector.broadcast %486 : vector<1x16x16xf32> to vector<2x16x16xf32>
    %488 = vector.broadcast %485 : vector<2x16x1xf32> to vector<2x16x16xf32>
    %489 = arith.mulf %487, %488 : vector<2x16x16xf32>
    %490 = arith.addf %481, %489 : vector<2x16x16xf32>
    %cst_135 = arith.constant 2.500000e-01 : f32
    %491 = vector.broadcast %cst_135 : f32 to vector<2x16x16xf32>
    %492 = arith.mulf %490, %491 : vector<2x16x16xf32>
    %493 = vector.shape_cast %5 : vector<16x16xi1> to vector<1x16x16xi1>
    %cst_136 = arith.constant -1.000000e+30 : f32
    %494 = vector.shape_cast %493 : vector<1x16x16xi1> to vector<1x16x16xi1>
    %495 = vector.broadcast %494 : vector<1x16x16xi1> to vector<2x16x16xi1>
    %496 = vector.broadcast %cst_136 : f32 to vector<2x16x16xf32>
    %497 = arith.select %495, %492, %496 : vector<2x16x16xi1>, vector<2x16x16xf32>
    %cst_137 = arith.constant dense<0xFF800000> : vector<2x16xf32>
    %498 = vector.multi_reduction <maximumf>, %497, %cst_137 [2] : vector<2x16x16xf32> to vector<2x16xf32>
    %499 = vector.shape_cast %498 : vector<2x16xf32> to vector<2x16x1xf32>
    %500 = vector.shape_cast %5 : vector<16x16xi1> to vector<1x16x16xi1>
    %501 = vector.broadcast %499 : vector<2x16x1xf32> to vector<2x16x16xf32>
    %502 = arith.subf %497, %501 : vector<2x16x16xf32>
    %503 = math.exp %502 : vector<2x16x16xf32>
    %cst_138 = arith.constant 0.000000e+00 : f32
    %504 = vector.shape_cast %500 : vector<1x16x16xi1> to vector<1x16x16xi1>
    %505 = vector.broadcast %504 : vector<1x16x16xi1> to vector<2x16x16xi1>
    %506 = vector.broadcast %cst_138 : f32 to vector<2x16x16xf32>
    %507 = arith.select %505, %503, %506 : vector<2x16x16xi1>, vector<2x16x16xf32>
    %cst_139 = arith.constant dense<0.000000e+00> : vector<2x16xf32>
    %508 = vector.multi_reduction <add>, %507, %cst_139 [2] : vector<2x16x16xf32> to vector<2x16xf32>
    %509 = vector.shape_cast %508 : vector<2x16xf32> to vector<2x16x1xf32>
    %cst_140 = arith.constant 0.000000e+00 : f32
    %510 = vector.broadcast %cst_140 : f32 to vector<2x16x1xf32>
    %511 = arith.cmpf oeq, %509, %510 : vector<2x16x1xf32>
    %cst_141 = arith.constant 1.000000e+00 : f32
    %512 = vector.broadcast %cst_141 : f32 to vector<2x16x1xf32>
    %513 = arith.select %511, %512, %509 : vector<2x16x1xi1>, vector<2x16x1xf32>
    %514 = tpu.reciprocal %513 {approx = true} : vector<2x16x1xf32> -> vector<2x16x1xf32>
    %515 = vector.broadcast %514 : vector<2x16x1xf32> to vector<2x16x16xf32>
    %516 = arith.mulf %507, %515 : vector<2x16x16xf32>
    "tpu.trace_start"() <{level = 10 : i32, message = "hts,hsc->htc"}> : () -> ()
    %cst_142 = arith.constant dense<0.000000e+00> : vector<2x16x16xf32>
    %517 = tpu.matmul %516, %474, %cst_142 {dimension_numbers = #tpu.dot_dimension_numbers<[2], [1], [1], [2], [0, 0, 0, 1, 1, 2], [0], [0]>} : vector<2x16x16xf32>, vector<2x16x16xf32>, vector<2x16x16xf32> -> vector<2x16x16xf32>
    "tpu.trace_stop"() : () -> ()
    %518 = vector.shape_cast %3 : vector<16x16xf32> to vector<1x16x16xf32>
    %519 = vector.broadcast %518 : vector<1x16x16xf32> to vector<2x16x16xf32>
    %520 = arith.mulf %516, %519 : vector<2x16x16xf32>
    %cst_143 = arith.constant dense<0.000000e+00> : vector<2x16xf32>
    %521 = vector.multi_reduction <add>, %520, %cst_143 [2] : vector<2x16x16xf32> to vector<2x16xf32>
    %522 = vector.shape_cast %521 : vector<2x16xf32> to vector<2x16x1xf32>
    %523 = vector.broadcast %522 : vector<2x16x1xf32> to vector<2x16x16xf32>
    %524 = vector.broadcast %480 : vector<2x1x16xf32> to vector<2x16x16xf32>
    %525 = arith.mulf %523, %524 : vector<2x16x16xf32>
    %526 = arith.addf %517, %525 : vector<2x16x16xf32>
    %cst_144 = arith.constant dense<0.000000e+00> : vector<16x16xf32>
    %527 = vector.multi_reduction <add>, %526, %cst_144 [0] : vector<2x16x16xf32> to vector<16x16xf32>
    %cst_145 = arith.constant 2.000000e+00 : f32
    %528 = vector.broadcast %cst_145 : f32 to vector<16x16xf32>
    %529 = arith.divf %527, %528 : vector<16x16xf32>
    %530 = arith.addf %529, %475 : vector<16x16xf32>
    %c0_146 = arith.constant 0 : index
    %c0_147 = arith.constant 0 : index
    %c0_148 = arith.constant 0 : index
    %531 = vector.load %arg9[%c0_146, %c0_147, %c0_148] : memref<1x16x16xf32, #tpu.memory_space<vmem>>, vector<1x16x16xf32>
    %532 = vector.shape_cast %531 : vector<1x16x16xf32> to vector<16x16xf32>
    %533 = vector.shape_cast %530 : vector<16x16xf32> to vector<1x16x16xf32>
    tpu.vector_store %arg9[%c0_146, %c0_147, %c0_148], %533 {strides = array<i32>} : memref<1x16x16xf32, #tpu.memory_space<vmem>>, vector<1x16x16xf32>,
    return
  }
  func.func @transform_0(%arg0: i32) -> (i32, i32, i32) {
    %c0_i32 = arith.constant 0 : i32
    %c0_i32_0 = arith.constant 0 : i32
    %c0_i32_1 = arith.constant 0 : i32
    return %arg0, %c0_i32, %c0_i32_0 : i32, i32, i32
  }
  func.func @transform_1(%arg0: i32) -> (i32, i32, i32) {
    %c0_i32 = arith.constant 0 : i32
    %c0_i32_0 = arith.constant 0 : i32
    %c0_i32_1 = arith.constant 0 : i32
    return %arg0, %c0_i32, %c0_i32_0 : i32, i32, i32
  }
  func.func @transform_2(%arg0: i32) -> (i32, i32) {
    %c0_i32 = arith.constant 0 : i32
    %c0_i32_0 = arith.constant 0 : i32
    %c0_i32_1 = arith.constant 0 : i32
    return %c0_i32, %c0_i32_0 : i32, i32
  }
  func.func @transform_3(%arg0: i32) -> (i32, i32) {
    %c0_i32 = arith.constant 0 : i32
    %c0_i32_0 = arith.constant 0 : i32
    %c0_i32_1 = arith.constant 0 : i32
    return %c0_i32, %c0_i32_0 : i32, i32
  }
  func.func @transform_4(%arg0: i32) -> (i32, i32) {
    %c0_i32 = arith.constant 0 : i32
    %c0_i32_0 = arith.constant 0 : i32
    %c0_i32_1 = arith.constant 0 : i32
    return %c0_i32, %c0_i32_0 : i32, i32
  }
  func.func @transform_5(%arg0: i32) -> (i32, i32) {
    %c0_i32 = arith.constant 0 : i32
    %c0_i32_0 = arith.constant 0 : i32
    %c0_i32_1 = arith.constant 0 : i32
    return %c0_i32, %c0_i32_0 : i32, i32
  }
  func.func @transform_6(%arg0: i32) -> (i32, i32) {
    %c0_i32 = arith.constant 0 : i32
    %c0_i32_0 = arith.constant 0 : i32
    %c0_i32_1 = arith.constant 0 : i32
    return %c0_i32, %c0_i32_0 : i32, i32
  }
  func.func @transform_7(%arg0: i32) -> (i32, i32) {
    %c0_i32 = arith.constant 0 : i32
    %c0_i32_0 = arith.constant 0 : i32
    %c0_i32_1 = arith.constant 0 : i32
    return %c0_i32, %c0_i32_0 : i32, i32
  }
  func.func @transform_8(%arg0: i32) -> (i32, i32, i32) {
    %c0_i32 = arith.constant 0 : i32
    %c0_i32_0 = arith.constant 0 : i32
    %c0_i32_1 = arith.constant 0 : i32
    return %arg0, %c0_i32, %c0_i32_0 : i32, i32, i32
  }
}

</mosaic_0001>

<llo_original>
// kernel: tpu_custom_call.1
$region0: #{tpu_custom_call.1}
  #allocation0 [shape = 'u32[]', space=smem, size = 0x4, offset = 0x4, fixed_abs, tag = 'smem constant byte address 0x4 - core index']
  #allocation1 [shape = 'u32[144,128]{1,0:T(1,128)}', space=vmem, size = 0x12000, scoped, tag = 'internal scratch']
  %s0 = inlined_call_operand.vmem [shape: f32[2,16,1], index: 0, kind: input, shape index: {}]
  %s1 = inlined_call_operand.vmem [shape: f32[2,16,16], index: 1, kind: input, shape index: {}]
  %s2 = inlined_call_operand.vmem [shape: f32[1,64], index: 2, kind: input, shape index: {}]
  %s3 = inlined_call_operand.hbm [shape: f32[1,16], index: 3, kind: input, shape index: {}]
  %s4 = inlined_call_operand.vmem [shape: f32[16,64], index: 4, kind: input, shape index: {}]
  %s5 = inlined_call_operand.vmem [shape: f32[1,16], index: 5, kind: input, shape index: {}]
  %s6 = inlined_call_operand.hbm [shape: f32[16,112], index: 6, kind: input, shape index: {}]
  %s7 = inlined_call_operand.vmem [shape: f32[1,32], index: 7, kind: input, shape index: {}]
  %s8 = inlined_call_operand.hbm [shape: f32[2,16,16], index: 8, kind: output, shape index: {}]
  %s9 = sld [smem:[#allocation0]]
  $region73: #{tpu_custom_call.1} parent=0
    _
  %s11 = ssub.s32 1, %s9
  %s12 = scalar_select 0, %s11, %s9
  $region1: #{tpu_custom_call.1} parent=0
    #allocation2 [shape = 'u8[512]{0}', space=vmem, size = 0x400, scoped, tag = 'input window, operand 3, single buffered']
    #allocation3 [shape = 's32[2]{0}', space=sflag, size = 0x8, scoped, tag = 'scoped memory for tpu_custom_call.1']
    #allocation4 [shape = 's32[2]{0}', space=sflag, size = 0x8, scoped, tag = 'scoped memory for tpu_custom_call.1']
    #allocation5 [shape = 'u8[8192]{0}', space=vmem, size = 0x2000, scoped, tag = 'input window, operand 6, single buffered']
    #allocation6 [shape = 's32[1]{0}', space=sflag, size = 0x4, scoped, tag = 'scoped memory for tpu_custom_call.1']
    #allocation7 [shape = 'u8[16384]{0}', space=vmem, size = 0x4000, scoped, tag = 'output window, operand 0']
    %13 = vsyncpa [#allocation3], 0
    %14 = vsyncpa [#allocation6], 0
    %15 = vsyncpa [#allocation4], 0
    %s16 = scalar_lea.sflag [#allocation4], 1
    %17 = vsyncpa %s16, 0
    loop: start=0, step=1, limit=4
    $region2: #{tpu_custom_call.1} parent=1 // loop_pre_header
      _
    $region3: #{tpu_custom_call.1} parent=1 // loop_header
      %s19 = sphi 0, %s23
      %p20 = scmp.ge.s32.totalorder %s19, 4
      %s29 = sphi 0, %s31
      %s32 = sphi 0, %s29
      %s33 = sphi 0, %s32
      %s49 = sphi 0, %s33
      %s55 = sphi 0, %s57
      %s58 = sphi 0, %s55
      %s59 = sphi 0, %s58
      %s75 = sphi 0, %s59
      %s79 = sphi 0, %s79
      %s81 = sphi 0, %s79
      %s82 = sphi 0, %s81
      %s96 = sphi 0, %s82
      %s100 = sphi 0, %s100
      %s102 = sphi 0, %s100
      %s103 = sphi 0, %s102
      %s117 = sphi 0, %s103
      %s121 = sphi 0, %s121
      %s123 = sphi 0, %s121
      %s124 = sphi 0, %s123
      %s138 = sphi 0, %s124
      %s142 = sphi 0, %s142
      %s144 = sphi 0, %s142
      %s145 = sphi 0, %s144
      %s159 = sphi 0, %s145
      %s163 = sphi 0, %s163
      %s165 = sphi 0, %s163
      %s166 = sphi 0, %s165
      %s180 = sphi 0, %s166
      %s184 = sphi 0, %s184
      %s186 = sphi 0, %s184
      %s187 = sphi 0, %s186
      %s201 = sphi 0, %s187
      %s207 = sphi 0, %s209
      %s210 = sphi 0, %s207
      %s211 = sphi 0, %s210
      %s227 = sphi 0, %s211
    $region4: #{tpu_custom_call.1} parent=1 // loop_header_branch
      %22 = sbr.rel (%p20) target = $region8
    $region5: #{tpu_custom_call.1} parent=1 // loop_body
      %s24 = ssub.s32 %s19, 1
      %s25 = ssub.s32 %s19, 2
      %s26 = sadd.s32 %s19, 1
      %s27 = ssub.s32 %s19, %s26
      %p28 = scmp.eq.s32.totalorder %s27, 0
      %s30 = sadd.s32 %s29, 1
      %s31 = scalar_select %p28, %s29, %s30
      %p34 = pneg %p28
      %p35 = scmp.eq.s32.totalorder %s19, 1
      %p36 = por %p34, %p35
      %p37 = scmp.ne.s32.totalorder %s29, %s32
      %p38 = scmp.eq.s32.totalorder %s19, 0
      %p39 = por %p37, %p38
      %p40 = scmp.ne.s32.totalorder %s29, %s32
      %p41 = scmp.eq.s32.totalorder %s24, 1
      %p42 = por %p40, %p41
      %p43 = scmp.ne.s32.totalorder %s32, %s33
      %p44 = scmp.eq.s32.totalorder %s24, 0
      %p45 = por %p43, %p44
      %p46 = scmp.ne.s32.totalorder %s32, %s33
      %p47 = scmp.eq.s32.totalorder %s25, 1
      %p48 = por %p46, %p47
      %p50 = scmp.ne.s32.totalorder %s33, %s49
      %p51 = scmp.eq.s32.totalorder %s25, 0
      %p52 = por %p50, %p51
      %s53 = ssub.s32 %s19, %s26
      %p54 = scmp.eq.s32.totalorder %s53, 0
      %s56 = sadd.s32 %s55, 1
      %s57 = scalar_select %p54, %s55, %s56
      %p60 = pneg %p54
      %p61 = scmp.eq.s32.totalorder %s19, 1
      %p62 = por %p60, %p61
      %p63 = scmp.ne.s32.totalorder %s55, %s58
      %p64 = scmp.eq.s32.totalorder %s19, 0
      %p65 = por %p63, %p64
      %p66 = scmp.ne.s32.totalorder %s55, %s58
      %p67 = scmp.eq.s32.totalorder %s24, 1
      %p68 = por %p66, %p67
      %p69 = scmp.ne.s32.totalorder %s58, %s59
      %p70 = scmp.eq.s32.totalorder %s24, 0
      %p71 = por %p69, %p70
      %p72 = scmp.ne.s32.totalorder %s58, %s59
      %p73 = scmp.eq.s32.totalorder %s25, 1
      %p74 = por %p72, %p73
      %p76 = scmp.ne.s32.totalorder %s59, %s75
      %p77 = scmp.eq.s32.totalorder %s25, 0
      %p78 = por %p76, %p77
      %s80 = sadd.s32 %s79, 1
      %p83 = scmp.eq.s32.totalorder %s19, 1
      %p84 = scmp.ne.s32.totalorder %s79, %s81
      %p85 = scmp.eq.s32.totalorder %s19, 0
      %p86 = por %p84, %p85
      %p87 = scmp.ne.s32.totalorder %s79, %s81
      %p88 = scmp.eq.s32.totalorder %s24, 1
      %p89 = por %p87, %p88
      %p90 = scmp.ne.s32.totalorder %s81, %s82
      %p91 = scmp.eq.s32.totalorder %s24, 0
      %p92 = por %p90, %p91
      %p93 = scmp.ne.s32.totalorder %s81, %s82
      %p94 = scmp.eq.s32.totalorder %s25, 1
      %p95 = por %p93, %p94
      %p97 = scmp.ne.s32.totalorder %s82, %s96
      %p98 = scmp.eq.s32.totalorder %s25, 0
      %p99 = por %p97, %p98
      %s101 = sadd.s32 %s100, 1
      %p104 = scmp.eq.s32.totalorder %s19, 1
      %p105 = scmp.ne.s32.totalorder %s100, %s102
      %p106 = scmp.eq.s32.totalorder %s19, 0
      %p107 = por %p105, %p106
      %p108 = scmp.ne.s32.totalorder %s100, %s102
      %p109 = scmp.eq.s32.totalorder %s24, 1
      %p110 = por %p108, %p109
      %p111 = scmp.ne.s32.totalorder %s102, %s103
      %p112 = scmp.eq.s32.totalorder %s24, 0
      %p113 = por %p111, %p112
      %p114 = scmp.ne.s32.totalorder %s102, %s103
      %p115 = scmp.eq.s32.totalorder %s25, 1
      %p116 = por %p114, %p115
      %p118 = scmp.ne.s32.totalorder %s103, %s117
      %p119 = scmp.eq.s32.totalorder %s25, 0
      %p120 = por %p118, %p119
      %s122 = sadd.s32 %s121, 1
      %p125 = scmp.eq.s32.totalorder %s19, 1
      %p126 = scmp.ne.s32.totalorder %s121, %s123
      %p127 = scmp.eq.s32.totalorder %s19, 0
      %p128 = por %p126, %p127
      %p129 = scmp.ne.s32.totalorder %s121, %s123
      %p130 = scmp.eq.s32.totalorder %s24, 1
      %p131 = por %p129, %p130
      %p132 = scmp.ne.s32.totalorder %s123, %s124
      %p133 = scmp.eq.s32.totalorder %s24, 0
      %p134 = por %p132, %p133
      %p135 = scmp.ne.s32.totalorder %s123, %s124
      %p136 = scmp.eq.s32.totalorder %s25, 1
      %p137 = por %p135, %p136
      %p139 = scmp.ne.s32.totalorder %s124, %s138
      %p140 = scmp.eq.s32.totalorder %s25, 0
      %p141 = por %p139, %p140
      %s143 = sadd.s32 %s142, 1
      %p146 = scmp.eq.s32.totalorder %s19, 1
      %p147 = scmp.ne.s32.totalorder %s142, %s144
      %p148 = scmp.eq.s32.totalorder %s19, 0
      %p149 = por %p147, %p148
      %p150 = scmp.ne.s32.totalorder %s142, %s144
      %p151 = scmp.eq.s32.totalorder %s24, 1
      %p152 = por %p150, %p151
      %p153 = scmp.ne.s32.totalorder %s144, %s145
      %p154 = scmp.eq.s32.totalorder %s24, 0
      %p155 = por %p153, %p154
      %p156 = scmp.ne.s32.totalorder %s144, %s145
      %p157 = scmp.eq.s32.totalorder %s25, 1
      %p158 = por %p156, %p157
      %p160 = scmp.ne.s32.totalorder %s145, %s159
      %p161 = scmp.eq.s32.totalorder %s25, 0
      %p162 = por %p160, %p161
      %s164 = sadd.s32 %s163, 1
      %p167 = scmp.eq.s32.totalorder %s19, 1
      %p168 = scmp.ne.s32.totalorder %s163, %s165
      %p169 = scmp.eq.s32.totalorder %s19, 0
      %p170 = por %p168, %p169
      %p171 = scmp.ne.s32.totalorder %s163, %s165
      %p172 = scmp.eq.s32.totalorder %s24, 1
      %p173 = por %p171, %p172
      %p174 = scmp.ne.s32.totalorder %s165, %s166
      %p175 = scmp.eq.s32.totalorder %s24, 0
      %p176 = por %p174, %p175
      %p177 = scmp.ne.s32.totalorder %s165, %s166
      %p178 = scmp.eq.s32.totalorder %s25, 1
      %p179 = por %p177, %p178
      %p181 = scmp.ne.s32.totalorder %s166, %s180
      %p182 = scmp.eq.s32.totalorder %s25, 0
      %p183 = por %p181, %p182
      %s185 = sadd.s32 %s184, 1
      %p188 = scmp.eq.s32.totalorder %s19, 1
      %p189 = scmp.ne.s32.totalorder %s184, %s186
      %p190 = scmp.eq.s32.totalorder %s19, 0
      %p191 = por %p189, %p190
      %p192 = scmp.ne.s32.totalorder %s184, %s186
      %p193 = scmp.eq.s32.totalorder %s24, 1
      %p194 = por %p192, %p193
      %p195 = scmp.ne.s32.totalorder %s186, %s187
      %p196 = scmp.eq.s32.totalorder %s24, 0
      %p197 = por %p195, %p196
      %p198 = scmp.ne.s32.totalorder %s186, %s187
      %p199 = scmp.eq.s32.totalorder %s25, 1
      %p200 = por %p198, %p199
      %p202 = scmp.ne.s32.totalorder %s187, %s201
      %p203 = scmp.eq.s32.totalorder %s25, 0
      %p204 = por %p202, %p203
      %s205 = ssub.s32 %s19, %s26
      %p206 = scmp.eq.s32.totalorder %s205, 0
      %s208 = sadd.s32 %s207, 1
      %s209 = scalar_select %p206, %s207, %s208
      %p212 = pneg %p206
      %p213 = scmp.eq.s32.totalorder %s19, 1
      %p214 = por %p212, %p213
      %p215 = scmp.ne.s32.totalorder %s207, %s210
      %p216 = scmp.eq.s32.totalorder %s19, 0
      %p217 = por %p215, %p216
      %p218 = scmp.ne.s32.totalorder %s207, %s210
      %p219 = scmp.eq.s32.totalorder %s24, 1
      %p220 = por %p218, %p219
      %p221 = scmp.ne.s32.totalorder %s210, %s211
      %p222 = scmp.eq.s32.totalorder %s24, 0
      %p223 = por %p221, %p222
      %p224 = scmp.ne.s32.totalorder %s210, %s211
      %p225 = scmp.eq.s32.totalorder %s25, 1
      %p226 = por %p224, %p225
      %p228 = scmp.ne.s32.totalorder %s211, %s227
      %p229 = scmp.eq.s32.totalorder %s25, 0
      %p230 = por %p228, %p229
      %p231 = scmp.le.s32.totalorder 1, %s19
      %p232 = scmp.lt.s32.totalorder %s19, 3
      %p233 = pnand %p231, %p232
      %p234 = pneg %p233
      // Predicated region
      $region9: #{tpu_custom_call.1} parent=5 // pred_check
        _
      $region10: #{tpu_custom_call.1} parent=5 // pred_check_branch
        %236 = sbr.rel (%p233) target = $region12
      $region11: #{tpu_custom_call.1} parent=5 // pred_region
        %s237 = ssub.s32 %s19, 1
        // Predicated region
        $region13: #{tpu_custom_call.1} parent=11 // pred_check
          %p238 = pneg %p92
        $region14: #{tpu_custom_call.1} parent=11 // pred_check_branch
          %240 = sbr.rel (%p238) target = $region16
        $region15: #{tpu_custom_call.1} parent=11 // pred_region
          _
        $region16: #{tpu_custom_call.1} parent=11 // pred_fallthru
          _
        // Predicated region
        $region17: #{tpu_custom_call.1} parent=11 // pred_check
          %p241 = pneg %p113
        $region18: #{tpu_custom_call.1} parent=11 // pred_check_branch
          %243 = sbr.rel (%p241) target = $region20
        $region19: #{tpu_custom_call.1} parent=11 // pred_region
          %s245 = ssub.s32 16, 16
          %246 = vsyncadd [#allocation3], %s245
          %s248 = sshll.u32 [#allocation2], 4
          %s249 = int_to_ptr.vmem [resolvable:$true] %s248
          %251 = dma.hbm_to_vmem [thread:$0]  %s3, 16, %s249, [#allocation3]
        $region20: #{tpu_custom_call.1} parent=11 // pred_fallthru
          _
        // Predicated region
        $region21: #{tpu_custom_call.1} parent=11 // pred_check
          %p252 = pneg %p134
        $region22: #{tpu_custom_call.1} parent=11 // pred_check_branch
          %254 = sbr.rel (%p252) target = $region24
        $region23: #{tpu_custom_call.1} parent=11 // pred_region
          _
        $region24: #{tpu_custom_call.1} parent=11 // pred_fallthru
          _
        // Predicated region
        $region25: #{tpu_custom_call.1} parent=11 // pred_check
          %p255 = pneg %p155
        $region26: #{tpu_custom_call.1} parent=11 // pred_check_branch
          %257 = sbr.rel (%p255) target = $region28
        $region27: #{tpu_custom_call.1} parent=11 // pred_region
          _
        $region28: #{tpu_custom_call.1} parent=11 // pred_fallthru
          _
        // Predicated region
        $region29: #{tpu_custom_call.1} parent=11 // pred_check
          %p258 = pneg %p176
        $region30: #{tpu_custom_call.1} parent=11 // pred_check_branch
          %260 = sbr.rel (%p258) target = $region32
        $region31: #{tpu_custom_call.1} parent=11 // pred_region
          %s262 = ssub.s32 256, 256
          %263 = vsyncadd [#allocation6], %s262
          %s264 = sshll.u32 [#allocation5], 4
          %s265 = int_to_ptr.vmem [resolvable:$true] %s264
          %270 = dma.hbm_to_vmem [thread:$0]  %s6, 256, %s265, [#allocation6], 128, 128, 8
        $region32: #{tpu_custom_call.1} parent=11 // pred_fallthru
          _
        // Predicated region
        $region33: #{tpu_custom_call.1} parent=11 // pred_check
          %p271 = pneg %p197
        $region34: #{tpu_custom_call.1} parent=11 // pred_check_branch
          %273 = sbr.rel (%p271) target = $region36
        $region35: #{tpu_custom_call.1} parent=11 // pred_region
          _
        $region36: #{tpu_custom_call.1} parent=11 // pred_fallthru
          _
      $region12: #{tpu_custom_call.1} parent=5 // pred_fallthru
        _
      %p274 = scmp.lt.s32.totalorder %s19, 2
      // Predicated region
      $region37: #{tpu_custom_call.1} parent=5 // pred_check
        %p275 = pneg %p274
      $region38: #{tpu_custom_call.1} parent=5 // pred_check_branch
        %277 = sbr.rel (%p275) target = $region40
      $region39: #{tpu_custom_call.1} parent=5 // pred_region
        // Predicated region
        $region41: #{tpu_custom_call.1} parent=39 // pred_check
          %p278 = pneg %p39
        $region42: #{tpu_custom_call.1} parent=39 // pred_check_branch
          %280 = sbr.rel (%p278) target = $region44
        $region43: #{tpu_custom_call.1} parent=39 // pred_region
          %p281 = scmp.lt.s32.totalorder %s19, 1
          %s282 = scalar_select %p281, %s19, 1
          %s283 = smul.addr %s282, 2
          %s284 = smul.addr %s283, 8
          %s285 = scalar_lea.vmem %s0, %s284
        $region44: #{tpu_custom_call.1} parent=39 // pred_fallthru
          _
        // Predicated region
        $region45: #{tpu_custom_call.1} parent=39 // pred_check
          %p286 = pneg %p65
        $region46: #{tpu_custom_call.1} parent=39 // pred_check_branch
          %288 = sbr.rel (%p286) target = $region48
        $region47: #{tpu_custom_call.1} parent=39 // pred_region
          %p289 = scmp.lt.s32.totalorder %s19, 1
          %s290 = scalar_select %p289, %s19, 1
          %s291 = smul.addr %s290, 2
          %s292 = smul.addr %s291, 8
          %s293 = scalar_lea.vmem %s1, %s292
        $region48: #{tpu_custom_call.1} parent=39 // pred_fallthru
          _
      $region40: #{tpu_custom_call.1} parent=5 // pred_fallthru
        _
      %p294 = scmp.le.s32.totalorder 1, %s19
      %p295 = scmp.lt.s32.totalorder %s19, 3
      %p296 = pnand %p294, %p295
      %p297 = pneg %p296
      // Predicated region
      $region49: #{tpu_custom_call.1} parent=5 // pred_check
        _
      $region50: #{tpu_custom_call.1} parent=5 // pred_check_branch
        %299 = sbr.rel (%p296) target = $region52
      $region51: #{tpu_custom_call.1} parent=5 // pred_region
        %s300 = ssub.s32 %s19, 1
        // Predicated region
        $region53: #{tpu_custom_call.1} parent=51 // pred_check
          %p301 = pneg %p113
        $region54: #{tpu_custom_call.1} parent=51 // pred_check_branch
          %303 = sbr.rel (%p301) target = $region56
        $region55: #{tpu_custom_call.1} parent=51 // pred_region
          %304 = dma.done [#allocation3], 16
        $region56: #{tpu_custom_call.1} parent=51 // pred_fallthru
          _
        // Predicated region
        $region57: #{tpu_custom_call.1} parent=51 // pred_check
          %p305 = pneg %p176
        $region58: #{tpu_custom_call.1} parent=51 // pred_check_branch
          %307 = sbr.rel (%p305) target = $region60
        $region59: #{tpu_custom_call.1} parent=51 // pred_region
          %308 = dma.done [#allocation6], 256
        $region60: #{tpu_custom_call.1} parent=51 // pred_fallthru
          _
        %p309 = scmp.lt.s32.totalorder %s24, 1
        %s310 = scalar_select %p309, %s24, 1
        %s311 = smul.addr %s310, 2
        %s312 = smul.addr %s311, 8
        %s313 = scalar_lea.vmem %s0, %s312
        %p314 = pneg %p45
        %p315 = pneg %p42
        %p316 = scmp.lt.s32.totalorder %s24, 1
        %s317 = scalar_select %p316, %s24, 1
        %s318 = smul.addr %s317, 2
        %s319 = smul.addr %s318, 8
        %s320 = scalar_lea.vmem %s1, %s319
        %p321 = pneg %p71
        %p322 = pneg %p68
        %p323 = pneg %p92
        %p324 = pneg %p89
        %p325 = pneg %p113
        %p326 = pneg %p110
        %p327 = pneg %p134
        %p328 = pneg %p131
        %p329 = pneg %p155
        %p330 = pneg %p152
        %p331 = pneg %p176
        %p332 = pneg %p173
        %p333 = pneg %p197
        %p334 = pneg %p194
        %p335 = pneg %p223
        %p336 = pneg %p220
        %s337 = sand.u32 %s210, 1
        %s338 = scalar_lea.sflag [#allocation4], %s337
        %s339 = sand.u32 %s210, 1
        %s340 = smul.addr %s339, 16
        %s341 = scalar_lea.vmem [#allocation7], %s340
        %p342 = scmp.lt.s32.totalorder %s24, 1
        %s343 = scalar_select %p342, %s24, 1
        %s344 = smul.addr %s343, 2
        %s345 = smul.addr %s344, 8
        %s346 = scalar_lea.vmem %s0, %s345
        %p347 = scmp.lt.s32.totalorder %s24, 1
        %s348 = scalar_select %p347, %s24, 1
        %s349 = smul.addr %s348, 2
        %s350 = smul.addr %s349, 8
        %s351 = scalar_lea.vmem %s1, %s350
        %v352 = vld [vmem:[%s346] sm:$0xff]
        %v353 = vld [vmem:[%s346 + $0x8] sm:$0xff]
        %v354 = vld [vmem:[%s351] sm:$0xff]
        %v355 = vld [vmem:[%s351 + $0x8] sm:$0xff]
        %vm356 = vcmp.ne.f32.partialorder %v354, 0.0
        %vm357 = vcmp.ne.f32.partialorder %v355, 0.0
        %v358 = vld [vmem:[%s2] sm:$0x1]
        %v359 = vld [vmem:[#allocation2] sm:$0x1]
        %361 = vset.pattern.permute.xlu0 0
        %362 = vperm.xlu0 %361, %v352
        %v363 = vpop.permute.xlu0 %362
        %366 = vset.pattern.permute.xlu0 0
        %367 = vperm.xlu0 %366, %v353
        %v368 = vpop.permute.xlu0 %367
        %v371 = vlaneseq
        %v372 = vshrl.u32 %v371, 7
        %v373 = vsub.s32 0, %v372
        %v374 = vrot.slane %v358, %v373
        %v376 = vmul.f32 %v363, %v374
        %v377 = vmul.f32 %v368, %v374
        %v379 = vlaneseq
        %v380 = vshrl.u32 %v379, 7
        %v381 = vsub.s32 0, %v380
        %v382 = vrot.slane %v359, %v381
        %v384 = vmul.f32 %v376, %v382
        %v385 = vmul.f32 %v377, %v382
        %vm386 = vcmask 130048
        %v387 = vsel %vm386, %v384, 0.0
        %388 = vadd.xlane.f32.xlu0 %v387
        %v389 = vpop.xlane.xlu0 %388
        %v390 = vsel %vm386, %v385, 0.0
        %391 = vadd.xlane.f32.xlu0 %v390
        %v392 = vpop.xlane.xlu0 %391
        %v393 = vmul.f32 %v354, %v389
        %v394 = vmul.f32 %v355, %v392
        %397 = vrot.lane.b32.xlu0 %v376, 112
        %v398 = vpop.permute.xlu0 %397
        %399 = vrot.lane.b32.xlu0 %v377, 112
        %v400 = vpop.permute.xlu0 %399
        %v401 = vsel %vm386, %v376, 0
        %v403 = vsel %vm386, %v377, 0
        %v405 = vsel %vm386, %v398, 0
        %v407 = vsel %vm386, %v400, 0
        %409 = vmatprep.subr.mxu0 0.0
        %410 = vmatpush1.xpose.msra.mxu0 %v405
        %411 = vmatprep.subr.mxu0 0.0
        %412 = vmatpush1.xpose.msra.mxu0 %v407
        %413 = vmatprep.subr.mxu0 0.0
        %414 = vmatpush1.xpose.msra.mxu0 0.0
        %415 = vmatprep.subr.mxu0 0.0
        %416 = vmatpush1.xpose.msra.mxu0 0.0
        %417 = vmatprep.subr.mxu0 0.0
        %418 = vmatpush1.xpose.msra.mxu0 0.0
        %419 = vmatprep.subr.mxu0 0.0
        %420 = vmatpush1.xpose.msra.mxu0 0.0
        %421 = vmatprep.subr.mxu0 0.0
        %422 = vmatpush1.xpose.msra.mxu0 0.0
        %423 = vmatprep.subr.mxu0 0.0
        %424 = vmatpush1.xpose.msra.mxu0 0.0
        %425 = vmatprep.subr.mxu0 0.0
        %426 = vmatpush1.xpose.msra.mxu0 0.0
        %427 = vmatprep.subr.mxu0 0.0
        %428 = vmatpush1.xpose.msra.mxu0 0.0
        %429 = vmatprep.subr.mxu0 0.0
        %430 = vmatpush1.xpose.msra.mxu0 0.0
        %431 = vmatprep.subr.mxu0 0.0
        %432 = vmatpush1.xpose.msra.mxu0 0.0
        %433 = vmatprep.subr.mxu0 0.0
        %434 = vmatpush1.xpose.msra.mxu0 0.0
        %435 = vmatprep.subr.mxu0 0.0
        %436 = vmatpush1.xpose.msra.mxu0 0.0
        %437 = vmatprep.subr.mxu0 0.0
        %438 = vmatpush1.xpose.msra.mxu0 0.0
        %439 = vmatprep.subr.mxu0 0.0
        %440 = vmatpush1.xpose.msra.mxu0 0.0
        %441 = vmatprep.subr.mxu0 0.0
        %442 = vmatpush1.xpose.msra.mxu0 0.0
        %443 = vmatprep.subr.mxu0 0.0
        %444 = vmatpush1.xpose.msra.mxu0 0.0
        %445 = vmatprep.subr.mxu0 0.0
        %446 = vmatpush1.xpose.msra.mxu0 0.0
        %447 = vmatprep.subr.mxu0 0.0
        %448 = vmatpush1.xpose.msra.mxu0 0.0
        %449 = vmatprep.subr.mxu0 0.0
        %450 = vmatpush1.xpose.msra.mxu0 0.0
        %451 = vmatprep.subr.mxu0 0.0
        %452 = vmatpush1.xpose.msra.mxu0 0.0
        %453 = vmatprep.subr.mxu0 0.0
        %454 = vmatpush1.xpose.msra.mxu0 0.0
        %455 = vmatprep.subr.mxu0 0.0
        %456 = vmatpush1.xpose.msra.mxu0 0.0
        %457 = vmatprep.subr.mxu0 0.0
        %458 = vmatpush1.xpose.msra.mxu0 0.0
        %459 = vmatprep.subr.mxu0 0.0
        %460 = vmatpush1.xpose.msra.mxu0 0.0
        %461 = vmatprep.subr.mxu0 0.0
        %462 = vmatpush1.xpose.msra.mxu0 0.0
        %463 = vmatprep.subr.mxu0 0.0
        %464 = vmatpush1.xpose.msra.mxu0 0.0
        %465 = vmatprep.subr.mxu0 0.0
        %466 = vmatpush1.xpose.msra.mxu0 0.0
        %467 = vmatprep.subr.mxu0 0.0
        %468 = vmatpush1.xpose.msra.mxu0 0.0
        %469 = vmatprep.subr.mxu0 0.0
        %470 = vmatpush1.xpose.msra.mxu0 0.0
        %471 = vmatprep.subr.mxu0 0.0
        %472 = vmatpush1.xpose.msra.mxu0 0.0
        %473 = vmatprep.mubr.f32.mxu0 0.0
        %474 = vmatmul.mubr.f32.gmra.mrb[0].mxu0 %v401
        %v475 = vpop.f32.mrb[0].mxu0
        %v476 = vadd.f32 %v393, %v475
        %v477 = vpop.f32.mrb[0].mxu0
        %478 = vmatprep.mubr.f32.mxu0 0.0
        %479 = vmatmul.mubr.f32.gmra.mrb[0].mxu0 %v403
        %v480 = vpop.f32.mrb[0].mxu0
        %v481 = vadd.f32 %v394, %v480
        %v482 = vpop.f32.mrb[0].mxu0
        %483 = vdwg.mxu0
        %v484 = vmul.f32 %v476, 0.25
        %v485 = vmul.f32 %v481, 0.25
        %v486 = vsel %vm356, %v484, -1e+30
        %v487 = vsel %vm357, %v485, -1e+30
        %v488 = vsel %vm386, %v486, -inf
        %489 = vmax.xlane.f32.xlu0 %v488
        %v490 = vpop.xlane.xlu0 %489
        %v491 = vsel %vm386, %v487, -inf
        %492 = vmax.xlane.f32.xlu0 %v491
        %v493 = vpop.xlane.xlu0 %492
        %v494 = vsub.f32 %v486, %v490
        %v495 = vsub.f32 %v487, %v493
        %v496 = vmul.f32 %v494, 1.442695
        %v497 = vpow.pop %v496
        %v498 = vmul.f32 %v495, 1.442695
        %v499 = vpow.pop %v498
        %v500 = vsel %vm356, %v497, 0.0
        %v501 = vsel %vm357, %v499, 0.0
        %v502 = vsel %vm386, %v500, 0.0
        %503 = vadd.xlane.f32.xlu0 %v502
        %v504 = vpop.xlane.xlu0 %503
        %v505 = vsel %vm386, %v501, 0.0
        %506 = vadd.xlane.f32.xlu0 %v505
        %v507 = vpop.xlane.xlu0 %506
        %vm508 = vcmp.eq.f32.partialorder %v504, 0.0
        %vm509 = vcmp.eq.f32.partialorder %v507, 0.0
        %v510 = vsel %vm508, 1.0, %v504
        %v511 = vsel %vm509, 1.0, %v507
        %v512 = vrcp.pop %v510
        %v513 = vrcp.pop %v511
        %v514 = vmul.f32 %v500, %v512
        %v515 = vmul.f32 %v501, %v513
        %v516 = vmul.f32 %v514, %v354
        %v517 = vmul.f32 %v515, %v355
        %v518 = vsel %vm386, %v516, 0.0
        %519 = vadd.xlane.f32.xlu0 %v518
        %v520 = vpop.xlane.xlu0 %519
        %v521 = vsel %vm386, %v517, 0.0
        %522 = vadd.xlane.f32.xlu0 %v521
        %v523 = vpop.xlane.xlu0 %522
        %v524 = vmul.f32 %v520, %v382
        %v525 = vmul.f32 %v523, %v382
        %526 = vrot.lane.b32.xlu0 %v376, 96
        %v527 = vpop.permute.xlu0 %526
        %528 = vrot.lane.b32.xlu0 %v377, 96
        %v529 = vpop.permute.xlu0 %528
        %v533 = vsel %vm386, %v514, 0
        %v536 = vsel %vm386, %v515, 0
        %538 = vmatprep.subr.mxu0 0.0
        %539 = vmatpush1.msra.mxu0 %v527
        %540 = vmatprep.subr.mxu0 0.0
        %541 = vmatpush1.msra.mxu0 %v529
        %542 = vmatprep.subr.mxu0 0.0
        %543 = vmatpush1.msra.mxu0 0.0
        %544 = vmatprep.subr.mxu0 0.0
        %545 = vmatpush1.msra.mxu0 0.0
        %546 = vmatprep.subr.mxu0 0.0
        %547 = vmatpush1.msra.mxu0 0.0
        %548 = vmatprep.subr.mxu0 0.0
        %549 = vmatpush1.msra.mxu0 0.0
        %550 = vmatprep.subr.mxu0 0.0
        %551 = vmatpush1.msra.mxu0 0.0
        %552 = vmatprep.subr.mxu0 0.0
        %553 = vmatpush1.msra.mxu0 0.0
        %554 = vmatprep.subr.mxu0 0.0
        %555 = vmatpush1.msra.mxu0 0.0
        %556 = vmatprep.subr.mxu0 0.0
        %557 = vmatpush1.msra.mxu0 0.0
        %558 = vmatprep.subr.mxu0 0.0
        %559 = vmatpush1.msra.mxu0 0.0
        %560 = vmatprep.subr.mxu0 0.0
        %561 = vmatpush1.msra.mxu0 0.0
        %562 = vmatprep.subr.mxu0 0.0
        %563 = vmatpush1.msra.mxu0 0.0
        %564 = vmatprep.subr.mxu0 0.0
        %565 = vmatpush1.msra.mxu0 0.0
        %566 = vmatprep.subr.mxu0 0.0
        %567 = vmatpush1.msra.mxu0 0.0
        %568 = vmatprep.subr.mxu0 0.0
        %569 = vmatpush1.msra.mxu0 0.0
        %570 = vmatprep.subr.mxu0 0.0
        %571 = vmatpush1.msra.mxu0 0.0
        %572 = vmatprep.subr.mxu0 0.0
        %573 = vmatpush1.msra.mxu0 0.0
        %574 = vmatprep.subr.mxu0 0.0
        %575 = vmatpush1.msra.mxu0 0.0
        %576 = vmatprep.subr.mxu0 0.0
        %577 = vmatpush1.msra.mxu0 0.0
        %578 = vmatprep.subr.mxu0 0.0
        %579 = vmatpush1.msra.mxu0 0.0
        %580 = vmatprep.subr.mxu0 0.0
        %581 = vmatpush1.msra.mxu0 0.0
        %582 = vmatprep.subr.mxu0 0.0
        %583 = vmatpush1.msra.mxu0 0.0
        %584 = vmatprep.subr.mxu0 0.0
        %585 = vmatpush1.msra.mxu0 0.0
        %586 = vmatprep.subr.mxu0 0.0
        %587 = vmatpush1.msra.mxu0 0.0
        %588 = vmatprep.subr.mxu0 0.0
        %589 = vmatpush1.msra.mxu0 0.0
        %590 = vmatprep.subr.mxu0 0.0
        %591 = vmatpush1.msra.mxu0 0.0
        %592 = vmatprep.subr.mxu0 0.0
        %593 = vmatpush1.msra.mxu0 0.0
        %594 = vmatprep.subr.mxu0 0.0
        %595 = vmatpush1.msra.mxu0 0.0
        %596 = vmatprep.subr.mxu0 0.0
        %597 = vmatpush1.msra.mxu0 0.0
        %598 = vmatprep.subr.mxu0 0.0
        %599 = vmatpush1.msra.mxu0 0.0
        %600 = vmatprep.subr.mxu0 0.0
        %601 = vmatpush1.msra.mxu0 0.0
        %602 = vmatprep.mubr.f32.mxu0 0.0
        %603 = vmatmul.mubr.f32.gmra.mrb[0].mxu0 %v533
        %v604 = vpop.f32.mrb[0].mxu0
        %v605 = vadd.f32 %v524, %v604
        %v606 = vpop.f32.mrb[0].mxu0
        %607 = vmatprep.mubr.f32.mxu0 0.0
        %608 = vmatmul.mubr.f32.gmra.mrb[0].mxu0 %v536
        %v609 = vpop.f32.mrb[0].mxu0
        %v610 = vadd.f32 %v525, %v609
        %v611 = vpop.f32.mrb[0].mxu0
        %612 = vdwg.mxu0
        %613 = vrot.lane.b32.xlu0 %v376, 80
        %v614 = vpop.permute.xlu0 %613
        %615 = vrot.lane.b32.xlu0 %v377, 80
        %v616 = vpop.permute.xlu0 %615
        %v619 = vadd.f32 %v605, %v614
        %v620 = vadd.f32 %v610, %v616
        %v621 = vsel %vm386, %v619, 0.0
        %622 = vadd.xlane.f32.xlu0 %v621
        %v623 = vpop.xlane.xlu0 %622
        %v624 = vsel %vm386, %v620, 0.0
        %625 = vadd.xlane.f32.xlu0 %v624
        %v626 = vpop.xlane.xlu0 %625
        %v627 = vrcp.pop 16.0
        %v628 = vmul.f32 %v623, %v627
        %v629 = vmul.f32 %v626, %v627
        %v630 = vsub.f32 %v619, %v628
        %v631 = vsub.f32 %v620, %v629
        %v632 = vmul.f32 %v630, %v630
        %v633 = vmul.f32 %v631, %v631
        %v634 = vsel %vm386, %v632, 0.0
        %635 = vadd.xlane.f32.xlu0 %v634
        %v636 = vpop.xlane.xlu0 %635
        %v637 = vsel %vm386, %v633, 0.0
        %638 = vadd.xlane.f32.xlu0 %v637
        %v639 = vpop.xlane.xlu0 %638
        %v640 = vmul.f32 %v636, %v627
        %v641 = vmul.f32 %v639, %v627
        %v642 = vadd.f32 %v640, 1e-05
        %v643 = vadd.f32 %v641, 1e-05
        %v644 = vrsqrt.pop %v642
        %v645 = vrsqrt.pop %v643
        %v646 = vmul.f32 %v630, %v644
        %v647 = vmul.f32 %v631, %v645
        %v648 = vmax.f32 %v646, 0.0
        %v649 = vmax.f32 %v647, 0.0
        %v650 = vld [vmem:[%s4] sm:$0xff]
        %v651 = vld [vmem:[%s4 + $0x8] sm:$0xff]
        %v652 = vld [vmem:[%s5] sm:$0x1]
        %v654 = vsel %vm386, %v648, 0
        %v657 = vsel %vm386, %v649, 0
        %659 = vmatprep.subr.mxu0 0.0
        %660 = vmatpush1.msra.mxu0 %v650
        %661 = vmatprep.subr.mxu0 0.0
        %662 = vmatpush1.msra.mxu0 %v651
        %663 = vmatprep.subr.mxu0 0.0
        %664 = vmatpush1.msra.mxu0 0.0
        %665 = vmatprep.subr.mxu0 0.0
        %666 = vmatpush1.msra.mxu0 0.0
        %667 = vmatprep.subr.mxu0 0.0
        %668 = vmatpush1.msra.mxu0 0.0
        %669 = vmatprep.subr.mxu0 0.0
        %670 = vmatpush1.msra.mxu0 0.0
        %671 = vmatprep.subr.mxu0 0.0
        %672 = vmatpush1.msra.mxu0 0.0
        %673 = vmatprep.subr.mxu0 0.0
        %674 = vmatpush1.msra.mxu0 0.0
        %675 = vmatprep.subr.mxu0 0.0
        %676 = vmatpush1.msra.mxu0 0.0
        %677 = vmatprep.subr.mxu0 0.0
        %678 = vmatpush1.msra.mxu0 0.0
        %679 = vmatprep.subr.mxu0 0.0
        %680 = vmatpush1.msra.mxu0 0.0
        %681 = vmatprep.subr.mxu0 0.0
        %682 = vmatpush1.msra.mxu0 0.0
        %683 = vmatprep.subr.mxu0 0.0
        %684 = vmatpush1.msra.mxu0 0.0
        %685 = vmatprep.subr.mxu0 0.0
        %686 = vmatpush1.msra.mxu0 0.0
        %687 = vmatprep.subr.mxu0 0.0
        %688 = vmatpush1.msra.mxu0 0.0
        %689 = vmatprep.subr.mxu0 0.0
        %690 = vmatpush1.msra.mxu0 0.0
        %691 = vmatprep.subr.mxu0 0.0
        %692 = vmatpush1.msra.mxu0 0.0
        %693 = vmatprep.subr.mxu0 0.0
        %694 = vmatpush1.msra.mxu0 0.0
        %695 = vmatprep.subr.mxu0 0.0
        %696 = vmatpush1.msra.mxu0 0.0
        %697 = vmatprep.subr.mxu0 0.0
        %698 = vmatpush1.msra.mxu0 0.0
        %699 = vmatprep.subr.mxu0 0.0
        %700 = vmatpush1.msra.mxu0 0.0
        %701 = vmatprep.subr.mxu0 0.0
        %702 = vmatpush1.msra.mxu0 0.0
        %703 = vmatprep.subr.mxu0 0.0
        %704 = vmatpush1.msra.mxu0 0.0
        %705 = vmatprep.subr.mxu0 0.0
        %706 = vmatpush1.msra.mxu0 0.0
        %707 = vmatprep.subr.mxu0 0.0
        %708 = vmatpush1.msra.mxu0 0.0
        %709 = vmatprep.subr.mxu0 0.0
        %710 = vmatpush1.msra.mxu0 0.0
        %711 = vmatprep.subr.mxu0 0.0
        %712 = vmatpush1.msra.mxu0 0.0
        %713 = vmatprep.subr.mxu0 0.0
        %714 = vmatpush1.msra.mxu0 0.0
        %715 = vmatprep.subr.mxu0 0.0
        %716 = vmatpush1.msra.mxu0 0.0
        %717 = vmatprep.subr.mxu0 0.0
        %718 = vmatpush1.msra.mxu0 0.0
        %719 = vmatprep.subr.mxu0 0.0
        %720 = vmatpush1.msra.mxu0 0.0
        %721 = vmatprep.subr.mxu0 0.0
        %722 = vmatpush1.msra.mxu0 0.0
        %723 = vmatprep.mubr.f32.mxu0 0.0
        %724 = vmatmul.mubr.f32.gmra.mrb[0].mxu0 %v654
        %v725 = vpop.f32.mrb[0].mxu0
        %v726 = vadd.f32 0.0, %v725
        %v727 = vpop.f32.mrb[0].mxu0
        %728 = vmatprep.mubr.f32.mxu0 0.0
        %729 = vmatmul.mubr.f32.gmra.mrb[0].mxu0 %v657
        %v730 = vpop.f32.mrb[0].mxu0
        %v731 = vadd.f32 0.0, %v730
        %v732 = vpop.f32.mrb[0].mxu0
        %733 = vdwg.mxu0
        %v735 = vlaneseq
        %v736 = vshrl.u32 %v735, 7
        %v737 = vsub.s32 0, %v736
        %v738 = vrot.slane %v652, %v737
        %v740 = vmul.f32 %v726, %v738
        %v741 = vmul.f32 %v731, %v738
        %v742 = vsel %vm386, %v740, 0.0
        %743 = vadd.xlane.f32.xlu0 %v742
        %v744 = vpop.xlane.xlu0 %743
        %v745 = vsel %vm386, %v741, 0.0
        %746 = vadd.xlane.f32.xlu0 %v745
        %v747 = vpop.xlane.xlu0 %746
        %v748 = vmul.f32 %v354, %v744
        %v749 = vmul.f32 %v355, %v747
        %752 = vrot.lane.b32.xlu0 %v726, 112
        %v753 = vpop.permute.xlu0 %752
        %754 = vrot.lane.b32.xlu0 %v731, 112
        %v755 = vpop.permute.xlu0 %754
        %v756 = vsel %vm386, %v726, 0
        %v758 = vsel %vm386, %v731, 0
        %v760 = vsel %vm386, %v753, 0
        %v762 = vsel %vm386, %v755, 0
        %764 = vmatprep.subr.mxu0 0.0
        %765 = vmatpush1.xpose.msra.mxu0 %v760
        %766 = vmatprep.subr.mxu0 0.0
        %767 = vmatpush1.xpose.msra.mxu0 %v762
        %768 = vmatprep.subr.mxu0 0.0
        %769 = vmatpush1.xpose.msra.mxu0 0.0
        %770 = vmatprep.subr.mxu0 0.0
        %771 = vmatpush1.xpose.msra.mxu0 0.0
        %772 = vmatprep.subr.mxu0 0.0
        %773 = vmatpush1.xpose.msra.mxu0 0.0
        %774 = vmatprep.subr.mxu0 0.0
        %775 = vmatpush1.xpose.msra.mxu0 0.0
        %776 = vmatprep.subr.mxu0 0.0
        %777 = vmatpush1.xpose.msra.mxu0 0.0
        %778 = vmatprep.subr.mxu0 0.0
        %779 = vmatpush1.xpose.msra.mxu0 0.0
        %780 = vmatprep.subr.mxu0 0.0
        %781 = vmatpush1.xpose.msra.mxu0 0.0
        %782 = vmatprep.subr.mxu0 0.0
        %783 = vmatpush1.xpose.msra.mxu0 0.0
        %784 = vmatprep.subr.mxu0 0.0
        %785 = vmatpush1.xpose.msra.mxu0 0.0
        %786 = vmatprep.subr.mxu0 0.0
        %787 = vmatpush1.xpose.msra.mxu0 0.0
        %788 = vmatprep.subr.mxu0 0.0
        %789 = vmatpush1.xpose.msra.mxu0 0.0
        %790 = vmatprep.subr.mxu0 0.0
        %791 = vmatpush1.xpose.msra.mxu0 0.0
        %792 = vmatprep.subr.mxu0 0.0
        %793 = vmatpush1.xpose.msra.mxu0 0.0
        %794 = vmatprep.subr.mxu0 0.0
        %795 = vmatpush1.xpose.msra.mxu0 0.0
        %796 = vmatprep.subr.mxu0 0.0
        %797 = vmatpush1.xpose.msra.mxu0 0.0
        %798 = vmatprep.subr.mxu0 0.0
        %799 = vmatpush1.xpose.msra.mxu0 0.0
        %800 = vmatprep.subr.mxu0 0.0
        %801 = vmatpush1.xpose.msra.mxu0 0.0
        %802 = vmatprep.subr.mxu0 0.0
        %803 = vmatpush1.xpose.msra.mxu0 0.0
        %804 = vmatprep.subr.mxu0 0.0
        %805 = vmatpush1.xpose.msra.mxu0 0.0
        %806 = vmatprep.subr.mxu0 0.0
        %807 = vmatpush1.xpose.msra.mxu0 0.0
        %808 = vmatprep.subr.mxu0 0.0
        %809 = vmatpush1.xpose.msra.mxu0 0.0
        %810 = vmatprep.subr.mxu0 0.0
        %811 = vmatpush1.xpose.msra.mxu0 0.0
        %812 = vmatprep.subr.mxu0 0.0
        %813 = vmatpush1.xpose.msra.mxu0 0.0
        %814 = vmatprep.subr.mxu0 0.0
        %815 = vmatpush1.xpose.msra.mxu0 0.0
        %816 = vmatprep.subr.mxu0 0.0
        %817 = vmatpush1.xpose.msra.mxu0 0.0
        %818 = vmatprep.subr.mxu0 0.0
        %819 = vmatpush1.xpose.msra.mxu0 0.0
        %820 = vmatprep.subr.mxu0 0.0
        %821 = vmatpush1.xpose.msra.mxu0 0.0
        %822 = vmatprep.subr.mxu0 0.0
        %823 = vmatpush1.xpose.msra.mxu0 0.0
        %824 = vmatprep.subr.mxu0 0.0
        %825 = vmatpush1.xpose.msra.mxu0 0.0
        %826 = vmatprep.subr.mxu0 0.0
        %827 = vmatpush1.xpose.msra.mxu0 0.0
        %828 = vmatprep.mubr.f32.mxu0 0.0
        %829 = vmatmul.mubr.f32.gmra.mrb[0].mxu0 %v756
        %v830 = vpop.f32.mrb[0].mxu0
        %v831 = vadd.f32 %v748, %v830
        %v832 = vpop.f32.mrb[0].mxu0
        %833 = vmatprep.mubr.f32.mxu0 0.0
        %834 = vmatmul.mubr.f32.gmra.mrb[0].mxu0 %v758
        %v835 = vpop.f32.mrb[0].mxu0
        %v836 = vadd.f32 %v749, %v835
        %v837 = vpop.f32.mrb[0].mxu0
        %838 = vdwg.mxu0
        %v839 = vmul.f32 %v831, 0.25
        %v840 = vmul.f32 %v836, 0.25
        %v841 = vsel %vm356, %v839, -1e+30
        %v842 = vsel %vm357, %v840, -1e+30
        %v843 = vsel %vm386, %v841, -inf
        %844 = vmax.xlane.f32.xlu0 %v843
        %v845 = vpop.xlane.xlu0 %844
        %v846 = vsel %vm386, %v842, -inf
        %847 = vmax.xlane.f32.xlu0 %v846
        %v848 = vpop.xlane.xlu0 %847
        %v849 = vsub.f32 %v841, %v845
        %v850 = vsub.f32 %v842, %v848
        %v851 = vmul.f32 %v849, 1.442695
        %v852 = vpow.pop %v851
        %v853 = vmul.f32 %v850, 1.442695
        %v854 = vpow.pop %v853
        %v855 = vsel %vm356, %v852, 0.0
        %v856 = vsel %vm357, %v854, 0.0
        %v857 = vsel %vm386, %v855, 0.0
        %858 = vadd.xlane.f32.xlu0 %v857
        %v859 = vpop.xlane.xlu0 %858
        %v860 = vsel %vm386, %v856, 0.0
        %861 = vadd.xlane.f32.xlu0 %v860
        %v862 = vpop.xlane.xlu0 %861
        %vm863 = vcmp.eq.f32.partialorder %v859, 0.0
        %vm864 = vcmp.eq.f32.partialorder %v862, 0.0
        %v865 = vsel %vm863, 1.0, %v859
        %v866 = vsel %vm864, 1.0, %v862
        %v867 = vrcp.pop %v865
        %v868 = vrcp.pop %v866
        %v869 = vmul.f32 %v855, %v867
        %v870 = vmul.f32 %v856, %v868
        %v871 = vmul.f32 %v869, %v354
        %v872 = vmul.f32 %v870, %v355
        %v873 = vsel %vm386, %v871, 0.0
        %874 = vadd.xlane.f32.xlu0 %v873
        %v875 = vpop.xlane.xlu0 %874
        %v876 = vsel %vm386, %v872, 0.0
        %877 = vadd.xlane.f32.xlu0 %v876
        %v878 = vpop.xlane.xlu0 %877
        %v879 = vmul.f32 %v875, %v738
        %v880 = vmul.f32 %v878, %v738
        %881 = vrot.lane.b32.xlu0 %v726, 96
        %v882 = vpop.permute.xlu0 %881
        %883 = vrot.lane.b32.xlu0 %v731, 96
        %v884 = vpop.permute.xlu0 %883
        %v888 = vsel %vm386, %v869, 0
        %v891 = vsel %vm386, %v870, 0
        %893 = vmatprep.subr.mxu0 0.0
        %894 = vmatpush1.msra.mxu0 %v882
        %895 = vmatprep.subr.mxu0 0.0
        %896 = vmatpush1.msra.mxu0 %v884
        %897 = vmatprep.subr.mxu0 0.0
        %898 = vmatpush1.msra.mxu0 0.0
        %899 = vmatprep.subr.mxu0 0.0
        %900 = vmatpush1.msra.mxu0 0.0
        %901 = vmatprep.subr.mxu0 0.0
        %902 = vmatpush1.msra.mxu0 0.0
        %903 = vmatprep.subr.mxu0 0.0
        %904 = vmatpush1.msra.mxu0 0.0
        %905 = vmatprep.subr.mxu0 0.0
        %906 = vmatpush1.msra.mxu0 0.0
        %907 = vmatprep.subr.mxu0 0.0
        %908 = vmatpush1.msra.mxu0 0.0
        %909 = vmatprep.subr.mxu0 0.0
        %910 = vmatpush1.msra.mxu0 0.0
        %911 = vmatprep.subr.mxu0 0.0
        %912 = vmatpush1.msra.mxu0 0.0
        %913 = vmatprep.subr.mxu0 0.0
        %914 = vmatpush1.msra.mxu0 0.0
        %915 = vmatprep.subr.mxu0 0.0
        %916 = vmatpush1.msra.mxu0 0.0
        %917 = vmatprep.subr.mxu0 0.0
        %918 = vmatpush1.msra.mxu0 0.0
        %919 = vmatprep.subr.mxu0 0.0
        %920 = vmatpush1.msra.mxu0 0.0
        %921 = vmatprep.subr.mxu0 0.0
        %922 = vmatpush1.msra.mxu0 0.0
        %923 = vmatprep.subr.mxu0 0.0
        %924 = vmatpush1.msra.mxu0 0.0
        %925 = vmatprep.subr.mxu0 0.0
        %926 = vmatpush1.msra.mxu0 0.0
        %927 = vmatprep.subr.mxu0 0.0
        %928 = vmatpush1.msra.mxu0 0.0
        %929 = vmatprep.subr.mxu0 0.0
        %930 = vmatpush1.msra.mxu0 0.0
        %931 = vmatprep.subr.mxu0 0.0
        %932 = vmatpush1.msra.mxu0 0.0
        %933 = vmatprep.subr.mxu0 0.0
        %934 = vmatpush1.msra.mxu0 0.0
        %935 = vmatprep.subr.mxu0 0.0
        %936 = vmatpush1.msra.mxu0 0.0
        %937 = vmatprep.subr.mxu0 0.0
        %938 = vmatpush1.msra.mxu0 0.0
        %939 = vmatprep.subr.mxu0 0.0
        %940 = vmatpush1.msra.mxu0 0.0
        %941 = vmatprep.subr.mxu0 0.0
        %942 = vmatpush1.msra.mxu0 0.0
        %943 = vmatprep.subr.mxu0 0.0
        %944 = vmatpush1.msra.mxu0 0.0
        %945 = vmatprep.subr.mxu0 0.0
        %946 = vmatpush1.msra.mxu0 0.0
        %947 = vmatprep.subr.mxu0 0.0
        %948 = vmatpush1.msra.mxu0 0.0
        %949 = vmatprep.subr.mxu0 0.0
        %950 = vmatpush1.msra.mxu0 0.0
        %951 = vmatprep.subr.mxu0 0.0
        %952 = vmatpush1.msra.mxu0 0.0
        %953 = vmatprep.subr.mxu0 0.0
        %954 = vmatpush1.msra.mxu0 0.0
        %955 = vmatprep.subr.mxu0 0.0
        %956 = vmatpush1.msra.mxu0 0.0
        %957 = vmatprep.mubr.f32.mxu0 0.0
        %958 = vmatmul.mubr.f32.gmra.mrb[0].mxu0 %v888
        %v959 = vpop.f32.mrb[0].mxu0
        %v960 = vadd.f32 %v879, %v959
        %v961 = vpop.f32.mrb[0].mxu0
        %962 = vmatprep.mubr.f32.mxu0 0.0
        %963 = vmatmul.mubr.f32.gmra.mrb[0].mxu0 %v891
        %v964 = vpop.f32.mrb[0].mxu0
        %v965 = vadd.f32 %v880, %v964
        %v966 = vpop.f32.mrb[0].mxu0
        %967 = vdwg.mxu0
        %968 = vrot.lane.b32.xlu0 %v726, 80
        %v969 = vpop.permute.xlu0 %968
        %970 = vrot.lane.b32.xlu0 %v731, 80
        %v971 = vpop.permute.xlu0 %970
        %v974 = vadd.f32 %v960, %v969
        %v975 = vadd.f32 %v965, %v971
        %v976 = vsel %vm386, %v974, 0.0
        %977 = vadd.xlane.f32.xlu0 %v976
        %v978 = vpop.xlane.xlu0 %977
        %v979 = vsel %vm386, %v975, 0.0
        %980 = vadd.xlane.f32.xlu0 %v979
        %v981 = vpop.xlane.xlu0 %980
        %v982 = vmul.f32 %v978, %v627
        %v983 = vmul.f32 %v981, %v627
        %v984 = vsub.f32 %v974, %v982
        %v985 = vsub.f32 %v975, %v983
        %v986 = vmul.f32 %v984, %v984
        %v987 = vmul.f32 %v985, %v985
        %v988 = vsel %vm386, %v986, 0.0
        %989 = vadd.xlane.f32.xlu0 %v988
        %v990 = vpop.xlane.xlu0 %989
        %v991 = vsel %vm386, %v987, 0.0
        %992 = vadd.xlane.f32.xlu0 %v991
        %v993 = vpop.xlane.xlu0 %992
        %v994 = vmul.f32 %v990, %v627
        %v995 = vmul.f32 %v993, %v627
        %v996 = vadd.f32 %v994, 1e-05
        %v997 = vadd.f32 %v995, 1e-05
        %v998 = vrsqrt.pop %v996
        %v999 = vrsqrt.pop %v997
        %v1000 = vmul.f32 %v984, %v998
        %v1001 = vmul.f32 %v985, %v999
        %v1002 = vmax.f32 %v1000, 0.0
        %v1003 = vmax.f32 %v1001, 0.0
        %v1004 = vld [vmem:[#allocation5] sm:$0xff]
        %v1005 = vld [vmem:[#allocation5 + $0x8] sm:$0xff]
        %v1006 = vld [vmem:[%s7] sm:$0x1]
        %v1008 = vsel %vm386, %v1002, 0
        %v1011 = vsel %vm386, %v1003, 0
        %1013 = vmatprep.subr.mxu0 0.0
        %1014 = vmatpush1.msra.mxu0 %v1004
        %1015 = vmatprep.subr.mxu0 0.0
        %1016 = vmatpush1.msra.mxu0 %v1005
        %1017 = vmatprep.subr.mxu0 0.0
        %1018 = vmatpush1.msra.mxu0 0.0
        %1019 = vmatprep.subr.mxu0 0.0
        %1020 = vmatpush1.msra.mxu0 0.0
        %1021 = vmatprep.subr.mxu0 0.0
        %1022 = vmatpush1.msra.mxu0 0.0
        %1023 = vmatprep.subr.mxu0 0.0
        %1024 = vmatpush1.msra.mxu0 0.0
        %1025 = vmatprep.subr.mxu0 0.0
        %1026 = vmatpush1.msra.mxu0 0.0
        %1027 = vmatprep.subr.mxu0 0.0
        %1028 = vmatpush1.msra.mxu0 0.0
        %1029 = vmatprep.subr.mxu0 0.0
        %1030 = vmatpush1.msra.mxu0 0.0
        %1031 = vmatprep.subr.mxu0 0.0
        %1032 = vmatpush1.msra.mxu0 0.0
        %1033 = vmatprep.subr.mxu0 0.0
        %1034 = vmatpush1.msra.mxu0 0.0
        %1035 = vmatprep.subr.mxu0 0.0
        %1036 = vmatpush1.msra.mxu0 0.0
        %1037 = vmatprep.subr.mxu0 0.0
        %1038 = vmatpush1.msra.mxu0 0.0
        %1039 = vmatprep.subr.mxu0 0.0
        %1040 = vmatpush1.msra.mxu0 0.0
        %1041 = vmatprep.subr.mxu0 0.0
        %1042 = vmatpush1.msra.mxu0 0.0
        %1043 = vmatprep.subr.mxu0 0.0
        %1044 = vmatpush1.msra.mxu0 0.0
        %1045 = vmatprep.subr.mxu0 0.0
        %1046 = vmatpush1.msra.mxu0 0.0
        %1047 = vmatprep.subr.mxu0 0.0
        %1048 = vmatpush1.msra.mxu0 0.0
        %1049 = vmatprep.subr.mxu0 0.0
        %1050 = vmatpush1.msra.mxu0 0.0
        %1051 = vmatprep.subr.mxu0 0.0
        %1052 = vmatpush1.msra.mxu0 0.0
        %1053 = vmatprep.subr.mxu0 0.0
        %1054 = vmatpush1.msra.mxu0 0.0
        %1055 = vmatprep.subr.mxu0 0.0
        %1056 = vmatpush1.msra.mxu0 0.0
        %1057 = vmatprep.subr.mxu0 0.0
        %1058 = vmatpush1.msra.mxu0 0.0
        %1059 = vmatprep.subr.mxu0 0.0
        %1060 = vmatpush1.msra.mxu0 0.0
        %1061 = vmatprep.subr.mxu0 0.0
        %1062 = vmatpush1.msra.mxu0 0.0
        %1063 = vmatprep.subr.mxu0 0.0
        %1064 = vmatpush1.msra.mxu0 0.0
        %1065 = vmatprep.subr.mxu0 0.0
        %1066 = vmatpush1.msra.mxu0 0.0
        %1067 = vmatprep.subr.mxu0 0.0
        %1068 = vmatpush1.msra.mxu0 0.0
        %1069 = vmatprep.subr.mxu0 0.0
        %1070 = vmatpush1.msra.mxu0 0.0
        %1071 = vmatprep.subr.mxu0 0.0
        %1072 = vmatpush1.msra.mxu0 0.0
        %1073 = vmatprep.subr.mxu0 0.0
        %1074 = vmatpush1.msra.mxu0 0.0
        %1075 = vmatprep.subr.mxu0 0.0
        %1076 = vmatpush1.msra.mxu0 0.0
        %1077 = vmatprep.mubr.f32.mxu0 0.0
        %1078 = vmatmul.mubr.f32.gmra.mrb[0].mxu0 %v1008
        %v1079 = vpop.f32.mrb[0].mxu0
        %v1080 = vadd.f32 0.0, %v1079
        %v1081 = vpop.f32.mrb[0].mxu0
        %1082 = vmatprep.mubr.f32.mxu0 0.0
        %1083 = vmatmul.mubr.f32.gmra.mrb[0].mxu0 %v1011
        %v1084 = vpop.f32.mrb[0].mxu0
        %v1085 = vadd.f32 0.0, %v1084
        %v1086 = vpop.f32.mrb[0].mxu0
        %1087 = vdwg.mxu0
        %1090 = vrot.lane.b32.xlu0 %v1080, 112
        %v1091 = vpop.permute.xlu0 %1090
        %1092 = vrot.lane.b32.xlu0 %v1085, 112
        %v1093 = vpop.permute.xlu0 %1092
        %1097 = vrot.lane.b32.xlu0 %v1006, 112
        %v1098 = vpop.permute.xlu0 %1097
        %v1099 = vlaneseq
        %v1100 = vshrl.u32 %v1099, 7
        %v1101 = vsub.s32 0, %v1100
        %v1102 = vrot.slane %v1006, %v1101
        %v1103 = vlaneseq
        %v1104 = vshrl.u32 %v1103, 7
        %v1105 = vsub.s32 0, %v1104
        %v1106 = vrot.slane %v1098, %v1105
        %v1109 = vmul.f32 %v1080, %v1102
        %v1110 = vmul.f32 %v1085, %v1102
        %v1111 = vmul.f32 %v1091, %v1106
        %v1112 = vmul.f32 %v1093, %v1106
        %v1113 = vsel %vm386, %v1109, 0.0
        %1114 = vadd.xlane.f32.xlu0 %v1113
        %v1115 = vpop.xlane.xlu0 %1114
        %v1116 = vsel %vm386, %v1110, 0.0
        %1117 = vadd.xlane.f32.xlu0 %v1116
        %v1118 = vpop.xlane.xlu0 %1117
        %v1119 = vsel %vm386, %v1111, 0.0
        %1120 = vadd.xlane.f32.xlu0 %v1119
        %v1121 = vpop.xlane.xlu0 %1120
        %v1122 = vsel %vm386, %v1112, 0.0
        %1123 = vadd.xlane.f32.xlu0 %v1122
        %v1124 = vpop.xlane.xlu0 %1123
        %v1125 = vmul.f32 %v354, %v1115
        %v1126 = vmul.f32 %v355, %v1118
        %v1127 = vmul.f32 %v354, %v1121
        %v1128 = vmul.f32 %v355, %v1124
        %1129 = vrot.lane.b32.xlu0 %v1080, 96
        %v1130 = vpop.permute.xlu0 %1129
        %1131 = vrot.lane.b32.xlu0 %v1085, 96
        %v1132 = vpop.permute.xlu0 %1131
        %v1133 = vsel %vm386, %v1080, 0
        %v1135 = vsel %vm386, %v1085, 0
        %v1137 = vsel %vm386, %v1130, 0
        %v1139 = vsel %vm386, %v1132, 0
        %1141 = vmatprep.subr.mxu0 0.0
        %1142 = vmatpush1.xpose.msra.mxu0 %v1137
        %1143 = vmatprep.subr.mxu0 0.0
        %1144 = vmatpush1.xpose.msra.mxu0 %v1139
        %1145 = vmatprep.subr.mxu0 0.0
        %1146 = vmatpush1.xpose.msra.mxu0 0.0
        %1147 = vmatprep.subr.mxu0 0.0
        %1148 = vmatpush1.xpose.msra.mxu0 0.0
        %1149 = vmatprep.subr.mxu0 0.0
        %1150 = vmatpush1.xpose.msra.mxu0 0.0
        %1151 = vmatprep.subr.mxu0 0.0
        %1152 = vmatpush1.xpose.msra.mxu0 0.0
        %1153 = vmatprep.subr.mxu0 0.0
        %1154 = vmatpush1.xpose.msra.mxu0 0.0
        %1155 = vmatprep.subr.mxu0 0.0
        %1156 = vmatpush1.xpose.msra.mxu0 0.0
        %1157 = vmatprep.subr.mxu0 0.0
        %1158 = vmatpush1.xpose.msra.mxu0 0.0
        %1159 = vmatprep.subr.mxu0 0.0
        %1160 = vmatpush1.xpose.msra.mxu0 0.0
        %1161 = vmatprep.subr.mxu0 0.0
        %1162 = vmatpush1.xpose.msra.mxu0 0.0
        %1163 = vmatprep.subr.mxu0 0.0
        %1164 = vmatpush1.xpose.msra.mxu0 0.0
        %1165 = vmatprep.subr.mxu0 0.0
        %1166 = vmatpush1.xpose.msra.mxu0 0.0
        %1167 = vmatprep.subr.mxu0 0.0
        %1168 = vmatpush1.xpose.msra.mxu0 0.0
        %1169 = vmatprep.subr.mxu0 0.0
        %1170 = vmatpush1.xpose.msra.mxu0 0.0
        %1171 = vmatprep.subr.mxu0 0.0
        %1172 = vmatpush1.xpose.msra.mxu0 0.0
        %1173 = vmatprep.subr.mxu0 0.0
        %1174 = vmatpush1.xpose.msra.mxu0 0.0
        %1175 = vmatprep.subr.mxu0 0.0
        %1176 = vmatpush1.xpose.msra.mxu0 0.0
        %1177 = vmatprep.subr.mxu0 0.0
        %1178 = vmatpush1.xpose.msra.mxu0 0.0
        %1179 = vmatprep.subr.mxu0 0.0
        %1180 = vmatpush1.xpose.msra.mxu0 0.0
        %1181 = vmatprep.subr.mxu0 0.0
        %1182 = vmatpush1.xpose.msra.mxu0 0.0
        %1183 = vmatprep.subr.mxu0 0.0
        %1184 = vmatpush1.xpose.msra.mxu0 0.0
        %1185 = vmatprep.subr.mxu0 0.0
        %1186 = vmatpush1.xpose.msra.mxu0 0.0
        %1187 = vmatprep.subr.mxu0 0.0
        %1188 = vmatpush1.xpose.msra.mxu0 0.0
        %1189 = vmatprep.subr.mxu0 0.0
        %1190 = vmatpush1.xpose.msra.mxu0 0.0
        %1191 = vmatprep.subr.mxu0 0.0
        %1192 = vmatpush1.xpose.msra.mxu0 0.0
        %1193 = vmatprep.subr.mxu0 0.0
        %1194 = vmatpush1.xpose.msra.mxu0 0.0
        %1195 = vmatprep.subr.mxu0 0.0
        %1196 = vmatpush1.xpose.msra.mxu0 0.0
        %1197 = vmatprep.subr.mxu0 0.0
        %1198 = vmatpush1.xpose.msra.mxu0 0.0
        %1199 = vmatprep.subr.mxu0 0.0
        %1200 = vmatpush1.xpose.msra.mxu0 0.0
        %1201 = vmatprep.subr.mxu0 0.0
        %1202 = vmatpush1.xpose.msra.mxu0 0.0
        %1203 = vmatprep.subr.mxu0 0.0
        %1204 = vmatpush1.xpose.msra.mxu0 0.0
        %1205 = vmatprep.mubr.f32.mxu0 0.0
        %1206 = vmatmul.mubr.f32.gmra.mrb[0].mxu0 %v1133
        %v1207 = vpop.f32.mrb[0].mxu0
        %v1208 = vadd.f32 %v1125, %v1207
        %v1209 = vpop.f32.mrb[0].mxu0
        %1210 = vmatprep.mubr.f32.mxu0 0.0
        %1211 = vmatmul.mubr.f32.gmra.mrb[0].mxu0 %v1135
        %v1212 = vpop.f32.mrb[0].mxu0
        %v1213 = vadd.f32 %v1126, %v1212
        %v1214 = vpop.f32.mrb[0].mxu0
        %1215 = vdwg.mxu0
        %1216 = vrot.lane.b32.xlu0 %v1091, 96
        %v1217 = vpop.permute.xlu0 %1216
        %1218 = vrot.lane.b32.xlu0 %v1093, 96
        %v1219 = vpop.permute.xlu0 %1218
        %v1220 = vsel %vm386, %v1091, 0
        %v1222 = vsel %vm386, %v1093, 0
        %v1224 = vsel %vm386, %v1217, 0
        %v1226 = vsel %vm386, %v1219, 0
        %1228 = vmatprep.subr.mxu0 0.0
        %1229 = vmatpush1.xpose.msra.mxu0 %v1224
        %1230 = vmatprep.subr.mxu0 0.0
        %1231 = vmatpush1.xpose.msra.mxu0 %v1226
        %1232 = vmatprep.subr.mxu0 0.0
        %1233 = vmatpush1.xpose.msra.mxu0 0.0
        %1234 = vmatprep.subr.mxu0 0.0
        %1235 = vmatpush1.xpose.msra.mxu0 0.0
        %1236 = vmatprep.subr.mxu0 0.0
        %1237 = vmatpush1.xpose.msra.mxu0 0.0
        %1238 = vmatprep.subr.mxu0 0.0
        %1239 = vmatpush1.xpose.msra.mxu0 0.0
        %1240 = vmatprep.subr.mxu0 0.0
        %1241 = vmatpush1.xpose.msra.mxu0 0.0
        %1242 = vmatprep.subr.mxu0 0.0
        %1243 = vmatpush1.xpose.msra.mxu0 0.0
        %1244 = vmatprep.subr.mxu0 0.0
        %1245 = vmatpush1.xpose.msra.mxu0 0.0
        %1246 = vmatprep.subr.mxu0 0.0
        %1247 = vmatpush1.xpose.msra.mxu0 0.0
        %1248 = vmatprep.subr.mxu0 0.0
        %1249 = vmatpush1.xpose.msra.mxu0 0.0
        %1250 = vmatprep.subr.mxu0 0.0
        %1251 = vmatpush1.xpose.msra.mxu0 0.0
        %1252 = vmatprep.subr.mxu0 0.0
        %1253 = vmatpush1.xpose.msra.mxu0 0.0
        %1254 = vmatprep.subr.mxu0 0.0
        %1255 = vmatpush1.xpose.msra.mxu0 0.0
        %1256 = vmatprep.subr.mxu0 0.0
        %1257 = vmatpush1.xpose.msra.mxu0 0.0
        %1258 = vmatprep.subr.mxu0 0.0
        %1259 = vmatpush1.xpose.msra.mxu0 0.0
        %1260 = vmatprep.subr.mxu0 0.0
        %1261 = vmatpush1.xpose.msra.mxu0 0.0
        %1262 = vmatprep.subr.mxu0 0.0
        %1263 = vmatpush1.xpose.msra.mxu0 0.0
        %1264 = vmatprep.subr.mxu0 0.0
        %1265 = vmatpush1.xpose.msra.mxu0 0.0
        %1266 = vmatprep.subr.mxu0 0.0
        %1267 = vmatpush1.xpose.msra.mxu0 0.0
        %1268 = vmatprep.subr.mxu0 0.0
        %1269 = vmatpush1.xpose.msra.mxu0 0.0
        %1270 = vmatprep.subr.mxu0 0.0
        %1271 = vmatpush1.xpose.msra.mxu0 0.0
        %1272 = vmatprep.subr.mxu0 0.0
        %1273 = vmatpush1.xpose.msra.mxu0 0.0
        %1274 = vmatprep.subr.mxu0 0.0
        %1275 = vmatpush1.xpose.msra.mxu0 0.0
        %1276 = vmatprep.subr.mxu0 0.0
        %1277 = vmatpush1.xpose.msra.mxu0 0.0
        %1278 = vmatprep.subr.mxu0 0.0
        %1279 = vmatpush1.xpose.msra.mxu0 0.0
        %1280 = vmatprep.subr.mxu0 0.0
        %1281 = vmatpush1.xpose.msra.mxu0 0.0
        %1282 = vmatprep.subr.mxu0 0.0
        %1283 = vmatpush1.xpose.msra.mxu0 0.0
        %1284 = vmatprep.subr.mxu0 0.0
        %1285 = vmatpush1.xpose.msra.mxu0 0.0
        %1286 = vmatprep.subr.mxu0 0.0
        %1287 = vmatpush1.xpose.msra.mxu0 0.0
        %1288 = vmatprep.subr.mxu0 0.0
        %1289 = vmatpush1.xpose.msra.mxu0 0.0
        %1290 = vmatprep.subr.mxu0 0.0
        %1291 = vmatpush1.xpose.msra.mxu0 0.0
        %1292 = vmatprep.mubr.f32.mxu0 0.0
        %1293 = vmatmul.mubr.f32.gmra.mrb[0].mxu0 %v1220
        %v1294 = vpop.f32.mrb[0].mxu0
        %v1295 = vadd.f32 %v1127, %v1294
        %v1296 = vpop.f32.mrb[0].mxu0
        %1297 = vmatprep.mubr.f32.mxu0 0.0
        %1298 = vmatmul.mubr.f32.gmra.mrb[0].mxu0 %v1222
        %v1299 = vpop.f32.mrb[0].mxu0
        %v1300 = vadd.f32 %v1128, %v1299
        %v1301 = vpop.f32.mrb[0].mxu0
        %1302 = vdwg.mxu0
        %v1303 = vmul.f32 %v1208, 0.25
        %v1304 = vmul.f32 %v1213, 0.25
        %v1305 = vmul.f32 %v1295, 0.25
        %v1306 = vmul.f32 %v1300, 0.25
        %v1307 = vsel %vm356, 1, 0
        %v1308 = vsel %vm357, 1, 0
        %vm1309 = vcmp.eq.s32.totalorder %v1307, 1
        %vm1310 = vcmp.eq.s32.totalorder %v1308, 1
        %v1311 = vsel %vm1309, %v1303, -1e+30
        %v1312 = vsel %vm1310, %v1304, -1e+30
        %v1313 = vsel %vm1309, %v1305, -1e+30
        %v1314 = vsel %vm1310, %v1306, -1e+30
        %v1315 = vsel %vm386, %v1311, -inf
        %1316 = vmax.xlane.f32.xlu0 %v1315
        %v1317 = vpop.xlane.xlu0 %1316
        %v1318 = vsel %vm386, %v1312, -inf
        %1319 = vmax.xlane.f32.xlu0 %v1318
        %v1320 = vpop.xlane.xlu0 %1319
        %v1321 = vsel %vm386, %v1313, -inf
        %1322 = vmax.xlane.f32.xlu0 %v1321
        %v1323 = vpop.xlane.xlu0 %1322
        %v1324 = vsel %vm386, %v1314, -inf
        %1325 = vmax.xlane.f32.xlu0 %v1324
        %v1326 = vpop.xlane.xlu0 %1325
        %v1327 = vsub.f32 %v1311, %v1317
        %v1328 = vsub.f32 %v1312, %v1320
        %v1329 = vsub.f32 %v1313, %v1323
        %v1330 = vsub.f32 %v1314, %v1326
        %v1331 = vmul.f32 %v1327, 1.442695
        %v1332 = vpow.pop %v1331
        %v1333 = vmul.f32 %v1328, 1.442695
        %v1334 = vpow.pop %v1333
        %v1335 = vmul.f32 %v1329, 1.442695
        %v1336 = vpow.pop %v1335
        %v1337 = vmul.f32 %v1330, 1.442695
        %v1338 = vpow.pop %v1337
        %v1339 = vsel %vm1309, %v1332, 0.0
        %v1340 = vsel %vm1310, %v1334, 0.0
        %v1341 = vsel %vm1309, %v1336, 0.0
        %v1342 = vsel %vm1310, %v1338, 0.0
        %v1343 = vsel %vm386, %v1339, 0.0
        %1344 = vadd.xlane.f32.xlu0 %v1343
        %v1345 = vpop.xlane.xlu0 %1344
        %v1346 = vsel %vm386, %v1340, 0.0
        %1347 = vadd.xlane.f32.xlu0 %v1346
        %v1348 = vpop.xlane.xlu0 %1347
        %v1349 = vsel %vm386, %v1341, 0.0
        %1350 = vadd.xlane.f32.xlu0 %v1349
        %v1351 = vpop.xlane.xlu0 %1350
        %v1352 = vsel %vm386, %v1342, 0.0
        %1353 = vadd.xlane.f32.xlu0 %v1352
        %v1354 = vpop.xlane.xlu0 %1353
        %vm1355 = vcmp.eq.f32.partialorder %v1345, 0.0
        %vm1356 = vcmp.eq.f32.partialorder %v1348, 0.0
        %vm1357 = vcmp.eq.f32.partialorder %v1351, 0.0
        %vm1358 = vcmp.eq.f32.partialorder %v1354, 0.0
        %v1359 = vsel %vm1355, 1.0, %v1345
        %v1360 = vsel %vm1356, 1.0, %v1348
        %v1361 = vsel %vm1357, 1.0, %v1351
        %v1362 = vsel %vm1358, 1.0, %v1354
        %v1363 = vrcp.pop %v1359
        %v1364 = vrcp.pop %v1360
        %v1365 = vrcp.pop %v1361
        %v1366 = vrcp.pop %v1362
        %v1367 = vmul.f32 %v1339, %v1363
        %v1368 = vmul.f32 %v1340, %v1364
        %v1369 = vmul.f32 %v1341, %v1365
        %v1370 = vmul.f32 %v1342, %v1366
        %v1371 = vmul.f32 %v1367, %v354
        %v1372 = vmul.f32 %v1368, %v355
        %v1373 = vmul.f32 %v1369, %v354
        %v1374 = vmul.f32 %v1370, %v355
        %v1375 = vsel %vm386, %v1371, 0.0
        %1376 = vadd.xlane.f32.xlu0 %v1375
        %v1377 = vpop.xlane.xlu0 %1376
        %v1378 = vsel %vm386, %v1372, 0.0
        %1379 = vadd.xlane.f32.xlu0 %v1378
        %v1380 = vpop.xlane.xlu0 %1379
        %v1381 = vsel %vm386, %v1373, 0.0
        %1382 = vadd.xlane.f32.xlu0 %v1381
        %v1383 = vpop.xlane.xlu0 %1382
        %v1384 = vsel %vm386, %v1374, 0.0
        %1385 = vadd.xlane.f32.xlu0 %v1384
        %v1386 = vpop.xlane.xlu0 %1385
        %v1387 = vmul.f32 %v1377, %v1102
        %v1388 = vmul.f32 %v1380, %v1102
        %v1389 = vmul.f32 %v1383, %v1106
        %v1390 = vmul.f32 %v1386, %v1106
        %1391 = vrot.lane.b32.xlu0 %v1080, 64
        %v1392 = vpop.permute.xlu0 %1391
        %1393 = vrot.lane.b32.xlu0 %v1085, 64
        %v1394 = vpop.permute.xlu0 %1393
        %v1398 = vsel %vm386, %v1367, 0
        %v1401 = vsel %vm386, %v1368, 0
        %1403 = vmatprep.subr.mxu0 0.0
        %1404 = vmatpush1.msra.mxu0 %v1392
        %1405 = vmatprep.subr.mxu0 0.0
        %1406 = vmatpush1.msra.mxu0 %v1394
        %1407 = vmatprep.subr.mxu0 0.0
        %1408 = vmatpush1.msra.mxu0 0.0
        %1409 = vmatprep.subr.mxu0 0.0
        %1410 = vmatpush1.msra.mxu0 0.0
        %1411 = vmatprep.subr.mxu0 0.0
        %1412 = vmatpush1.msra.mxu0 0.0
        %1413 = vmatprep.subr.mxu0 0.0
        %1414 = vmatpush1.msra.mxu0 0.0
        %1415 = vmatprep.subr.mxu0 0.0
        %1416 = vmatpush1.msra.mxu0 0.0
        %1417 = vmatprep.subr.mxu0 0.0
        %1418 = vmatpush1.msra.mxu0 0.0
        %1419 = vmatprep.subr.mxu0 0.0
        %1420 = vmatpush1.msra.mxu0 0.0
        %1421 = vmatprep.subr.mxu0 0.0
        %1422 = vmatpush1.msra.mxu0 0.0
        %1423 = vmatprep.subr.mxu0 0.0
        %1424 = vmatpush1.msra.mxu0 0.0
        %1425 = vmatprep.subr.mxu0 0.0
        %1426 = vmatpush1.msra.mxu0 0.0
        %1427 = vmatprep.subr.mxu0 0.0
        %1428 = vmatpush1.msra.mxu0 0.0
        %1429 = vmatprep.subr.mxu0 0.0
        %1430 = vmatpush1.msra.mxu0 0.0
        %1431 = vmatprep.subr.mxu0 0.0
        %1432 = vmatpush1.msra.mxu0 0.0
        %1433 = vmatprep.subr.mxu0 0.0
        %1434 = vmatpush1.msra.mxu0 0.0
        %1435 = vmatprep.subr.mxu0 0.0
        %1436 = vmatpush1.msra.mxu0 0.0
        %1437 = vmatprep.subr.mxu0 0.0
        %1438 = vmatpush1.msra.mxu0 0.0
        %1439 = vmatprep.subr.mxu0 0.0
        %1440 = vmatpush1.msra.mxu0 0.0
        %1441 = vmatprep.subr.mxu0 0.0
        %1442 = vmatpush1.msra.mxu0 0.0
        %1443 = vmatprep.subr.mxu0 0.0
        %1444 = vmatpush1.msra.mxu0 0.0
        %1445 = vmatprep.subr.mxu0 0.0
        %1446 = vmatpush1.msra.mxu0 0.0
        %1447 = vmatprep.subr.mxu0 0.0
        %1448 = vmatpush1.msra.mxu0 0.0
        %1449 = vmatprep.subr.mxu0 0.0
        %1450 = vmatpush1.msra.mxu0 0.0
        %1451 = vmatprep.subr.mxu0 0.0
        %1452 = vmatpush1.msra.mxu0 0.0
        %1453 = vmatprep.subr.mxu0 0.0
        %1454 = vmatpush1.msra.mxu0 0.0
        %1455 = vmatprep.subr.mxu0 0.0
        %1456 = vmatpush1.msra.mxu0 0.0
        %1457 = vmatprep.subr.mxu0 0.0
        %1458 = vmatpush1.msra.mxu0 0.0
        %1459 = vmatprep.subr.mxu0 0.0
        %1460 = vmatpush1.msra.mxu0 0.0
        %1461 = vmatprep.subr.mxu0 0.0
        %1462 = vmatpush1.msra.mxu0 0.0
        %1463 = vmatprep.subr.mxu0 0.0
        %1464 = vmatpush1.msra.mxu0 0.0
        %1465 = vmatprep.subr.mxu0 0.0
        %1466 = vmatpush1.msra.mxu0 0.0
        %1467 = vmatprep.mubr.f32.mxu0 0.0
        %1468 = vmatmul.mubr.f32.gmra.mrb[0].mxu0 %v1398
        %v1469 = vpop.f32.mrb[0].mxu0
        %v1470 = vadd.f32 %v1387, %v1469
        %v1471 = vpop.f32.mrb[0].mxu0
        %1472 = vmatprep.mubr.f32.mxu0 0.0
        %1473 = vmatmul.mubr.f32.gmra.mrb[0].mxu0 %v1401
        %v1474 = vpop.f32.mrb[0].mxu0
        %v1475 = vadd.f32 %v1388, %v1474
        %v1476 = vpop.f32.mrb[0].mxu0
        %1477 = vdwg.mxu0
        %1478 = vrot.lane.b32.xlu0 %v1091, 64
        %v1479 = vpop.permute.xlu0 %1478
        %1480 = vrot.lane.b32.xlu0 %v1093, 64
        %v1481 = vpop.permute.xlu0 %1480
        %v1485 = vsel %vm386, %v1369, 0
        %v1488 = vsel %vm386, %v1370, 0
        %1490 = vmatprep.subr.mxu0 0.0
        %1491 = vmatpush1.msra.mxu0 %v1479
        %1492 = vmatprep.subr.mxu0 0.0
        %1493 = vmatpush1.msra.mxu0 %v1481
        %1494 = vmatprep.subr.mxu0 0.0
        %1495 = vmatpush1.msra.mxu0 0.0
        %1496 = vmatprep.subr.mxu0 0.0
        %1497 = vmatpush1.msra.mxu0 0.0
        %1498 = vmatprep.subr.mxu0 0.0
        %1499 = vmatpush1.msra.mxu0 0.0
        %1500 = vmatprep.subr.mxu0 0.0
        %1501 = vmatpush1.msra.mxu0 0.0
        %1502 = vmatprep.subr.mxu0 0.0
        %1503 = vmatpush1.msra.mxu0 0.0
        %1504 = vmatprep.subr.mxu0 0.0
        %1505 = vmatpush1.msra.mxu0 0.0
        %1506 = vmatprep.subr.mxu0 0.0
        %1507 = vmatpush1.msra.mxu0 0.0
        %1508 = vmatprep.subr.mxu0 0.0
        %1509 = vmatpush1.msra.mxu0 0.0
        %1510 = vmatprep.subr.mxu0 0.0
        %1511 = vmatpush1.msra.mxu0 0.0
        %1512 = vmatprep.subr.mxu0 0.0
        %1513 = vmatpush1.msra.mxu0 0.0
        %1514 = vmatprep.subr.mxu0 0.0
        %1515 = vmatpush1.msra.mxu0 0.0
        %1516 = vmatprep.subr.mxu0 0.0
        %1517 = vmatpush1.msra.mxu0 0.0
        %1518 = vmatprep.subr.mxu0 0.0
        %1519 = vmatpush1.msra.mxu0 0.0
        %1520 = vmatprep.subr.mxu0 0.0
        %1521 = vmatpush1.msra.mxu0 0.0
        %1522 = vmatprep.subr.mxu0 0.0
        %1523 = vmatpush1.msra.mxu0 0.0
        %1524 = vmatprep.subr.mxu0 0.0
        %1525 = vmatpush1.msra.mxu0 0.0
        %1526 = vmatprep.subr.mxu0 0.0
        %1527 = vmatpush1.msra.mxu0 0.0
        %1528 = vmatprep.subr.mxu0 0.0
        %1529 = vmatpush1.msra.mxu0 0.0
        %1530 = vmatprep.subr.mxu0 0.0
        %1531 = vmatpush1.msra.mxu0 0.0
        %1532 = vmatprep.subr.mxu0 0.0
        %1533 = vmatpush1.msra.mxu0 0.0
        %1534 = vmatprep.subr.mxu0 0.0
        %1535 = vmatpush1.msra.mxu0 0.0
        %1536 = vmatprep.subr.mxu0 0.0
        %1537 = vmatpush1.msra.mxu0 0.0
        %1538 = vmatprep.subr.mxu0 0.0
        %1539 = vmatpush1.msra.mxu0 0.0
        %1540 = vmatprep.subr.mxu0 0.0
        %1541 = vmatpush1.msra.mxu0 0.0
        %1542 = vmatprep.subr.mxu0 0.0
        %1543 = vmatpush1.msra.mxu0 0.0
        %1544 = vmatprep.subr.mxu0 0.0
        %1545 = vmatpush1.msra.mxu0 0.0
        %1546 = vmatprep.subr.mxu0 0.0
        %1547 = vmatpush1.msra.mxu0 0.0
        %1548 = vmatprep.subr.mxu0 0.0
        %1549 = vmatpush1.msra.mxu0 0.0
        %1550 = vmatprep.subr.mxu0 0.0
        %1551 = vmatpush1.msra.mxu0 0.0
        %1552 = vmatprep.subr.mxu0 0.0
        %1553 = vmatpush1.msra.mxu0 0.0
        %1554 = vmatprep.mubr.f32.mxu0 0.0
        %1555 = vmatmul.mubr.f32.gmra.mrb[0].mxu0 %v1485
        %v1556 = vpop.f32.mrb[0].mxu0
        %v1557 = vadd.f32 %v1389, %v1556
        %v1558 = vpop.f32.mrb[0].mxu0
        %1559 = vmatprep.mubr.f32.mxu0 0.0
        %1560 = vmatmul.mubr.f32.gmra.mrb[0].mxu0 %v1488
        %v1561 = vpop.f32.mrb[0].mxu0
        %v1562 = vadd.f32 %v1390, %v1561
        %v1563 = vpop.f32.mrb[0].mxu0
        %1564 = vdwg.mxu0
        %v1565 = vsel %vm386, %v1470, 0.0
        %v1566 = vsel %vm386, %v1557, 0.0
        %v1567 = vadd.f32 %v1565, %v1566
        %v1568 = vsel %vm386, %v1475, 0.0
        %v1569 = vsel %vm386, %v1562, 0.0
        %v1570 = vadd.f32 %v1568, %v1569
        %v1571 = vrcp.pop 2.0
        %v1572 = vmul.f32 %v1567, %v1571
        %v1573 = vmul.f32 %v1570, %v1571
        %1574 = vrot.lane.b32.xlu0 %v1080, 32
        %v1575 = vpop.permute.xlu0 %1574
        %1576 = vrot.lane.b32.xlu0 %v1085, 32
        %v1577 = vpop.permute.xlu0 %1576
        %v1580 = vadd.f32 %v1572, %v1575
        %v1581 = vadd.f32 %v1573, %v1577
        %v1582 = vld [vmem:[%s4] sm:$0xff]
        %v1583 = vld [vmem:[%s4 + $0x8] sm:$0xff]
        %v1584 = vld [vmem:[%s5] sm:$0x1]
        %v1586 = vsel %vm386, %v1580, 0
        %v1589 = vsel %vm386, %v1581, 0
        %1591 = vmatprep.subr.mxu0 0.0
        %1592 = vmatpush1.msra.mxu0 %v1582
        %1593 = vmatprep.subr.mxu0 0.0
        %1594 = vmatpush1.msra.mxu0 %v1583
        %1595 = vmatprep.subr.mxu0 0.0
        %1596 = vmatpush1.msra.mxu0 0.0
        %1597 = vmatprep.subr.mxu0 0.0
        %1598 = vmatpush1.msra.mxu0 0.0
        %1599 = vmatprep.subr.mxu0 0.0
        %1600 = vmatpush1.msra.mxu0 0.0
        %1601 = vmatprep.subr.mxu0 0.0
        %1602 = vmatpush1.msra.mxu0 0.0
        %1603 = vmatprep.subr.mxu0 0.0
        %1604 = vmatpush1.msra.mxu0 0.0
        %1605 = vmatprep.subr.mxu0 0.0
        %1606 = vmatpush1.msra.mxu0 0.0
        %1607 = vmatprep.subr.mxu0 0.0
        %1608 = vmatpush1.msra.mxu0 0.0
        %1609 = vmatprep.subr.mxu0 0.0
        %1610 = vmatpush1.msra.mxu0 0.0
        %1611 = vmatprep.subr.mxu0 0.0
        %1612 = vmatpush1.msra.mxu0 0.0
        %1613 = vmatprep.subr.mxu0 0.0
        %1614 = vmatpush1.msra.mxu0 0.0
        %1615 = vmatprep.subr.mxu0 0.0
        %1616 = vmatpush1.msra.mxu0 0.0
        %1617 = vmatprep.subr.mxu0 0.0
        %1618 = vmatpush1.msra.mxu0 0.0
        %1619 = vmatprep.subr.mxu0 0.0
        %1620 = vmatpush1.msra.mxu0 0.0
        %1621 = vmatprep.subr.mxu0 0.0
        %1622 = vmatpush1.msra.mxu0 0.0
        %1623 = vmatprep.subr.mxu0 0.0
        %1624 = vmatpush1.msra.mxu0 0.0
        %1625 = vmatprep.subr.mxu0 0.0
        %1626 = vmatpush1.msra.mxu0 0.0
        %1627 = vmatprep.subr.mxu0 0.0
        %1628 = vmatpush1.msra.mxu0 0.0
        %1629 = vmatprep.subr.mxu0 0.0
        %1630 = vmatpush1.msra.mxu0 0.0
        %1631 = vmatprep.subr.mxu0 0.0
        %1632 = vmatpush1.msra.mxu0 0.0
        %1633 = vmatprep.subr.mxu0 0.0
        %1634 = vmatpush1.msra.mxu0 0.0
        %1635 = vmatprep.subr.mxu0 0.0
        %1636 = vmatpush1.msra.mxu0 0.0
        %1637 = vmatprep.subr.mxu0 0.0
        %1638 = vmatpush1.msra.mxu0 0.0
        %1639 = vmatprep.subr.mxu0 0.0
        %1640 = vmatpush1.msra.mxu0 0.0
        %1641 = vmatprep.subr.mxu0 0.0
        %1642 = vmatpush1.msra.mxu0 0.0
        %1643 = vmatprep.subr.mxu0 0.0
        %1644 = vmatpush1.msra.mxu0 0.0
        %1645 = vmatprep.subr.mxu0 0.0
        %1646 = vmatpush1.msra.mxu0 0.0
        %1647 = vmatprep.subr.mxu0 0.0
        %1648 = vmatpush1.msra.mxu0 0.0
        %1649 = vmatprep.subr.mxu0 0.0
        %1650 = vmatpush1.msra.mxu0 0.0
        %1651 = vmatprep.subr.mxu0 0.0
        %1652 = vmatpush1.msra.mxu0 0.0
        %1653 = vmatprep.subr.mxu0 0.0
        %1654 = vmatpush1.msra.mxu0 0.0
        %1655 = vmatprep.mubr.f32.mxu0 0.0
        %1656 = vmatmul.mubr.f32.gmra.mrb[0].mxu0 %v1586
        %v1657 = vpop.f32.mrb[0].mxu0
        %v1658 = vadd.f32 0.0, %v1657
        %v1659 = vpop.f32.mrb[0].mxu0
        %1660 = vmatprep.mubr.f32.mxu0 0.0
        %1661 = vmatmul.mubr.f32.gmra.mrb[0].mxu0 %v1589
        %v1662 = vpop.f32.mrb[0].mxu0
        %v1663 = vadd.f32 0.0, %v1662
        %v1664 = vpop.f32.mrb[0].mxu0
        %1665 = vdwg.mxu0
        %v1667 = vlaneseq
        %v1668 = vshrl.u32 %v1667, 7
        %v1669 = vsub.s32 0, %v1668
        %v1670 = vrot.slane %v1584, %v1669
        %v1672 = vmul.f32 %v1658, %v1670
        %v1673 = vmul.f32 %v1663, %v1670
        %v1674 = vsel %vm386, %v1672, 0.0
        %1675 = vadd.xlane.f32.xlu0 %v1674
        %v1676 = vpop.xlane.xlu0 %1675
        %v1677 = vsel %vm386, %v1673, 0.0
        %1678 = vadd.xlane.f32.xlu0 %v1677
        %v1679 = vpop.xlane.xlu0 %1678
        %v1680 = vmul.f32 %v354, %v1676
        %v1681 = vmul.f32 %v355, %v1679
        %1684 = vrot.lane.b32.xlu0 %v1658, 112
        %v1685 = vpop.permute.xlu0 %1684
        %1686 = vrot.lane.b32.xlu0 %v1663, 112
        %v1687 = vpop.permute.xlu0 %1686
        %v1688 = vsel %vm386, %v1658, 0
        %v1690 = vsel %vm386, %v1663, 0
        %v1692 = vsel %vm386, %v1685, 0
        %v1694 = vsel %vm386, %v1687, 0
        %1696 = vmatprep.subr.mxu0 0.0
        %1697 = vmatpush1.xpose.msra.mxu0 %v1692
        %1698 = vmatprep.subr.mxu0 0.0
        %1699 = vmatpush1.xpose.msra.mxu0 %v1694
        %1700 = vmatprep.subr.mxu0 0.0
        %1701 = vmatpush1.xpose.msra.mxu0 0.0
        %1702 = vmatprep.subr.mxu0 0.0
        %1703 = vmatpush1.xpose.msra.mxu0 0.0
        %1704 = vmatprep.subr.mxu0 0.0
        %1705 = vmatpush1.xpose.msra.mxu0 0.0
        %1706 = vmatprep.subr.mxu0 0.0
        %1707 = vmatpush1.xpose.msra.mxu0 0.0
        %1708 = vmatprep.subr.mxu0 0.0
        %1709 = vmatpush1.xpose.msra.mxu0 0.0
        %1710 = vmatprep.subr.mxu0 0.0
        %1711 = vmatpush1.xpose.msra.mxu0 0.0
        %1712 = vmatprep.subr.mxu0 0.0
        %1713 = vmatpush1.xpose.msra.mxu0 0.0
        %1714 = vmatprep.subr.mxu0 0.0
        %1715 = vmatpush1.xpose.msra.mxu0 0.0
        %1716 = vmatprep.subr.mxu0 0.0
        %1717 = vmatpush1.xpose.msra.mxu0 0.0
        %1718 = vmatprep.subr.mxu0 0.0
        %1719 = vmatpush1.xpose.msra.mxu0 0.0
        %1720 = vmatprep.subr.mxu0 0.0
        %1721 = vmatpush1.xpose.msra.mxu0 0.0
        %1722 = vmatprep.subr.mxu0 0.0
        %1723 = vmatpush1.xpose.msra.mxu0 0.0
        %1724 = vmatprep.subr.mxu0 0.0
        %1725 = vmatpush1.xpose.msra.mxu0 0.0
        %1726 = vmatprep.subr.mxu0 0.0
        %1727 = vmatpush1.xpose.msra.mxu0 0.0
        %1728 = vmatprep.subr.mxu0 0.0
        %1729 = vmatpush1.xpose.msra.mxu0 0.0
        %1730 = vmatprep.subr.mxu0 0.0
        %1731 = vmatpush1.xpose.msra.mxu0 0.0
        %1732 = vmatprep.subr.mxu0 0.0
        %1733 = vmatpush1.xpose.msra.mxu0 0.0
        %1734 = vmatprep.subr.mxu0 0.0
        %1735 = vmatpush1.xpose.msra.mxu0 0.0
        %1736 = vmatprep.subr.mxu0 0.0
        %1737 = vmatpush1.xpose.msra.mxu0 0.0
        %1738 = vmatprep.subr.mxu0 0.0
        %1739 = vmatpush1.xpose.msra.mxu0 0.0
        %1740 = vmatprep.subr.mxu0 0.0
        %1741 = vmatpush1.xpose.msra.mxu0 0.0
        %1742 = vmatprep.subr.mxu0 0.0
        %1743 = vmatpush1.xpose.msra.mxu0 0.0
        %1744 = vmatprep.subr.mxu0 0.0
        %1745 = vmatpush1.xpose.msra.mxu0 0.0
        %1746 = vmatprep.subr.mxu0 0.0
        %1747 = vmatpush1.xpose.msra.mxu0 0.0
        %1748 = vmatprep.subr.mxu0 0.0
        %1749 = vmatpush1.xpose.msra.mxu0 0.0
        %1750 = vmatprep.subr.mxu0 0.0
        %1751 = vmatpush1.xpose.msra.mxu0 0.0
        %1752 = vmatprep.subr.mxu0 0.0
        %1753 = vmatpush1.xpose.msra.mxu0 0.0
        %1754 = vmatprep.subr.mxu0 0.0
        %1755 = vmatpush1.xpose.msra.mxu0 0.0
        %1756 = vmatprep.subr.mxu0 0.0
        %1757 = vmatpush1.xpose.msra.mxu0 0.0
        %1758 = vmatprep.subr.mxu0 0.0
        %1759 = vmatpush1.xpose.msra.mxu0 0.0
        %1760 = vmatprep.mubr.f32.mxu0 0.0
        %1761 = vmatmul.mubr.f32.gmra.mrb[0].mxu0 %v1688
        %v1762 = vpop.f32.mrb[0].mxu0
        %v1763 = vadd.f32 %v1680, %v1762
        %v1764 = vpop.f32.mrb[0].mxu0
        %1765 = vmatprep.mubr.f32.mxu0 0.0
        %1766 = vmatmul.mubr.f32.gmra.mrb[0].mxu0 %v1690
        %v1767 = vpop.f32.mrb[0].mxu0
        %v1768 = vadd.f32 %v1681, %v1767
        %v1769 = vpop.f32.mrb[0].mxu0
        %1770 = vdwg.mxu0
        %v1771 = vmul.f32 %v1763, 0.25
        %v1772 = vmul.f32 %v1768, 0.25
        %v1773 = vsel %vm356, %v1771, -1e+30
        %v1774 = vsel %vm357, %v1772, -1e+30
        %v1775 = vsel %vm386, %v1773, -inf
        %1776 = vmax.xlane.f32.xlu0 %v1775
        %v1777 = vpop.xlane.xlu0 %1776
        %v1778 = vsel %vm386, %v1774, -inf
        %1779 = vmax.xlane.f32.xlu0 %v1778
        %v1780 = vpop.xlane.xlu0 %1779
        %v1781 = vsub.f32 %v1773, %v1777
        %v1782 = vsub.f32 %v1774, %v1780
        %v1783 = vmul.f32 %v1781, 1.442695
        %v1784 = vpow.pop %v1783
        %v1785 = vmul.f32 %v1782, 1.442695
        %v1786 = vpow.pop %v1785
        %v1787 = vsel %vm356, %v1784, 0.0
        %v1788 = vsel %vm357, %v1786, 0.0
        %v1789 = vsel %vm386, %v1787, 0.0
        %1790 = vadd.xlane.f32.xlu0 %v1789
        %v1791 = vpop.xlane.xlu0 %1790
        %v1792 = vsel %vm386, %v1788, 0.0
        %1793 = vadd.xlane.f32.xlu0 %v1792
        %v1794 = vpop.xlane.xlu0 %1793
        %vm1795 = vcmp.eq.f32.partialorder %v1791, 0.0
        %vm1796 = vcmp.eq.f32.partialorder %v1794, 0.0
        %v1797 = vsel %vm1795, 1.0, %v1791
        %v1798 = vsel %vm1796, 1.0, %v1794
        %v1799 = vrcp.pop %v1797
        %v1800 = vrcp.pop %v1798
        %v1801 = vmul.f32 %v1787, %v1799
        %v1802 = vmul.f32 %v1788, %v1800
        %v1803 = vmul.f32 %v1801, %v354
        %v1804 = vmul.f32 %v1802, %v355
        %v1805 = vsel %vm386, %v1803, 0.0
        %1806 = vadd.xlane.f32.xlu0 %v1805
        %v1807 = vpop.xlane.xlu0 %1806
        %v1808 = vsel %vm386, %v1804, 0.0
        %1809 = vadd.xlane.f32.xlu0 %v1808
        %v1810 = vpop.xlane.xlu0 %1809
        %v1811 = vmul.f32 %v1807, %v1670
        %v1812 = vmul.f32 %v1810, %v1670
        %1813 = vrot.lane.b32.xlu0 %v1658, 96
        %v1814 = vpop.permute.xlu0 %1813
        %1815 = vrot.lane.b32.xlu0 %v1663, 96
        %v1816 = vpop.permute.xlu0 %1815
        %v1820 = vsel %vm386, %v1801, 0
        %v1823 = vsel %vm386, %v1802, 0
        %1825 = vmatprep.subr.mxu0 0.0
        %1826 = vmatpush1.msra.mxu0 %v1814
        %1827 = vmatprep.subr.mxu0 0.0
        %1828 = vmatpush1.msra.mxu0 %v1816
        %1829 = vmatprep.subr.mxu0 0.0
        %1830 = vmatpush1.msra.mxu0 0.0
        %1831 = vmatprep.subr.mxu0 0.0
        %1832 = vmatpush1.msra.mxu0 0.0
        %1833 = vmatprep.subr.mxu0 0.0
        %1834 = vmatpush1.msra.mxu0 0.0
        %1835 = vmatprep.subr.mxu0 0.0
        %1836 = vmatpush1.msra.mxu0 0.0
        %1837 = vmatprep.subr.mxu0 0.0
        %1838 = vmatpush1.msra.mxu0 0.0
        %1839 = vmatprep.subr.mxu0 0.0
        %1840 = vmatpush1.msra.mxu0 0.0
        %1841 = vmatprep.subr.mxu0 0.0
        %1842 = vmatpush1.msra.mxu0 0.0
        %1843 = vmatprep.subr.mxu0 0.0
        %1844 = vmatpush1.msra.mxu0 0.0
        %1845 = vmatprep.subr.mxu0 0.0
        %1846 = vmatpush1.msra.mxu0 0.0
        %1847 = vmatprep.subr.mxu0 0.0
        %1848 = vmatpush1.msra.mxu0 0.0
        %1849 = vmatprep.subr.mxu0 0.0
        %1850 = vmatpush1.msra.mxu0 0.0
        %1851 = vmatprep.subr.mxu0 0.0
        %1852 = vmatpush1.msra.mxu0 0.0
        %1853 = vmatprep.subr.mxu0 0.0
        %1854 = vmatpush1.msra.mxu0 0.0
        %1855 = vmatprep.subr.mxu0 0.0
        %1856 = vmatpush1.msra.mxu0 0.0
        %1857 = vmatprep.subr.mxu0 0.0
        %1858 = vmatpush1.msra.mxu0 0.0
        %1859 = vmatprep.subr.mxu0 0.0
        %1860 = vmatpush1.msra.mxu0 0.0
        %1861 = vmatprep.subr.mxu0 0.0
        %1862 = vmatpush1.msra.mxu0 0.0
        %1863 = vmatprep.subr.mxu0 0.0
        %1864 = vmatpush1.msra.mxu0 0.0
        %1865 = vmatprep.subr.mxu0 0.0
        %1866 = vmatpush1.msra.mxu0 0.0
        %1867 = vmatprep.subr.mxu0 0.0
        %1868 = vmatpush1.msra.mxu0 0.0
        %1869 = vmatprep.subr.mxu0 0.0
        %1870 = vmatpush1.msra.mxu0 0.0
        %1871 = vmatprep.subr.mxu0 0.0
        %1872 = vmatpush1.msra.mxu0 0.0
        %1873 = vmatprep.subr.mxu0 0.0
        %1874 = vmatpush1.msra.mxu0 0.0
        %1875 = vmatprep.subr.mxu0 0.0
        %1876 = vmatpush1.msra.mxu0 0.0
        %1877 = vmatprep.subr.mxu0 0.0
        %1878 = vmatpush1.msra.mxu0 0.0
        %1879 = vmatprep.subr.mxu0 0.0
        %1880 = vmatpush1.msra.mxu0 0.0
        %1881 = vmatprep.subr.mxu0 0.0
        %1882 = vmatpush1.msra.mxu0 0.0
        %1883 = vmatprep.subr.mxu0 0.0
        %1884 = vmatpush1.msra.mxu0 0.0
        %1885 = vmatprep.subr.mxu0 0.0
        %1886 = vmatpush1.msra.mxu0 0.0
        %1887 = vmatprep.subr.mxu0 0.0
        %1888 = vmatpush1.msra.mxu0 0.0
        %1889 = vmatprep.mubr.f32.mxu0 0.0
        %1890 = vmatmul.mubr.f32.gmra.mrb[0].mxu0 %v1820
        %v1891 = vpop.f32.mrb[0].mxu0
        %v1892 = vadd.f32 %v1811, %v1891
        %v1893 = vpop.f32.mrb[0].mxu0
        %1894 = vmatprep.mubr.f32.mxu0 0.0
        %1895 = vmatmul.mubr.f32.gmra.mrb[0].mxu0 %v1823
        %v1896 = vpop.f32.mrb[0].mxu0
        %v1897 = vadd.f32 %v1812, %v1896
        %v1898 = vpop.f32.mrb[0].mxu0
        %1899 = vdwg.mxu0
        %1900 = vrot.lane.b32.xlu0 %v1658, 80
        %v1901 = vpop.permute.xlu0 %1900
        %1902 = vrot.lane.b32.xlu0 %v1663, 80
        %v1903 = vpop.permute.xlu0 %1902
        %v1906 = vadd.f32 %v1892, %v1901
        %v1907 = vadd.f32 %v1897, %v1903
        %v1908 = vsel %vm386, %v1906, 0.0
        %1909 = vadd.xlane.f32.xlu0 %v1908
        %v1910 = vpop.xlane.xlu0 %1909
        %v1911 = vsel %vm386, %v1907, 0.0
        %1912 = vadd.xlane.f32.xlu0 %v1911
        %v1913 = vpop.xlane.xlu0 %1912
        %v1914 = vmul.f32 %v1910, %v627
        %v1915 = vmul.f32 %v1913, %v627
        %v1916 = vsub.f32 %v1906, %v1914
        %v1917 = vsub.f32 %v1907, %v1915
        %v1918 = vmul.f32 %v1916, %v1916
        %v1919 = vmul.f32 %v1917, %v1917
        %v1920 = vsel %vm386, %v1918, 0.0
        %1921 = vadd.xlane.f32.xlu0 %v1920
        %v1922 = vpop.xlane.xlu0 %1921
        %v1923 = vsel %vm386, %v1919, 0.0
        %1924 = vadd.xlane.f32.xlu0 %v1923
        %v1925 = vpop.xlane.xlu0 %1924
        %v1926 = vmul.f32 %v1922, %v627
        %v1927 = vmul.f32 %v1925, %v627
        %v1928 = vadd.f32 %v1926, 1e-05
        %v1929 = vadd.f32 %v1927, 1e-05
        %v1930 = vrsqrt.pop %v1928
        %v1931 = vrsqrt.pop %v1929
        %v1932 = vmul.f32 %v1916, %v1930
        %v1933 = vmul.f32 %v1917, %v1931
        %v1934 = vmax.f32 %v1932, 0.0
        %v1935 = vmax.f32 %v1933, 0.0
        %v1936 = vld [vmem:[#allocation5] sm:$0xff]
        %v1937 = vld [vmem:[#allocation5 + $0x8] sm:$0xff]
        %v1938 = vld [vmem:[%s7] sm:$0x1]
        %v1940 = vsel %vm386, %v1934, 0
        %v1943 = vsel %vm386, %v1935, 0
        %1945 = vmatprep.subr.mxu0 0.0
        %1946 = vmatpush1.msra.mxu0 %v1936
        %1947 = vmatprep.subr.mxu0 0.0
        %1948 = vmatpush1.msra.mxu0 %v1937
        %1949 = vmatprep.subr.mxu0 0.0
        %1950 = vmatpush1.msra.mxu0 0.0
        %1951 = vmatprep.subr.mxu0 0.0
        %1952 = vmatpush1.msra.mxu0 0.0
        %1953 = vmatprep.subr.mxu0 0.0
        %1954 = vmatpush1.msra.mxu0 0.0
        %1955 = vmatprep.subr.mxu0 0.0
        %1956 = vmatpush1.msra.mxu0 0.0
        %1957 = vmatprep.subr.mxu0 0.0
        %1958 = vmatpush1.msra.mxu0 0.0
        %1959 = vmatprep.subr.mxu0 0.0
        %1960 = vmatpush1.msra.mxu0 0.0
        %1961 = vmatprep.subr.mxu0 0.0
        %1962 = vmatpush1.msra.mxu0 0.0
        %1963 = vmatprep.subr.mxu0 0.0
        %1964 = vmatpush1.msra.mxu0 0.0
        %1965 = vmatprep.subr.mxu0 0.0
        %1966 = vmatpush1.msra.mxu0 0.0
        %1967 = vmatprep.subr.mxu0 0.0
        %1968 = vmatpush1.msra.mxu0 0.0
        %1969 = vmatprep.subr.mxu0 0.0
        %1970 = vmatpush1.msra.mxu0 0.0
        %1971 = vmatprep.subr.mxu0 0.0
        %1972 = vmatpush1.msra.mxu0 0.0
        %1973 = vmatprep.subr.mxu0 0.0
        %1974 = vmatpush1.msra.mxu0 0.0
        %1975 = vmatprep.subr.mxu0 0.0
        %1976 = vmatpush1.msra.mxu0 0.0
        %1977 = vmatprep.subr.mxu0 0.0
        %1978 = vmatpush1.msra.mxu0 0.0
        %1979 = vmatprep.subr.mxu0 0.0
        %1980 = vmatpush1.msra.mxu0 0.0
        %1981 = vmatprep.subr.mxu0 0.0
        %1982 = vmatpush1.msra.mxu0 0.0
        %1983 = vmatprep.subr.mxu0 0.0
        %1984 = vmatpush1.msra.mxu0 0.0
        %1985 = vmatprep.subr.mxu0 0.0
        %1986 = vmatpush1.msra.mxu0 0.0
        %1987 = vmatprep.subr.mxu0 0.0
        %1988 = vmatpush1.msra.mxu0 0.0
        %1989 = vmatprep.subr.mxu0 0.0
        %1990 = vmatpush1.msra.mxu0 0.0
        %1991 = vmatprep.subr.mxu0 0.0
        %1992 = vmatpush1.msra.mxu0 0.0
        %1993 = vmatprep.subr.mxu0 0.0
        %1994 = vmatpush1.msra.mxu0 0.0
        %1995 = vmatprep.subr.mxu0 0.0
        %1996 = vmatpush1.msra.mxu0 0.0
        %1997 = vmatprep.subr.mxu0 0.0
        %1998 = vmatpush1.msra.mxu0 0.0
        %1999 = vmatprep.subr.mxu0 0.0
        %2000 = vmatpush1.msra.mxu0 0.0
        %2001 = vmatprep.subr.mxu0 0.0
        %2002 = vmatpush1.msra.mxu0 0.0
        %2003 = vmatprep.subr.mxu0 0.0
        %2004 = vmatpush1.msra.mxu0 0.0
        %2005 = vmatprep.subr.mxu0 0.0
        %2006 = vmatpush1.msra.mxu0 0.0
        %2007 = vmatprep.subr.mxu0 0.0
        %2008 = vmatpush1.msra.mxu0 0.0
        %2009 = vmatprep.mubr.f32.mxu0 0.0
        %2010 = vmatmul.mubr.f32.gmra.mrb[0].mxu0 %v1940
        %v2011 = vpop.f32.mrb[0].mxu0
        %v2012 = vadd.f32 0.0, %v2011
        %v2013 = vpop.f32.mrb[0].mxu0
        %2014 = vmatprep.mubr.f32.mxu0 0.0
        %2015 = vmatmul.mubr.f32.gmra.mrb[0].mxu0 %v1943
        %v2016 = vpop.f32.mrb[0].mxu0
        %v2017 = vadd.f32 0.0, %v2016
        %v2018 = vpop.f32.mrb[0].mxu0
        %2019 = vdwg.mxu0
        %2022 = vrot.lane.b32.xlu0 %v2012, 112
        %v2023 = vpop.permute.xlu0 %2022
        %2024 = vrot.lane.b32.xlu0 %v2017, 112
        %v2025 = vpop.permute.xlu0 %2024
        %2029 = vrot.lane.b32.xlu0 %v1938, 112
        %v2030 = vpop.permute.xlu0 %2029
        %v2031 = vlaneseq
        %v2032 = vshrl.u32 %v2031, 7
        %v2033 = vsub.s32 0, %v2032
        %v2034 = vrot.slane %v1938, %v2033
        %v2035 = vlaneseq
        %v2036 = vshrl.u32 %v2035, 7
        %v2037 = vsub.s32 0, %v2036
        %v2038 = vrot.slane %v2030, %v2037
        %v2041 = vmul.f32 %v2012, %v2034
        %v2042 = vmul.f32 %v2017, %v2034
        %v2043 = vmul.f32 %v2023, %v2038
        %v2044 = vmul.f32 %v2025, %v2038
        %v2045 = vsel %vm386, %v2041, 0.0
        %2046 = vadd.xlane.f32.xlu0 %v2045
        %v2047 = vpop.xlane.xlu0 %2046
        %v2048 = vsel %vm386, %v2042, 0.0
        %2049 = vadd.xlane.f32.xlu0 %v2048
        %v2050 = vpop.xlane.xlu0 %2049
        %v2051 = vsel %vm386, %v2043, 0.0
        %2052 = vadd.xlane.f32.xlu0 %v2051
        %v2053 = vpop.xlane.xlu0 %2052
        %v2054 = vsel %vm386, %v2044, 0.0
        %2055 = vadd.xlane.f32.xlu0 %v2054
        %v2056 = vpop.xlane.xlu0 %2055
        %v2057 = vmul.f32 %v354, %v2047
        %v2058 = vmul.f32 %v355, %v2050
        %v2059 = vmul.f32 %v354, %v2053
        %v2060 = vmul.f32 %v355, %v2056
        %2061 = vrot.lane.b32.xlu0 %v2012, 96
        %v2062 = vpop.permute.xlu0 %2061
        %2063 = vrot.lane.b32.xlu0 %v2017, 96
        %v2064 = vpop.permute.xlu0 %2063
        %v2065 = vsel %vm386, %v2012, 0
        %v2067 = vsel %vm386, %v2017, 0
        %v2069 = vsel %vm386, %v2062, 0
        %v2071 = vsel %vm386, %v2064, 0
        %2073 = vmatprep.subr.mxu0 0.0
        %2074 = vmatpush1.xpose.msra.mxu0 %v2069
        %2075 = vmatprep.subr.mxu0 0.0
        %2076 = vmatpush1.xpose.msra.mxu0 %v2071
        %2077 = vmatprep.subr.mxu0 0.0
        %2078 = vmatpush1.xpose.msra.mxu0 0.0
        %2079 = vmatprep.subr.mxu0 0.0
        %2080 = vmatpush1.xpose.msra.mxu0 0.0
        %2081 = vmatprep.subr.mxu0 0.0
        %2082 = vmatpush1.xpose.msra.mxu0 0.0
        %2083 = vmatprep.subr.mxu0 0.0
        %2084 = vmatpush1.xpose.msra.mxu0 0.0
        %2085 = vmatprep.subr.mxu0 0.0
        %2086 = vmatpush1.xpose.msra.mxu0 0.0
        %2087 = vmatprep.subr.mxu0 0.0
        %2088 = vmatpush1.xpose.msra.mxu0 0.0
        %2089 = vmatprep.subr.mxu0 0.0
        %2090 = vmatpush1.xpose.msra.mxu0 0.0
        %2091 = vmatprep.subr.mxu0 0.0
        %2092 = vmatpush1.xpose.msra.mxu0 0.0
        %2093 = vmatprep.subr.mxu0 0.0
        %2094 = vmatpush1.xpose.msra.mxu0 0.0
        %2095 = vmatprep.subr.mxu0 0.0
        %2096 = vmatpush1.xpose.msra.mxu0 0.0
        %2097 = vmatprep.subr.mxu0 0.0
        %2098 = vmatpush1.xpose.msra.mxu0 0.0
        %2099 = vmatprep.subr.mxu0 0.0
        %2100 = vmatpush1.xpose.msra.mxu0 0.0
        %2101 = vmatprep.subr.mxu0 0.0
        %2102 = vmatpush1.xpose.msra.mxu0 0.0
        %2103 = vmatprep.subr.mxu0 0.0
        %2104 = vmatpush1.xpose.msra.mxu0 0.0
        %2105 = vmatprep.subr.mxu0 0.0
        %2106 = vmatpush1.xpose.msra.mxu0 0.0
        %2107 = vmatprep.subr.mxu0 0.0
        %2108 = vmatpush1.xpose.msra.mxu0 0.0
        %2109 = vmatprep.subr.mxu0 0.0
        %2110 = vmatpush1.xpose.msra.mxu0 0.0
        %2111 = vmatprep.subr.mxu0 0.0
        %2112 = vmatpush1.xpose.msra.mxu0 0.0
        %2113 = vmatprep.subr.mxu0 0.0
        %2114 = vmatpush1.xpose.msra.mxu0 0.0
        %2115 = vmatprep.subr.mxu0 0.0
        %2116 = vmatpush1.xpose.msra.mxu0 0.0
        %2117 = vmatprep.subr.mxu0 0.0
        %2118 = vmatpush1.xpose.msra.mxu0 0.0
        %2119 = vmatprep.subr.mxu0 0.0
        %2120 = vmatpush1.xpose.msra.mxu0 0.0
        %2121 = vmatprep.subr.mxu0 0.0
        %2122 = vmatpush1.xpose.msra.mxu0 0.0
        %2123 = vmatprep.subr.mxu0 0.0
        %2124 = vmatpush1.xpose.msra.mxu0 0.0
        %2125 = vmatprep.subr.mxu0 0.0
        %2126 = vmatpush1.xpose.msra.mxu0 0.0
        %2127 = vmatprep.subr.mxu0 0.0
        %2128 = vmatpush1.xpose.msra.mxu0 0.0
        %2129 = vmatprep.subr.mxu0 0.0
        %2130 = vmatpush1.xpose.msra.mxu0 0.0
        %2131 = vmatprep.subr.mxu0 0.0
        %2132 = vmatpush1.xpose.msra.mxu0 0.0
        %2133 = vmatprep.subr.mxu0 0.0
        %2134 = vmatpush1.xpose.msra.mxu0 0.0
        %2135 = vmatprep.subr.mxu0 0.0
        %2136 = vmatpush1.xpose.msra.mxu0 0.0
        %2137 = vmatprep.mubr.f32.mxu0 0.0
        %2138 = vmatmul.mubr.f32.gmra.mrb[0].mxu0 %v2065
        %v2139 = vpop.f32.mrb[0].mxu0
        %v2140 = vadd.f32 %v2057, %v2139
        %v2141 = vpop.f32.mrb[0].mxu0
        %2142 = vmatprep.mubr.f32.mxu0 0.0
        %2143 = vmatmul.mubr.f32.gmra.mrb[0].mxu0 %v2067
        %v2144 = vpop.f32.mrb[0].mxu0
        %v2145 = vadd.f32 %v2058, %v2144
        %v2146 = vpop.f32.mrb[0].mxu0
        %2147 = vdwg.mxu0
        %2148 = vrot.lane.b32.xlu0 %v2023, 96
        %v2149 = vpop.permute.xlu0 %2148
        %2150 = vrot.lane.b32.xlu0 %v2025, 96
        %v2151 = vpop.permute.xlu0 %2150
        %v2152 = vsel %vm386, %v2023, 0
        %v2154 = vsel %vm386, %v2025, 0
        %v2156 = vsel %vm386, %v2149, 0
        %v2158 = vsel %vm386, %v2151, 0
        %2160 = vmatprep.subr.mxu0 0.0
        %2161 = vmatpush1.xpose.msra.mxu0 %v2156
        %2162 = vmatprep.subr.mxu0 0.0
        %2163 = vmatpush1.xpose.msra.mxu0 %v2158
        %2164 = vmatprep.subr.mxu0 0.0
        %2165 = vmatpush1.xpose.msra.mxu0 0.0
        %2166 = vmatprep.subr.mxu0 0.0
        %2167 = vmatpush1.xpose.msra.mxu0 0.0
        %2168 = vmatprep.subr.mxu0 0.0
        %2169 = vmatpush1.xpose.msra.mxu0 0.0
        %2170 = vmatprep.subr.mxu0 0.0
        %2171 = vmatpush1.xpose.msra.mxu0 0.0
        %2172 = vmatprep.subr.mxu0 0.0
        %2173 = vmatpush1.xpose.msra.mxu0 0.0
        %2174 = vmatprep.subr.mxu0 0.0
        %2175 = vmatpush1.xpose.msra.mxu0 0.0
        %2176 = vmatprep.subr.mxu0 0.0
        %2177 = vmatpush1.xpose.msra.mxu0 0.0
        %2178 = vmatprep.subr.mxu0 0.0
        %2179 = vmatpush1.xpose.msra.mxu0 0.0
        %2180 = vmatprep.subr.mxu0 0.0
        %2181 = vmatpush1.xpose.msra.mxu0 0.0
        %2182 = vmatprep.subr.mxu0 0.0
        %2183 = vmatpush1.xpose.msra.mxu0 0.0
        %2184 = vmatprep.subr.mxu0 0.0
        %2185 = vmatpush1.xpose.msra.mxu0 0.0
        %2186 = vmatprep.subr.mxu0 0.0
        %2187 = vmatpush1.xpose.msra.mxu0 0.0
        %2188 = vmatprep.subr.mxu0 0.0
        %2189 = vmatpush1.xpose.msra.mxu0 0.0
        %2190 = vmatprep.subr.mxu0 0.0
        %2191 = vmatpush1.xpose.msra.mxu0 0.0
        %2192 = vmatprep.subr.mxu0 0.0
        %2193 = vmatpush1.xpose.msra.mxu0 0.0
        %2194 = vmatprep.subr.mxu0 0.0
        %2195 = vmatpush1.xpose.msra.mxu0 0.0
        %2196 = vmatprep.subr.mxu0 0.0
        %2197 = vmatpush1.xpose.msra.mxu0 0.0
        %2198 = vmatprep.subr.mxu0 0.0
        %2199 = vmatpush1.xpose.msra.mxu0 0.0
        %2200 = vmatprep.subr.mxu0 0.0
        %2201 = vmatpush1.xpose.msra.mxu0 0.0
        %2202 = vmatprep.subr.mxu0 0.0
        %2203 = vmatpush1.xpose.msra.mxu0 0.0
        %2204 = vmatprep.subr.mxu0 0.0
        %2205 = vmatpush1.xpose.msra.mxu0 0.0
        %2206 = vmatprep.subr.mxu0 0.0
        %2207 = vmatpush1.xpose.msra.mxu0 0.0
        %2208 = vmatprep.subr.mxu0 0.0
        %2209 = vmatpush1.xpose.msra.mxu0 0.0
        %2210 = vmatprep.subr.mxu0 0.0
        %2211 = vmatpush1.xpose.msra.mxu0 0.0
        %2212 = vmatprep.subr.mxu0 0.0
        %2213 = vmatpush1.xpose.msra.mxu0 0.0
        %2214 = vmatprep.subr.mxu0 0.0
        %2215 = vmatpush1.xpose.msra.mxu0 0.0
        %2216 = vmatprep.subr.mxu0 0.0
        %2217 = vmatpush1.xpose.msra.mxu0 0.0
        %2218 = vmatprep.subr.mxu0 0.0
        %2219 = vmatpush1.xpose.msra.mxu0 0.0
        %2220 = vmatprep.subr.mxu0 0.0
        %2221 = vmatpush1.xpose.msra.mxu0 0.0
        %2222 = vmatprep.subr.mxu0 0.0
        %2223 = vmatpush1.xpose.msra.mxu0 0.0
        %2224 = vmatprep.mubr.f32.mxu0 0.0
        %2225 = vmatmul.mubr.f32.gmra.mrb[0].mxu0 %v2152
        %v2226 = vpop.f32.mrb[0].mxu0
        %v2227 = vadd.f32 %v2059, %v2226
        %v2228 = vpop.f32.mrb[0].mxu0
        %2229 = vmatprep.mubr.f32.mxu0 0.0
        %2230 = vmatmul.mubr.f32.gmra.mrb[0].mxu0 %v2154
        %v2231 = vpop.f32.mrb[0].mxu0
        %v2232 = vadd.f32 %v2060, %v2231
        %v2233 = vpop.f32.mrb[0].mxu0
        %2234 = vdwg.mxu0
        %v2235 = vmul.f32 %v2140, 0.25
        %v2236 = vmul.f32 %v2145, 0.25
        %v2237 = vmul.f32 %v2227, 0.25
        %v2238 = vmul.f32 %v2232, 0.25
        %v2239 = vsel %vm1309, %v2235, -1e+30
        %v2240 = vsel %vm1310, %v2236, -1e+30
        %v2241 = vsel %vm1309, %v2237, -1e+30
        %v2242 = vsel %vm1310, %v2238, -1e+30
        %v2243 = vsel %vm386, %v2239, -inf
        %2244 = vmax.xlane.f32.xlu0 %v2243
        %v2245 = vpop.xlane.xlu0 %2244
        %v2246 = vsel %vm386, %v2240, -inf
        %2247 = vmax.xlane.f32.xlu0 %v2246
        %v2248 = vpop.xlane.xlu0 %2247
        %v2249 = vsel %vm386, %v2241, -inf
        %2250 = vmax.xlane.f32.xlu0 %v2249
        %v2251 = vpop.xlane.xlu0 %2250
        %v2252 = vsel %vm386, %v2242, -inf
        %2253 = vmax.xlane.f32.xlu0 %v2252
        %v2254 = vpop.xlane.xlu0 %2253
        %v2255 = vsub.f32 %v2239, %v2245
        %v2256 = vsub.f32 %v2240, %v2248
        %v2257 = vsub.f32 %v2241, %v2251
        %v2258 = vsub.f32 %v2242, %v2254
        %v2259 = vmul.f32 %v2255, 1.442695
        %v2260 = vpow.pop %v2259
        %v2261 = vmul.f32 %v2256, 1.442695
        %v2262 = vpow.pop %v2261
        %v2263 = vmul.f32 %v2257, 1.442695
        %v2264 = vpow.pop %v2263
        %v2265 = vmul.f32 %v2258, 1.442695
        %v2266 = vpow.pop %v2265
        %v2267 = vsel %vm1309, %v2260, 0.0
        %v2268 = vsel %vm1310, %v2262, 0.0
        %v2269 = vsel %vm1309, %v2264, 0.0
        %v2270 = vsel %vm1310, %v2266, 0.0
        %v2271 = vsel %vm386, %v2267, 0.0
        %2272 = vadd.xlane.f32.xlu0 %v2271
        %v2273 = vpop.xlane.xlu0 %2272
        %v2274 = vsel %vm386, %v2268, 0.0
        %2275 = vadd.xlane.f32.xlu0 %v2274
        %v2276 = vpop.xlane.xlu0 %2275
        %v2277 = vsel %vm386, %v2269, 0.0
        %2278 = vadd.xlane.f32.xlu0 %v2277
        %v2279 = vpop.xlane.xlu0 %2278
        %v2280 = vsel %vm386, %v2270, 0.0
        %2281 = vadd.xlane.f32.xlu0 %v2280
        %v2282 = vpop.xlane.xlu0 %2281
        %vm2283 = vcmp.eq.f32.partialorder %v2273, 0.0
        %vm2284 = vcmp.eq.f32.partialorder %v2276, 0.0
        %vm2285 = vcmp.eq.f32.partialorder %v2279, 0.0
        %vm2286 = vcmp.eq.f32.partialorder %v2282, 0.0
        %v2287 = vsel %vm2283, 1.0, %v2273
        %v2288 = vsel %vm2284, 1.0, %v2276
        %v2289 = vsel %vm2285, 1.0, %v2279
        %v2290 = vsel %vm2286, 1.0, %v2282
        %v2291 = vrcp.pop %v2287
        %v2292 = vrcp.pop %v2288
        %v2293 = vrcp.pop %v2289
        %v2294 = vrcp.pop %v2290
        %v2295 = vmul.f32 %v2267, %v2291
        %v2296 = vmul.f32 %v2268, %v2292
        %v2297 = vmul.f32 %v2269, %v2293
        %v2298 = vmul.f32 %v2270, %v2294
        %v2299 = vmul.f32 %v2295, %v354
        %v2300 = vmul.f32 %v2296, %v355
        %v2301 = vmul.f32 %v2297, %v354
        %v2302 = vmul.f32 %v2298, %v355
        %v2303 = vsel %vm386, %v2299, 0.0
        %2304 = vadd.xlane.f32.xlu0 %v2303
        %v2305 = vpop.xlane.xlu0 %2304
        %v2306 = vsel %vm386, %v2300, 0.0
        %2307 = vadd.xlane.f32.xlu0 %v2306
        %v2308 = vpop.xlane.xlu0 %2307
        %v2309 = vsel %vm386, %v2301, 0.0
        %2310 = vadd.xlane.f32.xlu0 %v2309
        %v2311 = vpop.xlane.xlu0 %2310
        %v2312 = vsel %vm386, %v2302, 0.0
        %2313 = vadd.xlane.f32.xlu0 %v2312
        %v2314 = vpop.xlane.xlu0 %2313
        %v2315 = vmul.f32 %v2305, %v2034
        %v2316 = vmul.f32 %v2308, %v2034
        %v2317 = vmul.f32 %v2311, %v2038
        %v2318 = vmul.f32 %v2314, %v2038
        %2319 = vrot.lane.b32.xlu0 %v2012, 64
        %v2320 = vpop.permute.xlu0 %2319
        %2321 = vrot.lane.b32.xlu0 %v2017, 64
        %v2322 = vpop.permute.xlu0 %2321
        %v2326 = vsel %vm386, %v2295, 0
        %v2329 = vsel %vm386, %v2296, 0
        %2331 = vmatprep.subr.mxu0 0.0
        %2332 = vmatpush1.msra.mxu0 %v2320
        %2333 = vmatprep.subr.mxu0 0.0
        %2334 = vmatpush1.msra.mxu0 %v2322
        %2335 = vmatprep.subr.mxu0 0.0
        %2336 = vmatpush1.msra.mxu0 0.0
        %2337 = vmatprep.subr.mxu0 0.0
        %2338 = vmatpush1.msra.mxu0 0.0
        %2339 = vmatprep.subr.mxu0 0.0
        %2340 = vmatpush1.msra.mxu0 0.0
        %2341 = vmatprep.subr.mxu0 0.0
        %2342 = vmatpush1.msra.mxu0 0.0
        %2343 = vmatprep.subr.mxu0 0.0
        %2344 = vmatpush1.msra.mxu0 0.0
        %2345 = vmatprep.subr.mxu0 0.0
        %2346 = vmatpush1.msra.mxu0 0.0
        %2347 = vmatprep.subr.mxu0 0.0
        %2348 = vmatpush1.msra.mxu0 0.0
        %2349 = vmatprep.subr.mxu0 0.0
        %2350 = vmatpush1.msra.mxu0 0.0
        %2351 = vmatprep.subr.mxu0 0.0
        %2352 = vmatpush1.msra.mxu0 0.0
        %2353 = vmatprep.subr.mxu0 0.0
        %2354 = vmatpush1.msra.mxu0 0.0
        %2355 = vmatprep.subr.mxu0 0.0
        %2356 = vmatpush1.msra.mxu0 0.0
        %2357 = vmatprep.subr.mxu0 0.0
        %2358 = vmatpush1.msra.mxu0 0.0
        %2359 = vmatprep.subr.mxu0 0.0
        %2360 = vmatpush1.msra.mxu0 0.0
        %2361 = vmatprep.subr.mxu0 0.0
        %2362 = vmatpush1.msra.mxu0 0.0
        %2363 = vmatprep.subr.mxu0 0.0
        %2364 = vmatpush1.msra.mxu0 0.0
        %2365 = vmatprep.subr.mxu0 0.0
        %2366 = vmatpush1.msra.mxu0 0.0
        %2367 = vmatprep.subr.mxu0 0.0
        %2368 = vmatpush1.msra.mxu0 0.0
        %2369 = vmatprep.subr.mxu0 0.0
        %2370 = vmatpush1.msra.mxu0 0.0
        %2371 = vmatprep.subr.mxu0 0.0
        %2372 = vmatpush1.msra.mxu0 0.0
        %2373 = vmatprep.subr.mxu0 0.0
        %2374 = vmatpush1.msra.mxu0 0.0
        %2375 = vmatprep.subr.mxu0 0.0
        %2376 = vmatpush1.msra.mxu0 0.0
        %2377 = vmatprep.subr.mxu0 0.0
        %2378 = vmatpush1.msra.mxu0 0.0
        %2379 = vmatprep.subr.mxu0 0.0
        %2380 = vmatpush1.msra.mxu0 0.0
        %2381 = vmatprep.subr.mxu0 0.0
        %2382 = vmatpush1.msra.mxu0 0.0
        %2383 = vmatprep.subr.mxu0 0.0
        %2384 = vmatpush1.msra.mxu0 0.0
        %2385 = vmatprep.subr.mxu0 0.0
        %2386 = vmatpush1.msra.mxu0 0.0
        %2387 = vmatprep.subr.mxu0 0.0
        %2388 = vmatpush1.msra.mxu0 0.0
        %2389 = vmatprep.subr.mxu0 0.0
        %2390 = vmatpush1.msra.mxu0 0.0
        %2391 = vmatprep.subr.mxu0 0.0
        %2392 = vmatpush1.msra.mxu0 0.0
        %2393 = vmatprep.subr.mxu0 0.0
        %2394 = vmatpush1.msra.mxu0 0.0
        %2395 = vmatprep.mubr.f32.mxu0 0.0
        %2396 = vmatmul.mubr.f32.gmra.mrb[0].mxu0 %v2326
        %v2397 = vpop.f32.mrb[0].mxu0
        %v2398 = vadd.f32 %v2315, %v2397
        %v2399 = vpop.f32.mrb[0].mxu0
        %2400 = vmatprep.mubr.f32.mxu0 0.0
        %2401 = vmatmul.mubr.f32.gmra.mrb[0].mxu0 %v2329
        %v2402 = vpop.f32.mrb[0].mxu0
        %v2403 = vadd.f32 %v2316, %v2402
        %v2404 = vpop.f32.mrb[0].mxu0
        %2405 = vdwg.mxu0
        %2406 = vrot.lane.b32.xlu0 %v2023, 64
        %v2407 = vpop.permute.xlu0 %2406
        %2408 = vrot.lane.b32.xlu0 %v2025, 64
        %v2409 = vpop.permute.xlu0 %2408
        %v2413 = vsel %vm386, %v2297, 0
        %v2416 = vsel %vm386, %v2298, 0
        %2418 = vmatprep.subr.mxu0 0.0
        %2419 = vmatpush1.msra.mxu0 %v2407
        %2420 = vmatprep.subr.mxu0 0.0
        %2421 = vmatpush1.msra.mxu0 %v2409
        %2422 = vmatprep.subr.mxu0 0.0
        %2423 = vmatpush1.msra.mxu0 0.0
        %2424 = vmatprep.subr.mxu0 0.0
        %2425 = vmatpush1.msra.mxu0 0.0
        %2426 = vmatprep.subr.mxu0 0.0
        %2427 = vmatpush1.msra.mxu0 0.0
        %2428 = vmatprep.subr.mxu0 0.0
        %2429 = vmatpush1.msra.mxu0 0.0
        %2430 = vmatprep.subr.mxu0 0.0
        %2431 = vmatpush1.msra.mxu0 0.0
        %2432 = vmatprep.subr.mxu0 0.0
        %2433 = vmatpush1.msra.mxu0 0.0
        %2434 = vmatprep.subr.mxu0 0.0
        %2435 = vmatpush1.msra.mxu0 0.0
        %2436 = vmatprep.subr.mxu0 0.0
        %2437 = vmatpush1.msra.mxu0 0.0
        %2438 = vmatprep.subr.mxu0 0.0
        %2439 = vmatpush1.msra.mxu0 0.0
        %2440 = vmatprep.subr.mxu0 0.0
        %2441 = vmatpush1.msra.mxu0 0.0
        %2442 = vmatprep.subr.mxu0 0.0
        %2443 = vmatpush1.msra.mxu0 0.0
        %2444 = vmatprep.subr.mxu0 0.0
        %2445 = vmatpush1.msra.mxu0 0.0
        %2446 = vmatprep.subr.mxu0 0.0
        %2447 = vmatpush1.msra.mxu0 0.0
        %2448 = vmatprep.subr.mxu0 0.0
        %2449 = vmatpush1.msra.mxu0 0.0
        %2450 = vmatprep.subr.mxu0 0.0
        %2451 = vmatpush1.msra.mxu0 0.0
        %2452 = vmatprep.subr.mxu0 0.0
        %2453 = vmatpush1.msra.mxu0 0.0
        %2454 = vmatprep.subr.mxu0 0.0
        %2455 = vmatpush1.msra.mxu0 0.0
        %2456 = vmatprep.subr.mxu0 0.0
        %2457 = vmatpush1.msra.mxu0 0.0
        %2458 = vmatprep.subr.mxu0 0.0
        %2459 = vmatpush1.msra.mxu0 0.0
        %2460 = vmatprep.subr.mxu0 0.0
        %2461 = vmatpush1.msra.mxu0 0.0
        %2462 = vmatprep.subr.mxu0 0.0
        %2463 = vmatpush1.msra.mxu0 0.0
        %2464 = vmatprep.subr.mxu0 0.0
        %2465 = vmatpush1.msra.mxu0 0.0
        %2466 = vmatprep.subr.mxu0 0.0
        %2467 = vmatpush1.msra.mxu0 0.0
        %2468 = vmatprep.subr.mxu0 0.0
        %2469 = vmatpush1.msra.mxu0 0.0
        %2470 = vmatprep.subr.mxu0 0.0
        %2471 = vmatpush1.msra.mxu0 0.0
        %2472 = vmatprep.subr.mxu0 0.0
        %2473 = vmatpush1.msra.mxu0 0.0
        %2474 = vmatprep.subr.mxu0 0.0
        %2475 = vmatpush1.msra.mxu0 0.0
        %2476 = vmatprep.subr.mxu0 0.0
        %2477 = vmatpush1.msra.mxu0 0.0
        %2478 = vmatprep.subr.mxu0 0.0
        %2479 = vmatpush1.msra.mxu0 0.0
        %2480 = vmatprep.subr.mxu0 0.0
        %2481 = vmatpush1.msra.mxu0 0.0
        %2482 = vmatprep.mubr.f32.mxu0 0.0
        %2483 = vmatmul.mubr.f32.gmra.mrb[0].mxu0 %v2413
        %v2484 = vpop.f32.mrb[0].mxu0
        %v2485 = vadd.f32 %v2317, %v2484
        %v2486 = vpop.f32.mrb[0].mxu0
        %2487 = vmatprep.mubr.f32.mxu0 0.0
        %2488 = vmatmul.mubr.f32.gmra.mrb[0].mxu0 %v2416
        %v2489 = vpop.f32.mrb[0].mxu0
        %v2490 = vadd.f32 %v2318, %v2489
        %v2491 = vpop.f32.mrb[0].mxu0
        %2492 = vdwg.mxu0
        %v2493 = vsel %vm386, %v2398, 0.0
        %v2494 = vsel %vm386, %v2485, 0.0
        %v2495 = vadd.f32 %v2493, %v2494
        %v2496 = vsel %vm386, %v2403, 0.0
        %v2497 = vsel %vm386, %v2490, 0.0
        %v2498 = vadd.f32 %v2496, %v2497
        %v2499 = vmul.f32 %v2495, %v1571
        %v2500 = vmul.f32 %v2498, %v1571
        %2501 = vrot.lane.b32.xlu0 %v2012, 32
        %v2502 = vpop.permute.xlu0 %2501
        %2503 = vrot.lane.b32.xlu0 %v2017, 32
        %v2504 = vpop.permute.xlu0 %2503
        %v2507 = vadd.f32 %v2499, %v2502
        %v2508 = vadd.f32 %v2500, %v2504
        %v2509 = vld [vmem:[%s4] sm:$0xff]
        %v2510 = vld [vmem:[%s4 + $0x8] sm:$0xff]
        %v2511 = vld [vmem:[%s5] sm:$0x1]
        %v2513 = vsel %vm386, %v2507, 0
        %v2516 = vsel %vm386, %v2508, 0
        %2518 = vmatprep.subr.mxu0 0.0
        %2519 = vmatpush1.msra.mxu0 %v2509
        %2520 = vmatprep.subr.mxu0 0.0
        %2521 = vmatpush1.msra.mxu0 %v2510
        %2522 = vmatprep.subr.mxu0 0.0
        %2523 = vmatpush1.msra.mxu0 0.0
        %2524 = vmatprep.subr.mxu0 0.0
        %2525 = vmatpush1.msra.mxu0 0.0
        %2526 = vmatprep.subr.mxu0 0.0
        %2527 = vmatpush1.msra.mxu0 0.0
        %2528 = vmatprep.subr.mxu0 0.0
        %2529 = vmatpush1.msra.mxu0 0.0
        %2530 = vmatprep.subr.mxu0 0.0
        %2531 = vmatpush1.msra.mxu0 0.0
        %2532 = vmatprep.subr.mxu0 0.0
        %2533 = vmatpush1.msra.mxu0 0.0
        %2534 = vmatprep.subr.mxu0 0.0
        %2535 = vmatpush1.msra.mxu0 0.0
        %2536 = vmatprep.subr.mxu0 0.0
        %2537 = vmatpush1.msra.mxu0 0.0
        %2538 = vmatprep.subr.mxu0 0.0
        %2539 = vmatpush1.msra.mxu0 0.0
        %2540 = vmatprep.subr.mxu0 0.0
        %2541 = vmatpush1.msra.mxu0 0.0
        %2542 = vmatprep.subr.mxu0 0.0
        %2543 = vmatpush1.msra.mxu0 0.0
        %2544 = vmatprep.subr.mxu0 0.0
        %2545 = vmatpush1.msra.mxu0 0.0
        %2546 = vmatprep.subr.mxu0 0.0
        %2547 = vmatpush1.msra.mxu0 0.0
        %2548 = vmatprep.subr.mxu0 0.0
        %2549 = vmatpush1.msra.mxu0 0.0
        %2550 = vmatprep.subr.mxu0 0.0
        %2551 = vmatpush1.msra.mxu0 0.0
        %2552 = vmatprep.subr.mxu0 0.0
        %2553 = vmatpush1.msra.mxu0 0.0
        %2554 = vmatprep.subr.mxu0 0.0
        %2555 = vmatpush1.msra.mxu0 0.0
        %2556 = vmatprep.subr.mxu0 0.0
        %2557 = vmatpush1.msra.mxu0 0.0
        %2558 = vmatprep.subr.mxu0 0.0
        %2559 = vmatpush1.msra.mxu0 0.0
        %2560 = vmatprep.subr.mxu0 0.0
        %2561 = vmatpush1.msra.mxu0 0.0
        %2562 = vmatprep.subr.mxu0 0.0
        %2563 = vmatpush1.msra.mxu0 0.0
        %2564 = vmatprep.subr.mxu0 0.0
        %2565 = vmatpush1.msra.mxu0 0.0
        %2566 = vmatprep.subr.mxu0 0.0
        %2567 = vmatpush1.msra.mxu0 0.0
        %2568 = vmatprep.subr.mxu0 0.0
        %2569 = vmatpush1.msra.mxu0 0.0
        %2570 = vmatprep.subr.mxu0 0.0
        %2571 = vmatpush1.msra.mxu0 0.0
        %2572 = vmatprep.subr.mxu0 0.0
        %2573 = vmatpush1.msra.mxu0 0.0
        %2574 = vmatprep.subr.mxu0 0.0
        %2575 = vmatpush1.msra.mxu0 0.0
        %2576 = vmatprep.subr.mxu0 0.0
        %2577 = vmatpush1.msra.mxu0 0.0
        %2578 = vmatprep.subr.mxu0 0.0
        %2579 = vmatpush1.msra.mxu0 0.0
        %2580 = vmatprep.subr.mxu0 0.0
        %2581 = vmatpush1.msra.mxu0 0.0
        %2582 = vmatprep.mubr.f32.mxu0 0.0
        %2583 = vmatmul.mubr.f32.gmra.mrb[0].mxu0 %v2513
        %v2584 = vpop.f32.mrb[0].mxu0
        %v2585 = vadd.f32 0.0, %v2584
        %v2586 = vpop.f32.mrb[0].mxu0
        %2587 = vmatprep.mubr.f32.mxu0 0.0
        %2588 = vmatmul.mubr.f32.gmra.mrb[0].mxu0 %v2516
        %v2589 = vpop.f32.mrb[0].mxu0
        %v2590 = vadd.f32 0.0, %v2589
        %v2591 = vpop.f32.mrb[0].mxu0
        %2592 = vdwg.mxu0
        %v2594 = vlaneseq
        %v2595 = vshrl.u32 %v2594, 7
        %v2596 = vsub.s32 0, %v2595
        %v2597 = vrot.slane %v2511, %v2596
        %v2599 = vmul.f32 %v2585, %v2597
        %v2600 = vmul.f32 %v2590, %v2597
        %v2601 = vsel %vm386, %v2599, 0.0
        %2602 = vadd.xlane.f32.xlu0 %v2601
        %v2603 = vpop.xlane.xlu0 %2602
        %v2604 = vsel %vm386, %v2600, 0.0
        %2605 = vadd.xlane.f32.xlu0 %v2604
        %v2606 = vpop.xlane.xlu0 %2605
        %v2607 = vmul.f32 %v354, %v2603
        %v2608 = vmul.f32 %v355, %v2606
        %2611 = vrot.lane.b32.xlu0 %v2585, 112
        %v2612 = vpop.permute.xlu0 %2611
        %2613 = vrot.lane.b32.xlu0 %v2590, 112
        %v2614 = vpop.permute.xlu0 %2613
        %v2615 = vsel %vm386, %v2585, 0
        %v2617 = vsel %vm386, %v2590, 0
        %v2619 = vsel %vm386, %v2612, 0
        %v2621 = vsel %vm386, %v2614, 0
        %2623 = vmatprep.subr.mxu0 0.0
        %2624 = vmatpush1.xpose.msra.mxu0 %v2619
        %2625 = vmatprep.subr.mxu0 0.0
        %2626 = vmatpush1.xpose.msra.mxu0 %v2621
        %2627 = vmatprep.subr.mxu0 0.0
        %2628 = vmatpush1.xpose.msra.mxu0 0.0
        %2629 = vmatprep.subr.mxu0 0.0
        %2630 = vmatpush1.xpose.msra.mxu0 0.0
        %2631 = vmatprep.subr.mxu0 0.0
        %2632 = vmatpush1.xpose.msra.mxu0 0.0
        %2633 = vmatprep.subr.mxu0 0.0
        %2634 = vmatpush1.xpose.msra.mxu0 0.0
        %2635 = vmatprep.subr.mxu0 0.0
        %2636 = vmatpush1.xpose.msra.mxu0 0.0
        %2637 = vmatprep.subr.mxu0 0.0
        %2638 = vmatpush1.xpose.msra.mxu0 0.0
        %2639 = vmatprep.subr.mxu0 0.0
        %2640 = vmatpush1.xpose.msra.mxu0 0.0
        %2641 = vmatprep.subr.mxu0 0.0
        %2642 = vmatpush1.xpose.msra.mxu0 0.0
        %2643 = vmatprep.subr.mxu0 0.0
        %2644 = vmatpush1.xpose.msra.mxu0 0.0
        %2645 = vmatprep.subr.mxu0 0.0
        %2646 = vmatpush1.xpose.msra.mxu0 0.0
        %2647 = vmatprep.subr.mxu0 0.0
        %2648 = vmatpush1.xpose.msra.mxu0 0.0
        %2649 = vmatprep.subr.mxu0 0.0
        %2650 = vmatpush1.xpose.msra.mxu0 0.0
        %2651 = vmatprep.subr.mxu0 0.0
        %2652 = vmatpush1.xpose.msra.mxu0 0.0
        %2653 = vmatprep.subr.mxu0 0.0
        %2654 = vmatpush1.xpose.msra.mxu0 0.0
        %2655 = vmatprep.subr.mxu0 0.0
        %2656 = vmatpush1.xpose.msra.mxu0 0.0
        %2657 = vmatprep.subr.mxu0 0.0
        %2658 = vmatpush1.xpose.msra.mxu0 0.0
        %2659 = vmatprep.subr.mxu0 0.0
        %2660 = vmatpush1.xpose.msra.mxu0 0.0
        %2661 = vmatprep.subr.mxu0 0.0
        %2662 = vmatpush1.xpose.msra.mxu0 0.0
        %2663 = vmatprep.subr.mxu0 0.0
        %2664 = vmatpush1.xpose.msra.mxu0 0.0
        %2665 = vmatprep.subr.mxu0 0.0
        %2666 = vmatpush1.xpose.msra.mxu0 0.0
        %2667 = vmatprep.subr.mxu0 0.0
        %2668 = vmatpush1.xpose.msra.mxu0 0.0
        %2669 = vmatprep.subr.mxu0 0.0
        %2670 = vmatpush1.xpose.msra.mxu0 0.0
        %2671 = vmatprep.subr.mxu0 0.0
        %2672 = vmatpush1.xpose.msra.mxu0 0.0
        %2673 = vmatprep.subr.mxu0 0.0
        %2674 = vmatpush1.xpose.msra.mxu0 0.0
        %2675 = vmatprep.subr.mxu0 0.0
        %2676 = vmatpush1.xpose.msra.mxu0 0.0
        %2677 = vmatprep.subr.mxu0 0.0
        %2678 = vmatpush1.xpose.msra.mxu0 0.0
        %2679 = vmatprep.subr.mxu0 0.0
        %2680 = vmatpush1.xpose.msra.mxu0 0.0
        %2681 = vmatprep.subr.mxu0 0.0
        %2682 = vmatpush1.xpose.msra.mxu0 0.0
        %2683 = vmatprep.subr.mxu0 0.0
        %2684 = vmatpush1.xpose.msra.mxu0 0.0
        %2685 = vmatprep.subr.mxu0 0.0
        %2686 = vmatpush1.xpose.msra.mxu0 0.0
        %2687 = vmatprep.mubr.f32.mxu0 0.0
        %2688 = vmatmul.mubr.f32.gmra.mrb[0].mxu0 %v2615
        %v2689 = vpop.f32.mrb[0].mxu0
        %v2690 = vadd.f32 %v2607, %v2689
        %v2691 = vpop.f32.mrb[0].mxu0
        %2692 = vmatprep.mubr.f32.mxu0 0.0
        %2693 = vmatmul.mubr.f32.gmra.mrb[0].mxu0 %v2617
        %v2694 = vpop.f32.mrb[0].mxu0
        %v2695 = vadd.f32 %v2608, %v2694
        %v2696 = vpop.f32.mrb[0].mxu0
        %2697 = vdwg.mxu0
        %v2698 = vmul.f32 %v2690, 0.25
        %v2699 = vmul.f32 %v2695, 0.25
        %v2700 = vsel %vm356, %v2698, -1e+30
        %v2701 = vsel %vm357, %v2699, -1e+30
        %v2702 = vsel %vm386, %v2700, -inf
        %2703 = vmax.xlane.f32.xlu0 %v2702
        %v2704 = vpop.xlane.xlu0 %2703
        %v2705 = vsel %vm386, %v2701, -inf
        %2706 = vmax.xlane.f32.xlu0 %v2705
        %v2707 = vpop.xlane.xlu0 %2706
        %v2708 = vsub.f32 %v2700, %v2704
        %v2709 = vsub.f32 %v2701, %v2707
        %v2710 = vmul.f32 %v2708, 1.442695
        %v2711 = vpow.pop %v2710
        %v2712 = vmul.f32 %v2709, 1.442695
        %v2713 = vpow.pop %v2712
        %v2714 = vsel %vm356, %v2711, 0.0
        %v2715 = vsel %vm357, %v2713, 0.0
        %v2716 = vsel %vm386, %v2714, 0.0
        %2717 = vadd.xlane.f32.xlu0 %v2716
        %v2718 = vpop.xlane.xlu0 %2717
        %v2719 = vsel %vm386, %v2715, 0.0
        %2720 = vadd.xlane.f32.xlu0 %v2719
        %v2721 = vpop.xlane.xlu0 %2720
        %vm2722 = vcmp.eq.f32.partialorder %v2718, 0.0
        %vm2723 = vcmp.eq.f32.partialorder %v2721, 0.0
        %v2724 = vsel %vm2722, 1.0, %v2718
        %v2725 = vsel %vm2723, 1.0, %v2721
        %v2726 = vrcp.pop %v2724
        %v2727 = vrcp.pop %v2725
        %v2728 = vmul.f32 %v2714, %v2726
        %v2729 = vmul.f32 %v2715, %v2727
        %v2730 = vmul.f32 %v2728, %v354
        %v2731 = vmul.f32 %v2729, %v355
        %v2732 = vsel %vm386, %v2730, 0.0
        %2733 = vadd.xlane.f32.xlu0 %v2732
        %v2734 = vpop.xlane.xlu0 %2733
        %v2735 = vsel %vm386, %v2731, 0.0
        %2736 = vadd.xlane.f32.xlu0 %v2735
        %v2737 = vpop.xlane.xlu0 %2736
        %v2738 = vmul.f32 %v2734, %v2597
        %v2739 = vmul.f32 %v2737, %v2597
        %2740 = vrot.lane.b32.xlu0 %v2585, 96
        %v2741 = vpop.permute.xlu0 %2740
        %2742 = vrot.lane.b32.xlu0 %v2590, 96
        %v2743 = vpop.permute.xlu0 %2742
        %v2747 = vsel %vm386, %v2728, 0
        %v2750 = vsel %vm386, %v2729, 0
        %2752 = vmatprep.subr.mxu0 0.0
        %2753 = vmatpush1.msra.mxu0 %v2741
        %2754 = vmatprep.subr.mxu0 0.0
        %2755 = vmatpush1.msra.mxu0 %v2743
        %2756 = vmatprep.subr.mxu0 0.0
        %2757 = vmatpush1.msra.mxu0 0.0
        %2758 = vmatprep.subr.mxu0 0.0
        %2759 = vmatpush1.msra.mxu0 0.0
        %2760 = vmatprep.subr.mxu0 0.0
        %2761 = vmatpush1.msra.mxu0 0.0
        %2762 = vmatprep.subr.mxu0 0.0
        %2763 = vmatpush1.msra.mxu0 0.0
        %2764 = vmatprep.subr.mxu0 0.0
        %2765 = vmatpush1.msra.mxu0 0.0
        %2766 = vmatprep.subr.mxu0 0.0
        %2767 = vmatpush1.msra.mxu0 0.0
        %2768 = vmatprep.subr.mxu0 0.0
        %2769 = vmatpush1.msra.mxu0 0.0
        %2770 = vmatprep.subr.mxu0 0.0
        %2771 = vmatpush1.msra.mxu0 0.0
        %2772 = vmatprep.subr.mxu0 0.0
        %2773 = vmatpush1.msra.mxu0 0.0
        %2774 = vmatprep.subr.mxu0 0.0
        %2775 = vmatpush1.msra.mxu0 0.0
        %2776 = vmatprep.subr.mxu0 0.0
        %2777 = vmatpush1.msra.mxu0 0.0
        %2778 = vmatprep.subr.mxu0 0.0
        %2779 = vmatpush1.msra.mxu0 0.0
        %2780 = vmatprep.subr.mxu0 0.0
        %2781 = vmatpush1.msra.mxu0 0.0
        %2782 = vmatprep.subr.mxu0 0.0
        %2783 = vmatpush1.msra.mxu0 0.0
        %2784 = vmatprep.subr.mxu0 0.0
        %2785 = vmatpush1.msra.mxu0 0.0
        %2786 = vmatprep.subr.mxu0 0.0
        %2787 = vmatpush1.msra.mxu0 0.0
        %2788 = vmatprep.subr.mxu0 0.0
        %2789 = vmatpush1.msra.mxu0 0.0
        %2790 = vmatprep.subr.mxu0 0.0
        %2791 = vmatpush1.msra.mxu0 0.0
        %2792 = vmatprep.subr.mxu0 0.0
        %2793 = vmatpush1.msra.mxu0 0.0
        %2794 = vmatprep.subr.mxu0 0.0
        %2795 = vmatpush1.msra.mxu0 0.0
        %2796 = vmatprep.subr.mxu0 0.0
        %2797 = vmatpush1.msra.mxu0 0.0
        %2798 = vmatprep.subr.mxu0 0.0
        %2799 = vmatpush1.msra.mxu0 0.0
        %2800 = vmatprep.subr.mxu0 0.0
        %2801 = vmatpush1.msra.mxu0 0.0
        %2802 = vmatprep.subr.mxu0 0.0
        %2803 = vmatpush1.msra.mxu0 0.0
        %2804 = vmatprep.subr.mxu0 0.0
        %2805 = vmatpush1.msra.mxu0 0.0
        %2806 = vmatprep.subr.mxu0 0.0
        %2807 = vmatpush1.msra.mxu0 0.0
        %2808 = vmatprep.subr.mxu0 0.0
        %2809 = vmatpush1.msra.mxu0 0.0
        %2810 = vmatprep.subr.mxu0 0.0
        %2811 = vmatpush1.msra.mxu0 0.0
        %2812 = vmatprep.subr.mxu0 0.0
        %2813 = vmatpush1.msra.mxu0 0.0
        %2814 = vmatprep.subr.mxu0 0.0
        %2815 = vmatpush1.msra.mxu0 0.0
        %2816 = vmatprep.mubr.f32.mxu0 0.0
        %2817 = vmatmul.mubr.f32.gmra.mrb[0].mxu0 %v2747
        %v2818 = vpop.f32.mrb[0].mxu0
        %v2819 = vadd.f32 %v2738, %v2818
        %v2820 = vpop.f32.mrb[0].mxu0
        %2821 = vmatprep.mubr.f32.mxu0 0.0
        %2822 = vmatmul.mubr.f32.gmra.mrb[0].mxu0 %v2750
        %v2823 = vpop.f32.mrb[0].mxu0
        %v2824 = vadd.f32 %v2739, %v2823
        %v2825 = vpop.f32.mrb[0].mxu0
        %2826 = vdwg.mxu0
        %2827 = vrot.lane.b32.xlu0 %v2585, 80
        %v2828 = vpop.permute.xlu0 %2827
        %2829 = vrot.lane.b32.xlu0 %v2590, 80
        %v2830 = vpop.permute.xlu0 %2829
        %v2833 = vadd.f32 %v2819, %v2828
        %v2834 = vadd.f32 %v2824, %v2830
        %v2835 = vsel %vm386, %v2833, 0.0
        %2836 = vadd.xlane.f32.xlu0 %v2835
        %v2837 = vpop.xlane.xlu0 %2836
        %v2838 = vsel %vm386, %v2834, 0.0
        %2839 = vadd.xlane.f32.xlu0 %v2838
        %v2840 = vpop.xlane.xlu0 %2839
        %v2841 = vmul.f32 %v2837, %v627
        %v2842 = vmul.f32 %v2840, %v627
        %v2843 = vsub.f32 %v2833, %v2841
        %v2844 = vsub.f32 %v2834, %v2842
        %v2845 = vmul.f32 %v2843, %v2843
        %v2846 = vmul.f32 %v2844, %v2844
        %v2847 = vsel %vm386, %v2845, 0.0
        %2848 = vadd.xlane.f32.xlu0 %v2847
        %v2849 = vpop.xlane.xlu0 %2848
        %v2850 = vsel %vm386, %v2846, 0.0
        %2851 = vadd.xlane.f32.xlu0 %v2850
        %v2852 = vpop.xlane.xlu0 %2851
        %v2853 = vmul.f32 %v2849, %v627
        %v2854 = vmul.f32 %v2852, %v627
        %v2855 = vadd.f32 %v2853, 1e-05
        %v2856 = vadd.f32 %v2854, 1e-05
        %v2857 = vrsqrt.pop %v2855
        %v2858 = vrsqrt.pop %v2856
        %v2859 = vmul.f32 %v2843, %v2857
        %v2860 = vmul.f32 %v2844, %v2858
        %v2861 = vmax.f32 %v2859, 0.0
        %v2862 = vmax.f32 %v2860, 0.0
        %v2863 = vld [vmem:[#allocation5] sm:$0xff]
        %v2864 = vld [vmem:[#allocation5 + $0x8] sm:$0xff]
        %v2865 = vld [vmem:[%s7] sm:$0x1]
        %v2867 = vsel %vm386, %v2861, 0
        %v2870 = vsel %vm386, %v2862, 0
        %2872 = vmatprep.subr.mxu0 0.0
        %2873 = vmatpush1.msra.mxu0 %v2863
        %2874 = vmatprep.subr.mxu0 0.0
        %2875 = vmatpush1.msra.mxu0 %v2864
        %2876 = vmatprep.subr.mxu0 0.0
        %2877 = vmatpush1.msra.mxu0 0.0
        %2878 = vmatprep.subr.mxu0 0.0
        %2879 = vmatpush1.msra.mxu0 0.0
        %2880 = vmatprep.subr.mxu0 0.0
        %2881 = vmatpush1.msra.mxu0 0.0
        %2882 = vmatprep.subr.mxu0 0.0
        %2883 = vmatpush1.msra.mxu0 0.0
        %2884 = vmatprep.subr.mxu0 0.0
        %2885 = vmatpush1.msra.mxu0 0.0
        %2886 = vmatprep.subr.mxu0 0.0
        %2887 = vmatpush1.msra.mxu0 0.0
        %2888 = vmatprep.subr.mxu0 0.0
        %2889 = vmatpush1.msra.mxu0 0.0
        %2890 = vmatprep.subr.mxu0 0.0
        %2891 = vmatpush1.msra.mxu0 0.0
        %2892 = vmatprep.subr.mxu0 0.0
        %2893 = vmatpush1.msra.mxu0 0.0
        %2894 = vmatprep.subr.mxu0 0.0
        %2895 = vmatpush1.msra.mxu0 0.0
        %2896 = vmatprep.subr.mxu0 0.0
        %2897 = vmatpush1.msra.mxu0 0.0
        %2898 = vmatprep.subr.mxu0 0.0
        %2899 = vmatpush1.msra.mxu0 0.0
        %2900 = vmatprep.subr.mxu0 0.0
        %2901 = vmatpush1.msra.mxu0 0.0
        %2902 = vmatprep.subr.mxu0 0.0
        %2903 = vmatpush1.msra.mxu0 0.0
        %2904 = vmatprep.subr.mxu0 0.0
        %2905 = vmatpush1.msra.mxu0 0.0
        %2906 = vmatprep.subr.mxu0 0.0
        %2907 = vmatpush1.msra.mxu0 0.0
        %2908 = vmatprep.subr.mxu0 0.0
        %2909 = vmatpush1.msra.mxu0 0.0
        %2910 = vmatprep.subr.mxu0 0.0
        %2911 = vmatpush1.msra.mxu0 0.0
        %2912 = vmatprep.subr.mxu0 0.0
        %2913 = vmatpush1.msra.mxu0 0.0
        %2914 = vmatprep.subr.mxu0 0.0
        %2915 = vmatpush1.msra.mxu0 0.0
        %2916 = vmatprep.subr.mxu0 0.0
        %2917 = vmatpush1.msra.mxu0 0.0
        %2918 = vmatprep.subr.mxu0 0.0
        %2919 = vmatpush1.msra.mxu0 0.0
        %2920 = vmatprep.subr.mxu0 0.0
        %2921 = vmatpush1.msra.mxu0 0.0
        %2922 = vmatprep.subr.mxu0 0.0
        %2923 = vmatpush1.msra.mxu0 0.0
        %2924 = vmatprep.subr.mxu0 0.0
        %2925 = vmatpush1.msra.mxu0 0.0
        %2926 = vmatprep.subr.mxu0 0.0
        %2927 = vmatpush1.msra.mxu0 0.0
        %2928 = vmatprep.subr.mxu0 0.0
        %2929 = vmatpush1.msra.mxu0 0.0
        %2930 = vmatprep.subr.mxu0 0.0
        %2931 = vmatpush1.msra.mxu0 0.0
        %2932 = vmatprep.subr.mxu0 0.0
        %2933 = vmatpush1.msra.mxu0 0.0
        %2934 = vmatprep.subr.mxu0 0.0
        %2935 = vmatpush1.msra.mxu0 0.0
        %2936 = vmatprep.mubr.f32.mxu0 0.0
        %2937 = vmatmul.mubr.f32.gmra.mrb[0].mxu0 %v2867
        %v2938 = vpop.f32.mrb[0].mxu0
        %v2939 = vadd.f32 0.0, %v2938
        %v2940 = vpop.f32.mrb[0].mxu0
        %2941 = vmatprep.mubr.f32.mxu0 0.0
        %2942 = vmatmul.mubr.f32.gmra.mrb[0].mxu0 %v2870
        %v2943 = vpop.f32.mrb[0].mxu0
        %v2944 = vadd.f32 0.0, %v2943
        %v2945 = vpop.f32.mrb[0].mxu0
        %2946 = vdwg.mxu0
        %2949 = vrot.lane.b32.xlu0 %v2939, 112
        %v2950 = vpop.permute.xlu0 %2949
        %2951 = vrot.lane.b32.xlu0 %v2944, 112
        %v2952 = vpop.permute.xlu0 %2951
        %2956 = vrot.lane.b32.xlu0 %v2865, 112
        %v2957 = vpop.permute.xlu0 %2956
        %v2958 = vlaneseq
        %v2959 = vshrl.u32 %v2958, 7
        %v2960 = vsub.s32 0, %v2959
        %v2961 = vrot.slane %v2865, %v2960
        %v2962 = vlaneseq
        %v2963 = vshrl.u32 %v2962, 7
        %v2964 = vsub.s32 0, %v2963
        %v2965 = vrot.slane %v2957, %v2964
        %v2968 = vmul.f32 %v2939, %v2961
        %v2969 = vmul.f32 %v2944, %v2961
        %v2970 = vmul.f32 %v2950, %v2965
        %v2971 = vmul.f32 %v2952, %v2965
        %v2972 = vsel %vm386, %v2968, 0.0
        %2973 = vadd.xlane.f32.xlu0 %v2972
        %v2974 = vpop.xlane.xlu0 %2973
        %v2975 = vsel %vm386, %v2969, 0.0
        %2976 = vadd.xlane.f32.xlu0 %v2975
        %v2977 = vpop.xlane.xlu0 %2976
        %v2978 = vsel %vm386, %v2970, 0.0
        %2979 = vadd.xlane.f32.xlu0 %v2978
        %v2980 = vpop.xlane.xlu0 %2979
        %v2981 = vsel %vm386, %v2971, 0.0
        %2982 = vadd.xlane.f32.xlu0 %v2981
        %v2983 = vpop.xlane.xlu0 %2982
        %v2984 = vmul.f32 %v354, %v2974
        %v2985 = vmul.f32 %v355, %v2977
        %v2986 = vmul.f32 %v354, %v2980
        %v2987 = vmul.f32 %v355, %v2983
        %2988 = vrot.lane.b32.xlu0 %v2939, 96
        %v2989 = vpop.permute.xlu0 %2988
        %2990 = vrot.lane.b32.xlu0 %v2944, 96
        %v2991 = vpop.permute.xlu0 %2990
        %v2992 = vsel %vm386, %v2939, 0
        %v2994 = vsel %vm386, %v2944, 0
        %v2996 = vsel %vm386, %v2989, 0
        %v2998 = vsel %vm386, %v2991, 0
        %3000 = vmatprep.subr.mxu0 0.0
        %3001 = vmatpush1.xpose.msra.mxu0 %v2996
        %3002 = vmatprep.subr.mxu0 0.0
        %3003 = vmatpush1.xpose.msra.mxu0 %v2998
        %3004 = vmatprep.subr.mxu0 0.0
        %3005 = vmatpush1.xpose.msra.mxu0 0.0
        %3006 = vmatprep.subr.mxu0 0.0
        %3007 = vmatpush1.xpose.msra.mxu0 0.0
        %3008 = vmatprep.subr.mxu0 0.0
        %3009 = vmatpush1.xpose.msra.mxu0 0.0
        %3010 = vmatprep.subr.mxu0 0.0
        %3011 = vmatpush1.xpose.msra.mxu0 0.0
        %3012 = vmatprep.subr.mxu0 0.0
        %3013 = vmatpush1.xpose.msra.mxu0 0.0
        %3014 = vmatprep.subr.mxu0 0.0
        %3015 = vmatpush1.xpose.msra.mxu0 0.0
        %3016 = vmatprep.subr.mxu0 0.0
        %3017 = vmatpush1.xpose.msra.mxu0 0.0
        %3018 = vmatprep.subr.mxu0 0.0
        %3019 = vmatpush1.xpose.msra.mxu0 0.0
        %3020 = vmatprep.subr.mxu0 0.0
        %3021 = vmatpush1.xpose.msra.mxu0 0.0
        %3022 = vmatprep.subr.mxu0 0.0
        %3023 = vmatpush1.xpose.msra.mxu0 0.0
        %3024 = vmatprep.subr.mxu0 0.0
        %3025 = vmatpush1.xpose.msra.mxu0 0.0
        %3026 = vmatprep.subr.mxu0 0.0
        %3027 = vmatpush1.xpose.msra.mxu0 0.0
        %3028 = vmatprep.subr.mxu0 0.0
        %3029 = vmatpush1.xpose.msra.mxu0 0.0
        %3030 = vmatprep.subr.mxu0 0.0
        %3031 = vmatpush1.xpose.msra.mxu0 0.0
        %3032 = vmatprep.subr.mxu0 0.0
        %3033 = vmatpush1.xpose.msra.mxu0 0.0
        %3034 = vmatprep.subr.mxu0 0.0
        %3035 = vmatpush1.xpose.msra.mxu0 0.0
        %3036 = vmatprep.subr.mxu0 0.0
        %3037 = vmatpush1.xpose.msra.mxu0 0.0
        %3038 = vmatprep.subr.mxu0 0.0
        %3039 = vmatpush1.xpose.msra.mxu0 0.0
        %3040 = vmatprep.subr.mxu0 0.0
        %3041 = vmatpush1.xpose.msra.mxu0 0.0
        %3042 = vmatprep.subr.mxu0 0.0
        %3043 = vmatpush1.xpose.msra.mxu0 0.0
        %3044 = vmatprep.subr.mxu0 0.0
        %3045 = vmatpush1.xpose.msra.mxu0 0.0
        %3046 = vmatprep.subr.mxu0 0.0
        %3047 = vmatpush1.xpose.msra.mxu0 0.0
        %3048 = vmatprep.subr.mxu0 0.0
        %3049 = vmatpush1.xpose.msra.mxu0 0.0
        %3050 = vmatprep.subr.mxu0 0.0
        %3051 = vmatpush1.xpose.msra.mxu0 0.0
        %3052 = vmatprep.subr.mxu0 0.0
        %3053 = vmatpush1.xpose.msra.mxu0 0.0
        %3054 = vmatprep.subr.mxu0 0.0
        %3055 = vmatpush1.xpose.msra.mxu0 0.0
        %3056 = vmatprep.subr.mxu0 0.0
        %3057 = vmatpush1.xpose.msra.mxu0 0.0
        %3058 = vmatprep.subr.mxu0 0.0
        %3059 = vmatpush1.xpose.msra.mxu0 0.0
        %3060 = vmatprep.subr.mxu0 0.0
        %3061 = vmatpush1.xpose.msra.mxu0 0.0
        %3062 = vmatprep.subr.mxu0 0.0
        %3063 = vmatpush1.xpose.msra.mxu0 0.0
        %3064 = vmatprep.mubr.f32.mxu0 0.0
        %3065 = vmatmul.mubr.f32.gmra.mrb[0].mxu0 %v2992
        %v3066 = vpop.f32.mrb[0].mxu0
        %v3067 = vadd.f32 %v2984, %v3066
        %v3068 = vpop.f32.mrb[0].mxu0
        %3069 = vmatprep.mubr.f32.mxu0 0.0
        %3070 = vmatmul.mubr.f32.gmra.mrb[0].mxu0 %v2994
        %v3071 = vpop.f32.mrb[0].mxu0
        %v3072 = vadd.f32 %v2985, %v3071
        %v3073 = vpop.f32.mrb[0].mxu0
        %3074 = vdwg.mxu0
        %3075 = vrot.lane.b32.xlu0 %v2950, 96
        %v3076 = vpop.permute.xlu0 %3075
        %3077 = vrot.lane.b32.xlu0 %v2952, 96
        %v3078 = vpop.permute.xlu0 %3077
        %v3079 = vsel %vm386, %v2950, 0
        %v3081 = vsel %vm386, %v2952, 0
        %v3083 = vsel %vm386, %v3076, 0
        %v3085 = vsel %vm386, %v3078, 0
        %3087 = vmatprep.subr.mxu0 0.0
        %3088 = vmatpush1.xpose.msra.mxu0 %v3083
        %3089 = vmatprep.subr.mxu0 0.0
        %3090 = vmatpush1.xpose.msra.mxu0 %v3085
        %3091 = vmatprep.subr.mxu0 0.0
        %3092 = vmatpush1.xpose.msra.mxu0 0.0
        %3093 = vmatprep.subr.mxu0 0.0
        %3094 = vmatpush1.xpose.msra.mxu0 0.0
        %3095 = vmatprep.subr.mxu0 0.0
        %3096 = vmatpush1.xpose.msra.mxu0 0.0
        %3097 = vmatprep.subr.mxu0 0.0
        %3098 = vmatpush1.xpose.msra.mxu0 0.0
        %3099 = vmatprep.subr.mxu0 0.0
        %3100 = vmatpush1.xpose.msra.mxu0 0.0
        %3101 = vmatprep.subr.mxu0 0.0
        %3102 = vmatpush1.xpose.msra.mxu0 0.0
        %3103 = vmatprep.subr.mxu0 0.0
        %3104 = vmatpush1.xpose.msra.mxu0 0.0
        %3105 = vmatprep.subr.mxu0 0.0
        %3106 = vmatpush1.xpose.msra.mxu0 0.0
        %3107 = vmatprep.subr.mxu0 0.0
        %3108 = vmatpush1.xpose.msra.mxu0 0.0
        %3109 = vmatprep.subr.mxu0 0.0
        %3110 = vmatpush1.xpose.msra.mxu0 0.0
        %3111 = vmatprep.subr.mxu0 0.0
        %3112 = vmatpush1.xpose.msra.mxu0 0.0
        %3113 = vmatprep.subr.mxu0 0.0
        %3114 = vmatpush1.xpose.msra.mxu0 0.0
        %3115 = vmatprep.subr.mxu0 0.0
        %3116 = vmatpush1.xpose.msra.mxu0 0.0
        %3117 = vmatprep.subr.mxu0 0.0
        %3118 = vmatpush1.xpose.msra.mxu0 0.0
        %3119 = vmatprep.subr.mxu0 0.0
        %3120 = vmatpush1.xpose.msra.mxu0 0.0
        %3121 = vmatprep.subr.mxu0 0.0
        %3122 = vmatpush1.xpose.msra.mxu0 0.0
        %3123 = vmatprep.subr.mxu0 0.0
        %3124 = vmatpush1.xpose.msra.mxu0 0.0
        %3125 = vmatprep.subr.mxu0 0.0
        %3126 = vmatpush1.xpose.msra.mxu0 0.0
        %3127 = vmatprep.subr.mxu0 0.0
        %3128 = vmatpush1.xpose.msra.mxu0 0.0
        %3129 = vmatprep.subr.mxu0 0.0
        %3130 = vmatpush1.xpose.msra.mxu0 0.0
        %3131 = vmatprep.subr.mxu0 0.0
        %3132 = vmatpush1.xpose.msra.mxu0 0.0
        %3133 = vmatprep.subr.mxu0 0.0
        %3134 = vmatpush1.xpose.msra.mxu0 0.0
        %3135 = vmatprep.subr.mxu0 0.0
        %3136 = vmatpush1.xpose.msra.mxu0 0.0
        %3137 = vmatprep.subr.mxu0 0.0
        %3138 = vmatpush1.xpose.msra.mxu0 0.0
        %3139 = vmatprep.subr.mxu0 0.0
        %3140 = vmatpush1.xpose.msra.mxu0 0.0
        %3141 = vmatprep.subr.mxu0 0.0
        %3142 = vmatpush1.xpose.msra.mxu0 0.0
        %3143 = vmatprep.subr.mxu0 0.0
        %3144 = vmatpush1.xpose.msra.mxu0 0.0
        %3145 = vmatprep.subr.mxu0 0.0
        %3146 = vmatpush1.xpose.msra.mxu0 0.0
        %3147 = vmatprep.subr.mxu0 0.0
        %3148 = vmatpush1.xpose.msra.mxu0 0.0
        %3149 = vmatprep.subr.mxu0 0.0
        %3150 = vmatpush1.xpose.msra.mxu0 0.0
        %3151 = vmatprep.mubr.f32.mxu0 0.0
        %3152 = vmatmul.mubr.f32.gmra.mrb[0].mxu0 %v3079
        %v3153 = vpop.f32.mrb[0].mxu0
        %v3154 = vadd.f32 %v2986, %v3153
        %v3155 = vpop.f32.mrb[0].mxu0
        %3156 = vmatprep.mubr.f32.mxu0 0.0
        %3157 = vmatmul.mubr.f32.gmra.mrb[0].mxu0 %v3081
        %v3158 = vpop.f32.mrb[0].mxu0
        %v3159 = vadd.f32 %v2987, %v3158
        %v3160 = vpop.f32.mrb[0].mxu0
        %3161 = vdwg.mxu0
        %v3162 = vmul.f32 %v3067, 0.25
        %v3163 = vmul.f32 %v3072, 0.25
        %v3164 = vmul.f32 %v3154, 0.25
        %v3165 = vmul.f32 %v3159, 0.25
        %v3166 = vsel %vm1309, %v3162, -1e+30
        %v3167 = vsel %vm1310, %v3163, -1e+30
        %v3168 = vsel %vm1309, %v3164, -1e+30
        %v3169 = vsel %vm1310, %v3165, -1e+30
        %v3170 = vsel %vm386, %v3166, -inf
        %3171 = vmax.xlane.f32.xlu0 %v3170
        %v3172 = vpop.xlane.xlu0 %3171
        %v3173 = vsel %vm386, %v3167, -inf
        %3174 = vmax.xlane.f32.xlu0 %v3173
        %v3175 = vpop.xlane.xlu0 %3174
        %v3176 = vsel %vm386, %v3168, -inf
        %3177 = vmax.xlane.f32.xlu0 %v3176
        %v3178 = vpop.xlane.xlu0 %3177
        %v3179 = vsel %vm386, %v3169, -inf
        %3180 = vmax.xlane.f32.xlu0 %v3179
        %v3181 = vpop.xlane.xlu0 %3180
        %v3182 = vsub.f32 %v3166, %v3172
        %v3183 = vsub.f32 %v3167, %v3175
        %v3184 = vsub.f32 %v3168, %v3178
        %v3185 = vsub.f32 %v3169, %v3181
        %v3186 = vmul.f32 %v3182, 1.442695
        %v3187 = vpow.pop %v3186
        %v3188 = vmul.f32 %v3183, 1.442695
        %v3189 = vpow.pop %v3188
        %v3190 = vmul.f32 %v3184, 1.442695
        %v3191 = vpow.pop %v3190
        %v3192 = vmul.f32 %v3185, 1.442695
        %v3193 = vpow.pop %v3192
        %v3194 = vsel %vm1309, %v3187, 0.0
        %v3195 = vsel %vm1310, %v3189, 0.0
        %v3196 = vsel %vm1309, %v3191, 0.0
        %v3197 = vsel %vm1310, %v3193, 0.0
        %v3198 = vsel %vm386, %v3194, 0.0
        %3199 = vadd.xlane.f32.xlu0 %v3198
        %v3200 = vpop.xlane.xlu0 %3199
        %v3201 = vsel %vm386, %v3195, 0.0
        %3202 = vadd.xlane.f32.xlu0 %v3201
        %v3203 = vpop.xlane.xlu0 %3202
        %v3204 = vsel %vm386, %v3196, 0.0
        %3205 = vadd.xlane.f32.xlu0 %v3204
        %v3206 = vpop.xlane.xlu0 %3205
        %v3207 = vsel %vm386, %v3197, 0.0
        %3208 = vadd.xlane.f32.xlu0 %v3207
        %v3209 = vpop.xlane.xlu0 %3208
        %vm3210 = vcmp.eq.f32.partialorder %v3200, 0.0
        %vm3211 = vcmp.eq.f32.partialorder %v3203, 0.0
        %vm3212 = vcmp.eq.f32.partialorder %v3206, 0.0
        %vm3213 = vcmp.eq.f32.partialorder %v3209, 0.0
        %v3214 = vsel %vm3210, 1.0, %v3200
        %v3215 = vsel %vm3211, 1.0, %v3203
        %v3216 = vsel %vm3212, 1.0, %v3206
        %v3217 = vsel %vm3213, 1.0, %v3209
        %v3218 = vrcp.pop %v3214
        %v3219 = vrcp.pop %v3215
        %v3220 = vrcp.pop %v3216
        %v3221 = vrcp.pop %v3217
        %v3222 = vmul.f32 %v3194, %v3218
        %v3223 = vmul.f32 %v3195, %v3219
        %v3224 = vmul.f32 %v3196, %v3220
        %v3225 = vmul.f32 %v3197, %v3221
        %v3226 = vmul.f32 %v3222, %v354
        %v3227 = vmul.f32 %v3223, %v355
        %v3228 = vmul.f32 %v3224, %v354
        %v3229 = vmul.f32 %v3225, %v355
        %v3230 = vsel %vm386, %v3226, 0.0
        %3231 = vadd.xlane.f32.xlu0 %v3230
        %v3232 = vpop.xlane.xlu0 %3231
        %v3233 = vsel %vm386, %v3227, 0.0
        %3234 = vadd.xlane.f32.xlu0 %v3233
        %v3235 = vpop.xlane.xlu0 %3234
        %v3236 = vsel %vm386, %v3228, 0.0
        %3237 = vadd.xlane.f32.xlu0 %v3236
        %v3238 = vpop.xlane.xlu0 %3237
        %v3239 = vsel %vm386, %v3229, 0.0
        %3240 = vadd.xlane.f32.xlu0 %v3239
        %v3241 = vpop.xlane.xlu0 %3240
        %v3242 = vmul.f32 %v3232, %v2961
        %v3243 = vmul.f32 %v3235, %v2961
        %v3244 = vmul.f32 %v3238, %v2965
        %v3245 = vmul.f32 %v3241, %v2965
        %3246 = vrot.lane.b32.xlu0 %v2939, 64
        %v3247 = vpop.permute.xlu0 %3246
        %3248 = vrot.lane.b32.xlu0 %v2944, 64
        %v3249 = vpop.permute.xlu0 %3248
        %v3253 = vsel %vm386, %v3222, 0
        %v3256 = vsel %vm386, %v3223, 0
        %3258 = vmatprep.subr.mxu0 0.0
        %3259 = vmatpush1.msra.mxu0 %v3247
        %3260 = vmatprep.subr.mxu0 0.0
        %3261 = vmatpush1.msra.mxu0 %v3249
        %3262 = vmatprep.subr.mxu0 0.0
        %3263 = vmatpush1.msra.mxu0 0.0
        %3264 = vmatprep.subr.mxu0 0.0
        %3265 = vmatpush1.msra.mxu0 0.0
        %3266 = vmatprep.subr.mxu0 0.0
        %3267 = vmatpush1.msra.mxu0 0.0
        %3268 = vmatprep.subr.mxu0 0.0
        %3269 = vmatpush1.msra.mxu0 0.0
        %3270 = vmatprep.subr.mxu0 0.0
        %3271 = vmatpush1.msra.mxu0 0.0
        %3272 = vmatprep.subr.mxu0 0.0
        %3273 = vmatpush1.msra.mxu0 0.0
        %3274 = vmatprep.subr.mxu0 0.0
        %3275 = vmatpush1.msra.mxu0 0.0
        %3276 = vmatprep.subr.mxu0 0.0
        %3277 = vmatpush1.msra.mxu0 0.0
        %3278 = vmatprep.subr.mxu0 0.0
        %3279 = vmatpush1.msra.mxu0 0.0
        %3280 = vmatprep.subr.mxu0 0.0
        %3281 = vmatpush1.msra.mxu0 0.0
        %3282 = vmatprep.subr.mxu0 0.0
        %3283 = vmatpush1.msra.mxu0 0.0
        %3284 = vmatprep.subr.mxu0 0.0
        %3285 = vmatpush1.msra.mxu0 0.0
        %3286 = vmatprep.subr.mxu0 0.0
        %3287 = vmatpush1.msra.mxu0 0.0
        %3288 = vmatprep.subr.mxu0 0.0
        %3289 = vmatpush1.msra.mxu0 0.0
        %3290 = vmatprep.subr.mxu0 0.0
        %3291 = vmatpush1.msra.mxu0 0.0
        %3292 = vmatprep.subr.mxu0 0.0
        %3293 = vmatpush1.msra.mxu0 0.0
        %3294 = vmatprep.subr.mxu0 0.0
        %3295 = vmatpush1.msra.mxu0 0.0
        %3296 = vmatprep.subr.mxu0 0.0
        %3297 = vmatpush1.msra.mxu0 0.0
        %3298 = vmatprep.subr.mxu0 0.0
        %3299 = vmatpush1.msra.mxu0 0.0
        %3300 = vmatprep.subr.mxu0 0.0
        %3301 = vmatpush1.msra.mxu0 0.0
        %3302 = vmatprep.subr.mxu0 0.0
        %3303 = vmatpush1.msra.mxu0 0.0
        %3304 = vmatprep.subr.mxu0 0.0
        %3305 = vmatpush1.msra.mxu0 0.0
        %3306 = vmatprep.subr.mxu0 0.0
        %3307 = vmatpush1.msra.mxu0 0.0
        %3308 = vmatprep.subr.mxu0 0.0
        %3309 = vmatpush1.msra.mxu0 0.0
        %3310 = vmatprep.subr.mxu0 0.0
        %3311 = vmatpush1.msra.mxu0 0.0
        %3312 = vmatprep.subr.mxu0 0.0
        %3313 = vmatpush1.msra.mxu0 0.0
        %3314 = vmatprep.subr.mxu0 0.0
        %3315 = vmatpush1.msra.mxu0 0.0
        %3316 = vmatprep.subr.mxu0 0.0
        %3317 = vmatpush1.msra.mxu0 0.0
        %3318 = vmatprep.subr.mxu0 0.0
        %3319 = vmatpush1.msra.mxu0 0.0
        %3320 = vmatprep.subr.mxu0 0.0
        %3321 = vmatpush1.msra.mxu0 0.0
        %3322 = vmatprep.mubr.f32.mxu0 0.0
        %3323 = vmatmul.mubr.f32.gmra.mrb[0].mxu0 %v3253
        %v3324 = vpop.f32.mrb[0].mxu0
        %v3325 = vadd.f32 %v3242, %v3324
        %v3326 = vpop.f32.mrb[0].mxu0
        %3327 = vmatprep.mubr.f32.mxu0 0.0
        %3328 = vmatmul.mubr.f32.gmra.mrb[0].mxu0 %v3256
        %v3329 = vpop.f32.mrb[0].mxu0
        %v3330 = vadd.f32 %v3243, %v3329
        %v3331 = vpop.f32.mrb[0].mxu0
        %3332 = vdwg.mxu0
        %3333 = vrot.lane.b32.xlu0 %v2950, 64
        %v3334 = vpop.permute.xlu0 %3333
        %3335 = vrot.lane.b32.xlu0 %v2952, 64
        %v3336 = vpop.permute.xlu0 %3335
        %v3340 = vsel %vm386, %v3224, 0
        %v3343 = vsel %vm386, %v3225, 0
        %3345 = vmatprep.subr.mxu0 0.0
        %3346 = vmatpush1.msra.mxu0 %v3334
        %3347 = vmatprep.subr.mxu0 0.0
        %3348 = vmatpush1.msra.mxu0 %v3336
        %3349 = vmatprep.subr.mxu0 0.0
        %3350 = vmatpush1.msra.mxu0 0.0
        %3351 = vmatprep.subr.mxu0 0.0
        %3352 = vmatpush1.msra.mxu0 0.0
        %3353 = vmatprep.subr.mxu0 0.0
        %3354 = vmatpush1.msra.mxu0 0.0
        %3355 = vmatprep.subr.mxu0 0.0
        %3356 = vmatpush1.msra.mxu0 0.0
        %3357 = vmatprep.subr.mxu0 0.0
        %3358 = vmatpush1.msra.mxu0 0.0
        %3359 = vmatprep.subr.mxu0 0.0
        %3360 = vmatpush1.msra.mxu0 0.0
        %3361 = vmatprep.subr.mxu0 0.0
        %3362 = vmatpush1.msra.mxu0 0.0
        %3363 = vmatprep.subr.mxu0 0.0
        %3364 = vmatpush1.msra.mxu0 0.0
        %3365 = vmatprep.subr.mxu0 0.0
        %3366 = vmatpush1.msra.mxu0 0.0
        %3367 = vmatprep.subr.mxu0 0.0
        %3368 = vmatpush1.msra.mxu0 0.0
        %3369 = vmatprep.subr.mxu0 0.0
        %3370 = vmatpush1.msra.mxu0 0.0
        %3371 = vmatprep.subr.mxu0 0.0
        %3372 = vmatpush1.msra.mxu0 0.0
        %3373 = vmatprep.subr.mxu0 0.0
        %3374 = vmatpush1.msra.mxu0 0.0
        %3375 = vmatprep.subr.mxu0 0.0
        %3376 = vmatpush1.msra.mxu0 0.0
        %3377 = vmatprep.subr.mxu0 0.0
        %3378 = vmatpush1.msra.mxu0 0.0
        %3379 = vmatprep.subr.mxu0 0.0
        %3380 = vmatpush1.msra.mxu0 0.0
        %3381 = vmatprep.subr.mxu0 0.0
        %3382 = vmatpush1.msra.mxu0 0.0
        %3383 = vmatprep.subr.mxu0 0.0
        %3384 = vmatpush1.msra.mxu0 0.0
        %3385 = vmatprep.subr.mxu0 0.0
        %3386 = vmatpush1.msra.mxu0 0.0
        %3387 = vmatprep.subr.mxu0 0.0
        %3388 = vmatpush1.msra.mxu0 0.0
        %3389 = vmatprep.subr.mxu0 0.0
        %3390 = vmatpush1.msra.mxu0 0.0
        %3391 = vmatprep.subr.mxu0 0.0
        %3392 = vmatpush1.msra.mxu0 0.0
        %3393 = vmatprep.subr.mxu0 0.0
        %3394 = vmatpush1.msra.mxu0 0.0
        %3395 = vmatprep.subr.mxu0 0.0
        %3396 = vmatpush1.msra.mxu0 0.0
        %3397 = vmatprep.subr.mxu0 0.0
        %3398 = vmatpush1.msra.mxu0 0.0
        %3399 = vmatprep.subr.mxu0 0.0
        %3400 = vmatpush1.msra.mxu0 0.0
        %3401 = vmatprep.subr.mxu0 0.0
        %3402 = vmatpush1.msra.mxu0 0.0
        %3403 = vmatprep.subr.mxu0 0.0
        %3404 = vmatpush1.msra.mxu0 0.0
        %3405 = vmatprep.subr.mxu0 0.0
        %3406 = vmatpush1.msra.mxu0 0.0
        %3407 = vmatprep.subr.mxu0 0.0
        %3408 = vmatpush1.msra.mxu0 0.0
        %3409 = vmatprep.mubr.f32.mxu0 0.0
        %3410 = vmatmul.mubr.f32.gmra.mrb[0].mxu0 %v3340
        %v3411 = vpop.f32.mrb[0].mxu0
        %v3412 = vadd.f32 %v3244, %v3411
        %v3413 = vpop.f32.mrb[0].mxu0
        %3414 = vmatprep.mubr.f32.mxu0 0.0
        %3415 = vmatmul.mubr.f32.gmra.mrb[0].mxu0 %v3343
        %v3416 = vpop.f32.mrb[0].mxu0
        %v3417 = vadd.f32 %v3245, %v3416
        %v3418 = vpop.f32.mrb[0].mxu0
        %3419 = vdwg.mxu0
        %v3420 = vsel %vm386, %v3325, 0.0
        %v3421 = vsel %vm386, %v3412, 0.0
        %v3422 = vadd.f32 %v3420, %v3421
        %v3423 = vsel %vm386, %v3330, 0.0
        %v3424 = vsel %vm386, %v3417, 0.0
        %v3425 = vadd.f32 %v3423, %v3424
        %v3426 = vmul.f32 %v3422, %v1571
        %v3427 = vmul.f32 %v3425, %v1571
        %3428 = vrot.lane.b32.xlu0 %v2939, 32
        %v3429 = vpop.permute.xlu0 %3428
        %3430 = vrot.lane.b32.xlu0 %v2944, 32
        %v3431 = vpop.permute.xlu0 %3430
        %v3434 = vadd.f32 %v3426, %v3429
        %v3435 = vadd.f32 %v3427, %v3431
        %3436 = vst.msk [vmem:[%s341] sm:$0xff] %vm386, %v3434
        %3437 = vst.msk [vmem:[%s341 + $0x8] sm:$0xff] %vm386, %v3435
        %s3438 = sand.u32 %s210, 1
        %s3439 = scalar_lea.sflag [#allocation4], %s3438
        %s3440 = sand.u32 %s210, 1
        %s3441 = smul.addr %s3440, 16
        %s3442 = scalar_lea.vmem [#allocation7], %s3441
        // Predicated region
        $region61: #{tpu_custom_call.1} parent=51 // pred_check
          %p3443 = pneg %p220
        $region62: #{tpu_custom_call.1} parent=51 // pred_check_branch
          %3445 = sbr.rel (%p3443) target = $region64
        $region63: #{tpu_custom_call.1} parent=51 // pred_region
          %s3447 = ssub.s32 256, 256
          %3448 = vsyncadd %s3439, %s3447
          %s3449 = smul.addr %s24, 2
          %s3450 = smul.addr %s3449, 128
          %s3451 = scalar_lea.hbm %s8, %s3450
          %s3452 = sshll.u32 %s3442, 4
          %s3453 = int_to_ptr.vmem [resolvable:$true] %s3452
          %3458 = dma.vmem_to_hbm [thread:$0]  %s3453, 256, %s3451, %s3439, 128, 128, 8
        $region64: #{tpu_custom_call.1} parent=51 // pred_fallthru
          _
      $region52: #{tpu_custom_call.1} parent=5 // pred_fallthru
        _
      %p3459 = scmp.le.s32.totalorder 2, %s19
      // Predicated region
      $region65: #{tpu_custom_call.1} parent=5 // pred_check
        %p3460 = pneg %p3459
      $region66: #{tpu_custom_call.1} parent=5 // pred_check_branch
        %3462 = sbr.rel (%p3460) target = $region68
      $region67: #{tpu_custom_call.1} parent=5 // pred_region
        %s3463 = ssub.s32 %s19, 2
        // Predicated region
        $region69: #{tpu_custom_call.1} parent=67 // pred_check
          %p3464 = pneg %p226
        $region70: #{tpu_custom_call.1} parent=67 // pred_check_branch
          %3466 = sbr.rel (%p3464) target = $region72
        $region71: #{tpu_custom_call.1} parent=67 // pred_region
          %s3467 = sand.u32 %s211, 1
          %s3468 = scalar_lea.sflag [#allocation4], %s3467
          %s3469 = sand.u32 %s211, 1
          %s3470 = smul.addr %s3469, 16
          %s3471 = scalar_lea.vmem [#allocation7], %s3470
          %3472 = dma.done %s3468, 256
        $region72: #{tpu_custom_call.1} parent=67 // pred_fallthru
          _
      $region68: #{tpu_custom_call.1} parent=5 // pred_fallthru
        _
    $region6: #{tpu_custom_call.1} parent=1 // loop_footer
      %s23 = sadd.s32 1, %s19
    $region7: #{tpu_custom_call.1} parent=1 // loop_footer_branch
      %18 = sbr.rel target = $region3
    $region8: #{tpu_custom_call.1} parent=1 // loop_exit
      _
    %3473 = vsyncpa [#allocation3], 1
    %s3474 = scalar_lea.sflag [#allocation3], 1
    %3475 = vsyncpa %s3474, 1
    %3476 = vsyncpa [#allocation6], 1
    %3477 = vsyncpa [#allocation4], 1
    %s3478 = scalar_lea.sflag [#allocation4], 1
    %3479 = vsyncpa %s3478, 1

</llo_original>
